<compile_context>
chip_gen: v5e
topology: v5e:2x2
jax: 0.10.0
libtpu: 0.0.40
codegen_flags: <defaults>
</compile_context>

<pallas_src>
import functools

import jax
import jax.numpy as jnp
from jax.experimental import pallas as pl
from jax.experimental.pallas import tpu as pltpu

_LANES = 128  # pad the combined channel dim (Cin + Chid) to this per kw-tap


def _round_up(x, m):
    return -(-x // m) * m


# ----------------------------------------------------------------------------
# Pallas kernel: one ConvLSTM layer, grid = (B, T); time carries state.
# ----------------------------------------------------------------------------
def _convlstm_layer_kernel(x_ref, w_ref, b_ref,          # inputs
                           hseq_ref, c_ref,              # outputs (c_ref carries c)
                           col_ref,                      # VMEM scratch (im2col, carries h)
                           *, H, W, Cin, Chid, kh, kw, Cp):
    t = pl.program_id(1)
    T = pl.num_programs(1)
    ph, pw = kh // 2, kw // 2
    R = H * W
    Kc = kw * Cp

    # Fresh (b, t==0): zero the im2col buffer (its never-written borders and
    # channel-padding lanes must stay zero) and the carried cell state.
    @pl.when(t == 0)
    def _init():
        col_ref[...] = jnp.zeros_like(col_ref)
        c_ref[...] = jnp.zeros_like(c_ref)

    # --- scatter x_t into the kw column-replica lane slots (no concat) ------
    x_t = x_ref[0, 0]                                     # (H, W, Cin) bf16
    for dj in range(kw):
        n = W - abs(dj - pw)
        dlo = max(0, pw - dj)
        slo = max(0, dj - pw)
        col_ref[ph:ph + H, dlo:dlo + n, dj * Cp:dj * Cp + Cin] = \
            x_t[:, slo:slo + n, :]

    # --- "same" conv as kh deep-K (kw*Cp = 384) bf16 matmuls, f32 accumulate -
    acc = jnp.dot(col_ref[0:H].reshape(R, Kc), w_ref[0],
                  preferred_element_type=jnp.float32)
    for di in range(1, kh):
        acc = acc + jnp.dot(col_ref[di:di + H].reshape(R, Kc), w_ref[di],
                            preferred_element_type=jnp.float32)
    acc = acc + b_ref[...]                                # (R, 4*Chid) f32

    # --- gates: full-width sigmoid/tanh + lane select (i,f,o | g) -----------
    lane = jax.lax.broadcasted_iota(jnp.int32, acc.shape, 1)
    gates = jnp.where(lane < 3 * Chid, jax.nn.sigmoid(acc), jnp.tanh(acc))
    i_g = gates[:, 0 * Chid:1 * Chid]
    f_g = gates[:, 1 * Chid:2 * Chid]
    o_g = gates[:, 2 * Chid:3 * Chid]
    g_g = gates[:, 3 * Chid:4 * Chid]

    c_prev = c_ref[0].reshape(R, Chid)                    # carried f32 state
    c_next = f_g * c_prev + i_g * g_g
    h_next = o_g * jnp.tanh(c_next)

    # --- carry / emit --------------------------------------------------------
    c_ref[0] = c_next.reshape(H, W, Chid)                 # stays VMEM-resident over t
    h_hw = h_next.reshape(H, W, Chid)
    hseq_ref[0, 0] = h_hw.astype(hseq_ref.dtype)

    # h feeds the next step's conv: scatter bf16 h into the kw replica slots.
    @pl.when(t < T - 1)
    def _carry_h():
        h_bf = h_hw.astype(jnp.bfloat16)
        for dj in range(kw):
            n = W - abs(dj - pw)
            dlo = max(0, pw - dj)
            slo = max(0, dj - pw)
            col_ref[ph:ph + H, dlo:dlo + n,
                    dj * Cp + Cin:dj * Cp + Cin + Chid] = h_bf[:, slo:slo + n, :]


def convlstm_layer(x_seq, w_fused, bias, hidden_dim, kernel_size, cp):
    """One ConvLSTM layer over all time steps with a single pallas_call.

    x_seq:   (T, B, H, W, Cin) bf16
    w_fused: (kh, kw*cp, 4*hidden_dim) bf16, zero-padded channel rows
    bias:    (1, 4*hidden_dim) f32
    Returns: h_seq (T, B, H, W, Chid) bf16, c_last (B, H, W, Chid) f32
    """
    T, B, H, W, Cin = x_seq.shape
    kh, kw = kernel_size
    Chid = hidden_dim
    Kc = kw * cp
    Nout = 4 * Chid

    kernel = functools.partial(
        _convlstm_layer_kernel,
        H=H, W=W, Cin=Cin, Chid=Chid, kh=kh, kw=kw, Cp=cp)

    grid_spec = pltpu.PrefetchScalarGridSpec(
        num_scalar_prefetch=0,
        grid=(B, T),                                       # batch parallel, time sequential
        in_specs=[
            pl.BlockSpec((1, 1, H, W, Cin), lambda b, t: (t, b, 0, 0, 0)),
            pl.BlockSpec((kh, Kc, Nout), lambda b, t: (0, 0, 0)),
            pl.BlockSpec((1, Nout), lambda b, t: (0, 0)),
        ],
        out_specs=[
            pl.BlockSpec((1, 1, H, W, Chid), lambda b, t: (t, b, 0, 0, 0)),
            pl.BlockSpec((1, H, W, Chid), lambda b, t: (b, 0, 0, 0)),   # carried c
        ],
        scratch_shapes=[
            pltpu.VMEM((H + kh - 1, W, Kc), jnp.bfloat16),  # kw-replicated im2col (+ carried h)
        ],
    )

    h_seq, c_last = pl.pallas_call(
        kernel,
        grid_spec=grid_spec,
        out_shape=(
            jax.ShapeDtypeStruct((T, B, H, W, Chid), jnp.bfloat16),
            jax.ShapeDtypeStruct((B, H, W, Chid), jnp.float32),
        ),
        compiler_params=pltpu.CompilerParams(
            dimension_semantics=("parallel", "arbitrary")),
    )(x_seq, w_fused, bias)
    return h_seq, c_last


# ----------------------------------------------------------------------------
# Parameter init (deterministic, mirrors the PyTorch module's __init__)
# ----------------------------------------------------------------------------
def _orthogonal(key, rows, cols):
    """Row-orthonormal (rows, cols) matrix, like nn.init.orthogonal_ for
    the flattened conv weight (rows <= cols)."""
    a = jax.random.normal(key, (cols, rows), jnp.float32)
    q, r = jnp.linalg.qr(a)
    d = jnp.diag(r)
    q = q * jnp.where(d >= 0, 1.0, -1.0)[None, :]
    return q.T                                             # (rows, cols)


def init_convlstm_params(key, input_dim, hidden_dims, kernel_sizes):
    """Returns per layer: (w_fused (kh, kw*cp, 4*hd) bf16, bias (1, 4*hd) f32, cp)."""
    params = []
    for i, (hd, ks) in enumerate(zip(hidden_dims, kernel_sizes)):
        cur_in = input_dim if i == 0 else hidden_dims[i - 1]
        kh, kw = ks
        ctot = cur_in + hd
        cp = _round_up(ctot, _LANES)
        key, sub = jax.random.split(key)
        # PyTorch conv weight shape: (4*hd, ctot, kh, kw), orthogonal init.
        w_flat = _orthogonal(sub, 4 * hd, ctot * kh * kw)
        w_torch = w_flat.reshape(4 * hd, ctot, kh, kw)
        # -> (kh, kw, ctot, 4*hd), zero-pad channels to cp, fuse kw into K.
        w_perm = jnp.transpose(w_torch, (2, 3, 1, 0))
        w_fused = jnp.zeros((kh, kw, cp, 4 * hd), jnp.float32)
        w_fused = w_fused.at[:, :, :ctot, :].set(w_perm)
        w_fused = w_fused.reshape(kh, kw * cp, 4 * hd).astype(jnp.bfloat16)
        # Bias: zeros, forget gate (second quarter) = 1.0
        bias = jnp.zeros((4 * hd,), jnp.float32).at[hd:2 * hd].set(1.0)
        params.append((w_fused, bias.reshape(1, 4 * hd), cp))
    return params


# ----------------------------------------------------------------------------
# Full ConvLSTM forward (multi-layer, batch_first, return_all_layers=False)
# ----------------------------------------------------------------------------
def convlstm_forward(x_btchw, params, hidden_dims, kernel_sizes):
    """x_btchw: (B, T, C, H, W) float32 (PyTorch batch_first NCHW layout).
    Returns [h_last, c_last] of the final layer, each (B, hidden, H, W)."""
    # (B, T, C, H, W) -> (T, B, H, W, C), bf16 matmul inputs.
    cur = jnp.transpose(x_btchw, (1, 0, 3, 4, 2)).astype(jnp.bfloat16)
    h_seq = c_last = None
    for (w_f, b, cp), hd, ks in zip(params, hidden_dims, kernel_sizes):
        h_seq, c_last = convlstm_layer(cur, w_f, b, hd, ks, cp)
        cur = h_seq
    h_last = jnp.transpose(h_seq[-1].astype(jnp.float32), (0, 3, 1, 2))
    c_last = jnp.transpose(c_last, (0, 3, 1, 2))
    return [h_last, c_last]


if __name__ == "__main__":
    # Small, deterministic example consistent with the module's forward.
    B, T, C, H, W = 2, 8, 4, 16, 16
    hidden_dims = [32, 32]
    kernel_sizes = [(3, 3), (3, 3)]

    key = jax.random.PRNGKey(0)
    key_x, key_p = jax.random.split(key)
    x = jax.random.normal(key_x, (B, T, C, H, W), jnp.float32)

    params = init_convlstm_params(key_p, C, hidden_dims, kernel_sizes)

    h_last, c_last = convlstm_forward(x, params, hidden_dims, kernel_sizes)
    jax.block_until_ready(h_last)
    jax.block_until_ready(c_last)

    assert h_last.shape == (B, hidden_dims[-1], H, W)
    assert c_last.shape == (B, hidden_dims[-1], H, W)
    assert bool(jnp.all(jnp.isfinite(h_last))) and bool(jnp.all(jnp.isfinite(c_last)))
    print("KERNEL_OK")
</pallas_src>

<mosaic_0001>
module attributes {stable_mosaic.version = 11 : i64} {
  func.func @_convlstm_layer_kernel(%arg0: i32, %arg1: i32, %arg2: memref<1x1x16x16x4xbf16, #tpu.memory_space<vmem>>, %arg3: memref<3x384x128xbf16, #tpu.memory_space<vmem>>, %arg4: memref<1x128xf32, #tpu.memory_space<vmem>>, %arg5: memref<1x1x16x16x32xbf16, #tpu.memory_space<vmem>>, %arg6: memref<1x16x16x32xf32, #tpu.memory_space<vmem>>, %arg7: memref<18x16x384xbf16, #tpu.memory_space<vmem>>) attributes {dimension_semantics = [#tpu.dimension_semantics<parallel>, #tpu.dimension_semantics<arbitrary>], iteration_bounds = array<i64: 2, 8>, scalar_prefetch = 0 : i64, scratch_operands = 1 : i64, tpu.core_type = #tpu.core_type<tc>, window_params = [{transform_indices = @transform_0, window_bounds = array<i64: 1, 1, 16, 16, 4>}, {pipeline_mode = #tpu.pipeline_mode<synchronous>, transform_indices = @transform_1, window_bounds = array<i64: 3, 384, 128>}, {pipeline_mode = #tpu.pipeline_mode<synchronous>, transform_indices = @transform_2, window_bounds = array<i64: 1, 128>}, {transform_indices = @transform_3, window_bounds = array<i64: 1, 1, 16, 16, 32>}, {transform_indices = @transform_4, window_bounds = array<i64: 1, 16, 16, 32>}]} {
    %c0_i32 = arith.constant 0 : i32
    %0 = arith.cmpi eq, %arg1, %c0_i32 : i32
    %1 = arith.extui %0 : i1 to i32
    %c0_i32_0 = arith.constant 0 : i32
    %2 = arith.cmpi ne, %1, %c0_i32_0 : i32
    scf.if %2 {
      %cst_47 = arith.constant 0.000000e+00 : bf16
      %64 = vector.broadcast %cst_47 : bf16 to vector<18x16x384xbf16>
      %c0_48 = arith.constant 0 : index
      %c0_49 = arith.constant 0 : index
      %c0_50 = arith.constant 0 : index
      %65 = vector.load %arg7[%c0_48, %c0_49, %c0_50] : memref<18x16x384xbf16, #tpu.memory_space<vmem>>, vector<18x16x384xbf16>
      tpu.vector_store %arg7[%c0_48, %c0_49, %c0_50], %64 {strides = array<i32>} : memref<18x16x384xbf16, #tpu.memory_space<vmem>>, vector<18x16x384xbf16>,
      %cst_51 = arith.constant 0.000000e+00 : f32
      %66 = vector.broadcast %cst_51 : f32 to vector<1x16x16x32xf32>
      %c0_52 = arith.constant 0 : index
      %c0_53 = arith.constant 0 : index
      %c0_54 = arith.constant 0 : index
      %c0_55 = arith.constant 0 : index
      %67 = vector.load %arg6[%c0_52, %c0_53, %c0_54, %c0_55] : memref<1x16x16x32xf32, #tpu.memory_space<vmem>>, vector<1x16x16x32xf32>
      tpu.vector_store %arg6[%c0_52, %c0_53, %c0_54, %c0_55], %66 {strides = array<i32>} : memref<1x16x16x32xf32, #tpu.memory_space<vmem>>, vector<1x16x16x32xf32>,
    } else {
    }
    %c0 = arith.constant 0 : index
    %c0_1 = arith.constant 0 : index
    %c0_2 = arith.constant 0 : index
    %c0_3 = arith.constant 0 : index
    %c0_4 = arith.constant 0 : index
    %3 = vector.load %arg2[%c0, %c0_1, %c0_2, %c0_3, %c0_4] : memref<1x1x16x16x4xbf16, #tpu.memory_space<vmem>>, vector<1x1x16x16x4xbf16>
    %4 = vector.shape_cast %3 : vector<1x1x16x16x4xbf16> to vector<16x16x4xbf16>
    %5 = vector.extract_strided_slice %4 {offsets = [0, 0, 0], sizes = [16, 15, 4], strides = [1, 1, 1]} : vector<16x16x4xbf16> to vector<16x15x4xbf16>
    %c1 = arith.constant 1 : index
    %c1_5 = arith.constant 1 : index
    %c0_6 = arith.constant 0 : index
    %6 = vector.load %arg7[%c1, %c1_5, %c0_6] : memref<18x16x384xbf16, #tpu.memory_space<vmem>>, vector<16x15x4xbf16>
    tpu.vector_store %arg7[%c1, %c1_5, %c0_6], %5 {strides = array<i32>} : memref<18x16x384xbf16, #tpu.memory_space<vmem>>, vector<16x15x4xbf16>,
    %c1_7 = arith.constant 1 : index
    %c0_8 = arith.constant 0 : index
    %c128 = arith.constant 128 : index
    %7 = vector.load %arg7[%c1_7, %c0_8, %c128] : memref<18x16x384xbf16, #tpu.memory_space<vmem>>, vector<16x16x4xbf16>
    tpu.vector_store %arg7[%c1_7, %c0_8, %c128], %4 {strides = array<i32>} : memref<18x16x384xbf16, #tpu.memory_space<vmem>>, vector<16x16x4xbf16>,
    %8 = vector.extract_strided_slice %4 {offsets = [0, 1, 0], sizes = [16, 15, 4], strides = [1, 1, 1]} : vector<16x16x4xbf16> to vector<16x15x4xbf16>
    %c1_9 = arith.constant 1 : index
    %c0_10 = arith.constant 0 : index
    %c256 = arith.constant 256 : index
    %9 = vector.load %arg7[%c1_9, %c0_10, %c256] : memref<18x16x384xbf16, #tpu.memory_space<vmem>>, vector<16x15x4xbf16>
    tpu.vector_store %arg7[%c1_9, %c0_10, %c256], %8 {strides = array<i32>} : memref<18x16x384xbf16, #tpu.memory_space<vmem>>, vector<16x15x4xbf16>,
    %c0_11 = arith.constant 0 : index
    %c0_12 = arith.constant 0 : index
    %c0_13 = arith.constant 0 : index
    %10 = vector.load %arg7[%c0_11, %c0_12, %c0_13] : memref<18x16x384xbf16, #tpu.memory_space<vmem>>, vector<16x16x384xbf16>
    %11 = vector.shape_cast %10 : vector<16x16x384xbf16> to vector<256x384xbf16>
    %c0_14 = arith.constant 0 : index
    %c0_15 = arith.constant 0 : index
    %c0_16 = arith.constant 0 : index
    %12 = vector.load %arg3[%c0_14, %c0_15, %c0_16] : memref<3x384x128xbf16, #tpu.memory_space<vmem>>, vector<1x384x128xbf16>
    %13 = vector.shape_cast %12 : vector<1x384x128xbf16> to vector<384x128xbf16>
    %cst = arith.constant dense<0.000000e+00> : vector<256x128xf32>
    %14 = tpu.matmul %11, %13, %cst {dimension_numbers = #tpu.dot_dimension_numbers<[1], [0], [0], [1], [0, 0, 1, 1], [], []>} : vector<256x384xbf16>, vector<384x128xbf16>, vector<256x128xf32> -> vector<256x128xf32>
    %c1_17 = arith.constant 1 : index
    %c0_18 = arith.constant 0 : index
    %c0_19 = arith.constant 0 : index
    %15 = vector.load %arg7[%c1_17, %c0_18, %c0_19] : memref<18x16x384xbf16, #tpu.memory_space<vmem>>, vector<16x16x384xbf16>
    %16 = vector.shape_cast %15 : vector<16x16x384xbf16> to vector<256x384xbf16>
    %c1_20 = arith.constant 1 : index
    %c0_21 = arith.constant 0 : index
    %c0_22 = arith.constant 0 : index
    %17 = vector.load %arg3[%c1_20, %c0_21, %c0_22] : memref<3x384x128xbf16, #tpu.memory_space<vmem>>, vector<1x384x128xbf16>
    %18 = vector.shape_cast %17 : vector<1x384x128xbf16> to vector<384x128xbf16>
    %cst_23 = arith.constant dense<0.000000e+00> : vector<256x128xf32>
    %19 = tpu.matmul %16, %18, %cst_23 {dimension_numbers = #tpu.dot_dimension_numbers<[1], [0], [0], [1], [0, 0, 1, 1], [], []>} : vector<256x384xbf16>, vector<384x128xbf16>, vector<256x128xf32> -> vector<256x128xf32>
    %20 = arith.addf %14, %19 : vector<256x128xf32>
    %c2 = arith.constant 2 : index
    %c0_24 = arith.constant 0 : index
    %c0_25 = arith.constant 0 : index
    %21 = vector.load %arg7[%c2, %c0_24, %c0_25] : memref<18x16x384xbf16, #tpu.memory_space<vmem>>, vector<16x16x384xbf16>
    %22 = vector.shape_cast %21 : vector<16x16x384xbf16> to vector<256x384xbf16>
    %c2_26 = arith.constant 2 : index
    %c0_27 = arith.constant 0 : index
    %c0_28 = arith.constant 0 : index
    %23 = vector.load %arg3[%c2_26, %c0_27, %c0_28] : memref<3x384x128xbf16, #tpu.memory_space<vmem>>, vector<1x384x128xbf16>
    %24 = vector.shape_cast %23 : vector<1x384x128xbf16> to vector<384x128xbf16>
    %cst_29 = arith.constant dense<0.000000e+00> : vector<256x128xf32>
    %25 = tpu.matmul %22, %24, %cst_29 {dimension_numbers = #tpu.dot_dimension_numbers<[1], [0], [0], [1], [0, 0, 1, 1], [], []>} : vector<256x384xbf16>, vector<384x128xbf16>, vector<256x128xf32> -> vector<256x128xf32>
    %26 = arith.addf %20, %25 : vector<256x128xf32>
    %c0_30 = arith.constant 0 : index
    %c0_31 = arith.constant 0 : index
    %27 = vector.load %arg4[%c0_30, %c0_31] : memref<1x128xf32, #tpu.memory_space<vmem>>, vector<1x128xf32>
    %28 = vector.broadcast %27 : vector<1x128xf32> to vector<256x128xf32>
    %29 = arith.addf %26, %28 : vector<256x128xf32>
    %30 = tpu.iota {dimensions = array<i32: 1>} : vector<256x128xi32>
    %c96_i32 = arith.constant 96 : i32
    %31 = vector.broadcast %c96_i32 : i32 to vector<256x128xi32>
    %32 = arith.cmpi slt, %30, %31 : vector<256x128xi32>
    %33 = arith.negf %29 : vector<256x128xf32>
    %34 = math.exp %33 : vector<256x128xf32>
    %cst_32 = arith.constant 1.000000e+00 : f32
    %35 = vector.broadcast %cst_32 : f32 to vector<256x128xf32>
    %36 = arith.addf %35, %34 : vector<256x128xf32>
    %37 = arith.divf %35, %36 : vector<256x128xf32>
    %38 = math.tanh %29 : vector<256x128xf32>
    %39 = arith.select %32, %37, %38 : vector<256x128xi1>, vector<256x128xf32>
    %40 = vector.extract_strided_slice %39 {offsets = [0, 0], sizes = [256, 32], strides = [1, 1]} : vector<256x128xf32> to vector<256x32xf32>
    %41 = vector.extract_strided_slice %39 {offsets = [0, 32], sizes = [256, 32], strides = [1, 1]} : vector<256x128xf32> to vector<256x32xf32>
    %42 = vector.extract_strided_slice %39 {offsets = [0, 64], sizes = [256, 32], strides = [1, 1]} : vector<256x128xf32> to vector<256x32xf32>
    %43 = vector.extract_strided_slice %39 {offsets = [0, 96], sizes = [256, 32], strides = [1, 1]} : vector<256x128xf32> to vector<256x32xf32>
    %c0_33 = arith.constant 0 : index
    %c0_34 = arith.constant 0 : index
    %c0_35 = arith.constant 0 : index
    %c0_36 = arith.constant 0 : index
    %44 = vector.load %arg6[%c0_33, %c0_34, %c0_35, %c0_36] : memref<1x16x16x32xf32, #tpu.memory_space<vmem>>, vector<1x16x16x32xf32>
    %45 = vector.shape_cast %44 : vector<1x16x16x32xf32> to vector<16x16x32xf32>
    %46 = vector.shape_cast %45 : vector<16x16x32xf32> to vector<256x32xf32>
    %47 = arith.mulf %41, %46 : vector<256x32xf32>
    %48 = arith.mulf %40, %43 : vector<256x32xf32>
    %49 = arith.addf %47, %48 : vector<256x32xf32>
    %50 = math.tanh %49 : vector<256x32xf32>
    %51 = arith.mulf %42, %50 : vector<256x32xf32>
    %52 = vector.shape_cast %49 : vector<256x32xf32> to vector<16x16x32xf32>
    %c0_37 = arith.constant 0 : index
    %c0_38 = arith.constant 0 : index
    %c0_39 = arith.constant 0 : index
    %c0_40 = arith.constant 0 : index
    %53 = vector.load %arg6[%c0_37, %c0_38, %c0_39, %c0_40] : memref<1x16x16x32xf32, #tpu.memory_space<vmem>>, vector<1x16x16x32xf32>
    %54 = vector.shape_cast %53 : vector<1x16x16x32xf32> to vector<16x16x32xf32>
    %55 = vector.shape_cast %52 : vector<16x16x32xf32> to vector<1x16x16x32xf32>
    tpu.vector_store %arg6[%c0_37, %c0_38, %c0_39, %c0_40], %55 {strides = array<i32>} : memref<1x16x16x32xf32, #tpu.memory_space<vmem>>, vector<1x16x16x32xf32>,
    %56 = vector.shape_cast %51 : vector<256x32xf32> to vector<16x16x32xf32>
    %57 = arith.truncf %56 : vector<16x16x32xf32> to vector<16x16x32xbf16>
    %c0_41 = arith.constant 0 : index
    %c0_42 = arith.constant 0 : index
    %c0_43 = arith.constant 0 : index
    %c0_44 = arith.constant 0 : index
    %c0_45 = arith.constant 0 : index
    %58 = vector.load %arg5[%c0_41, %c0_42, %c0_43, %c0_44, %c0_45] : memref<1x1x16x16x32xbf16, #tpu.memory_space<vmem>>, vector<1x1x16x16x32xbf16>
    %59 = vector.shape_cast %58 : vector<1x1x16x16x32xbf16> to vector<16x16x32xbf16>
    %60 = vector.shape_cast %57 : vector<16x16x32xbf16> to vector<1x1x16x16x32xbf16>
    tpu.vector_store %arg5[%c0_41, %c0_42, %c0_43, %c0_44, %c0_45], %60 {strides = array<i32>} : memref<1x1x16x16x32xbf16, #tpu.memory_space<vmem>>, vector<1x1x16x16x32xbf16>,
    %c7_i32 = arith.constant 7 : i32
    %61 = arith.cmpi slt, %arg1, %c7_i32 : i32
    %62 = arith.extui %61 : i1 to i32
    %c0_i32_46 = arith.constant 0 : i32
    %63 = arith.cmpi ne, %62, %c0_i32_46 : i32
    scf.if %63 {
      %64 = arith.truncf %56 : vector<16x16x32xf32> to vector<16x16x32xbf16>
      %65 = vector.extract_strided_slice %64 {offsets = [0, 0, 0], sizes = [16, 15, 32], strides = [1, 1, 1]} : vector<16x16x32xbf16> to vector<16x15x32xbf16>
      %c1_47 = arith.constant 1 : index
      %c1_48 = arith.constant 1 : index
      %c4 = arith.constant 4 : index
      %66 = vector.load %arg7[%c1_47, %c1_48, %c4] : memref<18x16x384xbf16, #tpu.memory_space<vmem>>, vector<16x15x32xbf16>
      tpu.vector_store %arg7[%c1_47, %c1_48, %c4], %65 {strides = array<i32>} : memref<18x16x384xbf16, #tpu.memory_space<vmem>>, vector<16x15x32xbf16>,
      %c1_49 = arith.constant 1 : index
      %c0_50 = arith.constant 0 : index
      %c132 = arith.constant 132 : index
      %67 = vector.load %arg7[%c1_49, %c0_50, %c132] : memref<18x16x384xbf16, #tpu.memory_space<vmem>>, vector<16x16x32xbf16>
      tpu.vector_store %arg7[%c1_49, %c0_50, %c132], %64 {strides = array<i32>} : memref<18x16x384xbf16, #tpu.memory_space<vmem>>, vector<16x16x32xbf16>,
      %68 = vector.extract_strided_slice %64 {offsets = [0, 1, 0], sizes = [16, 15, 32], strides = [1, 1, 1]} : vector<16x16x32xbf16> to vector<16x15x32xbf16>
      %c1_51 = arith.constant 1 : index
      %c0_52 = arith.constant 0 : index
      %c260 = arith.constant 260 : index
      %69 = vector.load %arg7[%c1_51, %c0_52, %c260] : memref<18x16x384xbf16, #tpu.memory_space<vmem>>, vector<16x15x32xbf16>
      tpu.vector_store %arg7[%c1_51, %c0_52, %c260], %68 {strides = array<i32>} : memref<18x16x384xbf16, #tpu.memory_space<vmem>>, vector<16x15x32xbf16>,
    } else {
    }
    return
  }
  func.func @transform_0(%arg0: i32, %arg1: i32) -> (i32, i32, i32, i32, i32) {
    %c0_i32 = arith.constant 0 : i32
    %c0_i32_0 = arith.constant 0 : i32
    %c0_i32_1 = arith.constant 0 : i32
    %c0_i32_2 = arith.constant 0 : i32
    return %arg1, %arg0, %c0_i32, %c0_i32_0, %c0_i32_1 : i32, i32, i32, i32, i32
  }
  func.func @transform_1(%arg0: i32, %arg1: i32) -> (i32, i32, i32) {
    %c0_i32 = arith.constant 0 : i32
    %c0_i32_0 = arith.constant 0 : i32
    %c0_i32_1 = arith.constant 0 : i32
    %c0_i32_2 = arith.constant 0 : i32
    return %c0_i32, %c0_i32_0, %c0_i32_1 : i32, i32, i32
  }
  func.func @transform_2(%arg0: i32, %arg1: i32) -> (i32, i32) {
    %c0_i32 = arith.constant 0 : i32
    %c0_i32_0 = arith.constant 0 : i32
    %c0_i32_1 = arith.constant 0 : i32
    return %c0_i32, %c0_i32_0 : i32, i32
  }
  func.func @transform_3(%arg0: i32, %arg1: i32) -> (i32, i32, i32, i32, i32) {
    %c0_i32 = arith.constant 0 : i32
    %c0_i32_0 = arith.constant 0 : i32
    %c0_i32_1 = arith.constant 0 : i32
    %c0_i32_2 = arith.constant 0 : i32
    return %arg1, %arg0, %c0_i32, %c0_i32_0, %c0_i32_1 : i32, i32, i32, i32, i32
  }
  func.func @transform_4(%arg0: i32, %arg1: i32) -> (i32, i32, i32, i32) {
    %c0_i32 = arith.constant 0 : i32
    %c0_i32_0 = arith.constant 0 : i32
    %c0_i32_1 = arith.constant 0 : i32
    %c0_i32_2 = arith.constant 0 : i32
    return %arg0, %c0_i32, %c0_i32_0, %c0_i32_1 : i32, i32, i32, i32
  }
}

</mosaic_0001>

<llo_original>
// kernel: tpu_custom_call.1
$region0: #{tpu_custom_call.1}
  #allocation0 [shape = 'u32[]', space=smem, size = 0x4, offset = 0x4, fixed_abs, tag = 'smem constant byte address 0x4 - core index']
  #allocation1 [shape = 'u32[72,128]{1,0:T(1,128)}', space=vmem, size = 0x9000, scoped, tag = 'internal scratch']
  #allocation2 [shape = 'bf16[18,16,384]{2,1,0:T(8,128)(2,1)}', space=vmem, size = 0x36000, scoped, tag = 'scratch operand']
  %s0 = inlined_call_operand.vmem [shape: bf16[8,2,16,16,4], index: 0, kind: input, shape index: {}]
  %s1 = inlined_call_operand.vmem [shape: bf16[3,384,128], index: 1, kind: input, shape index: {}]
  %s2 = inlined_call_operand.vmem [shape: f32[1,128], index: 2, kind: input, shape index: {}]
  %s3 = inlined_call_operand.hbm [shape: bf16[8,2,16,16,32], index: 3, kind: output, shape index: {0}]
  %s4 = inlined_call_operand.hbm [shape: f32[2,16,16,32], index: 4, kind: output, shape index: {1}]
  %5 = xla_tuple %s3, %s4
  %s6 = sld [smem:[#allocation0]]
  $region61: #{tpu_custom_call.1} parent=0
    _
  %s8 = ssub.s32 1, %s6
  %s9 = scalar_select 0, %s8, %s6
  $region1: #{tpu_custom_call.1} parent=0
    #allocation3 [shape = 'u8[131072]{0}', space=vmem, size = 0x20000, scoped, tag = 'output window, operand 0']
    #allocation4 [shape = 's32[2]{0}', space=sflag, size = 0x8, scoped, tag = 'scoped memory for tpu_custom_call.1']
    #allocation5 [shape = 'u8[262144]{0}', space=vmem, size = 0x40000, scoped, tag = 'output window, operand 1']
    #allocation6 [shape = 's32[2]{0}', space=sflag, size = 0x8, scoped, tag = 'scoped memory for tpu_custom_call.1']
    %10 = vsyncpa [#allocation4], 0
    %s11 = scalar_lea.sflag [#allocation4], 1
    %12 = vsyncpa %s11, 0
    %13 = vsyncpa [#allocation6], 0
    %s14 = scalar_lea.sflag [#allocation6], 1
    %15 = vsyncpa %s14, 0
    loop: start=0, step=1, limit=18
    $region2: #{tpu_custom_call.1} parent=1 // loop_pre_header
      _
    $region3: #{tpu_custom_call.1} parent=1 // loop_header
      %s17 = sphi 0, %s21
      %p18 = scmp.ge.s32.totalorder %s17, 18
      %s24 = sphi 0, %s36
      %s25 = sphi 0, %s32
      %s26 = sphi 0, %s24
      %s27 = sphi 0, %s25
      %s28 = sphi 0, %s26
      %s29 = sphi 0, %s27
      %s41 = sphi 0, %s43
      %s44 = sphi 0, %s41
      %s45 = sphi 0, %s44
      %s61 = sphi 0, %s45
      %s65 = sphi 0, %s65
      %s67 = sphi 0, %s65
      %s68 = sphi 0, %s67
      %s82 = sphi 0, %s68
      %s86 = sphi 0, %s86
      %s88 = sphi 0, %s86
      %s89 = sphi 0, %s88
      %s103 = sphi 0, %s89
      %s111 = sphi 0, %s113
      %s114 = sphi 0, %s111
      %s115 = sphi 0, %s114
      %s131 = sphi 0, %s115
      %s137 = sphi 0, %s139
      %s140 = sphi 0, %s137
      %s141 = sphi 0, %s140
      %s157 = sphi 0, %s141
    $region4: #{tpu_custom_call.1} parent=1 // loop_header_branch
      %20 = sbr.rel (%p18) target = $region8
    $region5: #{tpu_custom_call.1} parent=1 // loop_body
      %s22 = ssub.s32 %s17, 1
      %s23 = ssub.s32 %s17, 2
      %s30 = sadd.s32 1, %s25
      %p31 = scmp.ge.s32.totalorder %s30, 8
      %s32 = scalar_select %p31, 0, %s30
      %s33 = sadd.s32 1, %s24
      %s34 = scalar_select %p31, %s33, %s24
      %p35 = scmp.ge.s32.totalorder %s34, 2
      %s36 = scalar_select %p35, 0, %s34
      %s37 = ssub.s32 %s25, %s32
      %s38 = ssub.s32 %s24, %s36
      %s39 = sor.u32 %s37, %s38
      %p40 = scmp.eq.s32.totalorder %s39, 0
      %s42 = sadd.s32 %s41, 1
      %s43 = scalar_select %p40, %s41, %s42
      %p46 = pneg %p40
      %p47 = scmp.eq.s32.totalorder %s17, 15
      %p48 = por %p46, %p47
      %p49 = scmp.ne.s32.totalorder %s41, %s44
      %p50 = scmp.eq.s32.totalorder %s17, 0
      %p51 = por %p49, %p50
      %p52 = scmp.ne.s32.totalorder %s41, %s44
      %p53 = scmp.eq.s32.totalorder %s22, 15
      %p54 = por %p52, %p53
      %p55 = scmp.ne.s32.totalorder %s44, %s45
      %p56 = scmp.eq.s32.totalorder %s22, 0
      %p57 = por %p55, %p56
      %p58 = scmp.ne.s32.totalorder %s44, %s45
      %p59 = scmp.eq.s32.totalorder %s23, 15
      %p60 = por %p58, %p59
      %p62 = scmp.ne.s32.totalorder %s45, %s61
      %p63 = scmp.eq.s32.totalorder %s23, 0
      %p64 = por %p62, %p63
      %s66 = sadd.s32 %s65, 1
      %p69 = scmp.eq.s32.totalorder %s17, 15
      %p70 = scmp.ne.s32.totalorder %s65, %s67
      %p71 = scmp.eq.s32.totalorder %s17, 0
      %p72 = por %p70, %p71
      %p73 = scmp.ne.s32.totalorder %s65, %s67
      %p74 = scmp.eq.s32.totalorder %s22, 15
      %p75 = por %p73, %p74
      %p76 = scmp.ne.s32.totalorder %s67, %s68
      %p77 = scmp.eq.s32.totalorder %s22, 0
      %p78 = por %p76, %p77
      %p79 = scmp.ne.s32.totalorder %s67, %s68
      %p80 = scmp.eq.s32.totalorder %s23, 15
      %p81 = por %p79, %p80
      %p83 = scmp.ne.s32.totalorder %s68, %s82
      %p84 = scmp.eq.s32.totalorder %s23, 0
      %p85 = por %p83, %p84
      %s87 = sadd.s32 %s86, 1
      %p90 = scmp.eq.s32.totalorder %s17, 15
      %p91 = scmp.ne.s32.totalorder %s86, %s88
      %p92 = scmp.eq.s32.totalorder %s17, 0
      %p93 = por %p91, %p92
      %p94 = scmp.ne.s32.totalorder %s86, %s88
      %p95 = scmp.eq.s32.totalorder %s22, 15
      %p96 = por %p94, %p95
      %p97 = scmp.ne.s32.totalorder %s88, %s89
      %p98 = scmp.eq.s32.totalorder %s22, 0
      %p99 = por %p97, %p98
      %p100 = scmp.ne.s32.totalorder %s88, %s89
      %p101 = scmp.eq.s32.totalorder %s23, 15
      %p102 = por %p100, %p101
      %p104 = scmp.ne.s32.totalorder %s89, %s103
      %p105 = scmp.eq.s32.totalorder %s23, 0
      %p106 = por %p104, %p105
      %s107 = ssub.s32 %s25, %s32
      %s108 = ssub.s32 %s24, %s36
      %s109 = sor.u32 %s107, %s108
      %p110 = scmp.eq.s32.totalorder %s109, 0
      %s112 = sadd.s32 %s111, 1
      %s113 = scalar_select %p110, %s111, %s112
      %p116 = pneg %p110
      %p117 = scmp.eq.s32.totalorder %s17, 15
      %p118 = por %p116, %p117
      %p119 = scmp.ne.s32.totalorder %s111, %s114
      %p120 = scmp.eq.s32.totalorder %s17, 0
      %p121 = por %p119, %p120
      %p122 = scmp.ne.s32.totalorder %s111, %s114
      %p123 = scmp.eq.s32.totalorder %s22, 15
      %p124 = por %p122, %p123
      %p125 = scmp.ne.s32.totalorder %s114, %s115
      %p126 = scmp.eq.s32.totalorder %s22, 0
      %p127 = por %p125, %p126
      %p128 = scmp.ne.s32.totalorder %s114, %s115
      %p129 = scmp.eq.s32.totalorder %s23, 15
      %p130 = por %p128, %p129
      %p132 = scmp.ne.s32.totalorder %s115, %s131
      %p133 = scmp.eq.s32.totalorder %s23, 0
      %p134 = por %p132, %p133
      %s135 = ssub.s32 %s24, %s36
      %p136 = scmp.eq.s32.totalorder %s135, 0
      %s138 = sadd.s32 %s137, 1
      %s139 = scalar_select %p136, %s137, %s138
      %p142 = pneg %p136
      %p143 = scmp.eq.s32.totalorder %s17, 15
      %p144 = por %p142, %p143
      %p145 = scmp.ne.s32.totalorder %s137, %s140
      %p146 = scmp.eq.s32.totalorder %s17, 0
      %p147 = por %p145, %p146
      %p148 = scmp.ne.s32.totalorder %s137, %s140
      %p149 = scmp.eq.s32.totalorder %s22, 15
      %p150 = por %p148, %p149
      %p151 = scmp.ne.s32.totalorder %s140, %s141
      %p152 = scmp.eq.s32.totalorder %s22, 0
      %p153 = por %p151, %p152
      %p154 = scmp.ne.s32.totalorder %s140, %s141
      %p155 = scmp.eq.s32.totalorder %s23, 15
      %p156 = por %p154, %p155
      %p158 = scmp.ne.s32.totalorder %s141, %s157
      %p159 = scmp.eq.s32.totalorder %s23, 0
      %p160 = por %p158, %p159
      %p161 = scmp.le.s32.totalorder 1, %s17
      %p162 = scmp.lt.s32.totalorder %s17, 17
      %p163 = pnand %p161, %p162
      %p164 = pneg %p163
      // Predicated region
      $region9: #{tpu_custom_call.1} parent=5 // pred_check
        _
      $region10: #{tpu_custom_call.1} parent=5 // pred_check_branch
        %166 = sbr.rel (%p163) target = $region12
      $region11: #{tpu_custom_call.1} parent=5 // pred_region
        %s167 = ssub.s32 %s17, 1
        // Predicated region
        $region13: #{tpu_custom_call.1} parent=11 // pred_check
          %p168 = pneg %p78
        $region14: #{tpu_custom_call.1} parent=11 // pred_check_branch
          %170 = sbr.rel (%p168) target = $region16
        $region15: #{tpu_custom_call.1} parent=11 // pred_region
          _
        $region16: #{tpu_custom_call.1} parent=11 // pred_fallthru
          _
        // Predicated region
        $region17: #{tpu_custom_call.1} parent=11 // pred_check
          %p171 = pneg %p99
        $region18: #{tpu_custom_call.1} parent=11 // pred_check_branch
          %173 = sbr.rel (%p171) target = $region20
        $region19: #{tpu_custom_call.1} parent=11 // pred_region
          _
        $region20: #{tpu_custom_call.1} parent=11 // pred_fallthru
          _
      $region12: #{tpu_custom_call.1} parent=5 // pred_fallthru
        _
      %p174 = scmp.lt.s32.totalorder %s17, 16
      // Predicated region
      $region21: #{tpu_custom_call.1} parent=5 // pred_check
        %p175 = pneg %p174
      $region22: #{tpu_custom_call.1} parent=5 // pred_check_branch
        %177 = sbr.rel (%p175) target = $region24
      $region23: #{tpu_custom_call.1} parent=5 // pred_region
        // Predicated region
        $region25: #{tpu_custom_call.1} parent=23 // pred_check
          %p178 = pneg %p51
        $region26: #{tpu_custom_call.1} parent=23 // pred_check_branch
          %180 = sbr.rel (%p178) target = $region28
        $region27: #{tpu_custom_call.1} parent=23 // pred_region
          %p181 = scmp.lt.s32.totalorder %s25, 7
          %s182 = scalar_select %p181, %s25, 7
          %p183 = scmp.lt.s32.totalorder %s24, 1
          %s184 = scalar_select %p183, %s24, 1
          %s185 = smul.addr %s184, 32
          %s186 = smul.addr %s182, 64
          %s187 = sadd.s32 %s185, %s186
          %s188 = smul.addr %s187, 4
          %s189 = scalar_lea.vmem %s0, %s188
        $region28: #{tpu_custom_call.1} parent=23 // pred_fallthru
          _
      $region24: #{tpu_custom_call.1} parent=5 // pred_fallthru
        _
      %p190 = scmp.le.s32.totalorder 1, %s17
      %p191 = scmp.lt.s32.totalorder %s17, 17
      %p192 = pnand %p190, %p191
      %p193 = pneg %p192
      // Predicated region
      $region29: #{tpu_custom_call.1} parent=5 // pred_check
        _
      $region30: #{tpu_custom_call.1} parent=5 // pred_check_branch
        %195 = sbr.rel (%p192) target = $region32
      $region31: #{tpu_custom_call.1} parent=5 // pred_region
        %s196 = ssub.s32 %s17, 1
        %p197 = scmp.lt.s32.totalorder %s27, 7
        %s198 = scalar_select %p197, %s27, 7
        %p199 = scmp.lt.s32.totalorder %s26, 1
        %s200 = scalar_select %p199, %s26, 1
        %s201 = smul.addr %s200, 32
        %s202 = smul.addr %s198, 64
        %s203 = sadd.s32 %s201, %s202
        %s204 = smul.addr %s203, 4
        %s205 = scalar_lea.vmem %s0, %s204
        %p206 = pneg %p57
        %p207 = pneg %p54
        %p208 = pneg %p78
        %p209 = pneg %p75
        %p210 = pneg %p99
        %p211 = pneg %p96
        %p212 = pneg %p127
        %p213 = pneg %p124
        %s214 = sand.u32 %s114, 1
        %s215 = scalar_lea.sflag [#allocation4], %s214
        %s216 = sand.u32 %s114, 1
        %s217 = smul.addr %s216, 128
        %s218 = scalar_lea.vmem [#allocation3], %s217
        %p219 = pneg %p153
        %p220 = pneg %p150
        %s221 = sand.u32 %s140, 1
        %s222 = scalar_lea.sflag [#allocation6], %s221
        %s223 = sand.u32 %s140, 1
        %s224 = smul.addr %s223, 256
        %s225 = scalar_lea.vmem [#allocation5], %s224
        %p226 = scmp.lt.s32.totalorder %s27, 7
        %s227 = scalar_select %p226, %s27, 7
        %p228 = scmp.lt.s32.totalorder %s26, 1
        %s229 = scalar_select %p228, %s26, 1
        %s230 = smul.addr %s229, 32
        %s231 = smul.addr %s227, 64
        %s232 = sadd.s32 %s230, %s231
        %s233 = smul.addr %s232, 4
        %s234 = scalar_lea.vmem %s0, %s233
        %p236 = scmp.eq.s32.totalorder %s27, 0
        // Predicated region
        $region33: #{tpu_custom_call.1} parent=31 // pred_check
          %p237 = pneg %p236
        $region34: #{tpu_custom_call.1} parent=31 // pred_check_branch
          %239 = sbr.rel (%p237) target = $region36
        $region35: #{tpu_custom_call.1} parent=31 // pred_region
          %240 = vst [vmem:[#allocation2] sm:$0xff] 0
          %241 = vst [vmem:[#allocation2 + $0x8] sm:$0xf] 0
          %242 = vst [vmem:[#allocation2 + $0xc] sm:$0xff] 0
          %243 = vst [vmem:[#allocation2 + $0x14] sm:$0xf] 0
          %244 = vst [vmem:[#allocation2 + $0x18] sm:$0xff] 0
          %245 = vst [vmem:[#allocation2 + $0x20] sm:$0xf] 0
          %246 = vst [vmem:[#allocation2 + $0x24] sm:$0xff] 0
          %247 = vst [vmem:[#allocation2 + $0x2c] sm:$0xf] 0
          %248 = vst [vmem:[#allocation2 + $0x30] sm:$0xff] 0
          %249 = vst [vmem:[#allocation2 + $0x38] sm:$0xf] 0
          %250 = vst [vmem:[#allocation2 + $0x3c] sm:$0xff] 0
          %251 = vst [vmem:[#allocation2 + $0x44] sm:$0xf] 0
          %252 = vst [vmem:[#allocation2 + $0x48] sm:$0xff] 0
          %253 = vst [vmem:[#allocation2 + $0x50] sm:$0xf] 0
          %254 = vst [vmem:[#allocation2 + $0x54] sm:$0xff] 0
          %255 = vst [vmem:[#allocation2 + $0x5c] sm:$0xf] 0
          %256 = vst [vmem:[#allocation2 + $0x60] sm:$0xff] 0
          %257 = vst [vmem:[#allocation2 + $0x68] sm:$0xf] 0
          %258 = vst [vmem:[#allocation2 + $0x6c] sm:$0xff] 0
          %259 = vst [vmem:[#allocation2 + $0x74] sm:$0xf] 0
          %260 = vst [vmem:[#allocation2 + $0x78] sm:$0xff] 0
          %261 = vst [vmem:[#allocation2 + $0x80] sm:$0xf] 0
          %262 = vst [vmem:[#allocation2 + $0x84] sm:$0xff] 0
          %263 = vst [vmem:[#allocation2 + $0x8c] sm:$0xf] 0
          %264 = vst [vmem:[#allocation2 + $0x90] sm:$0xff] 0
          %265 = vst [vmem:[#allocation2 + $0x98] sm:$0xf] 0
          %266 = vst [vmem:[#allocation2 + $0x9c] sm:$0xff] 0
          %267 = vst [vmem:[#allocation2 + $0xa4] sm:$0xf] 0
          %268 = vst [vmem:[#allocation2 + $0xa8] sm:$0xff] 0
          %269 = vst [vmem:[#allocation2 + $0xb0] sm:$0xf] 0
          %270 = vst [vmem:[#allocation2 + $0xb4] sm:$0xff] 0
          %271 = vst [vmem:[#allocation2 + $0xbc] sm:$0xf] 0
          %272 = vst [vmem:[#allocation2 + $0xc0] sm:$0xff] 0
          %273 = vst [vmem:[#allocation2 + $0xc8] sm:$0xf] 0
          %274 = vst [vmem:[#allocation2 + $0xcc] sm:$0xff] 0
          %275 = vst [vmem:[#allocation2 + $0xd4] sm:$0xf] 0
          %276 = vst [vmem:[#allocation2 + $0xd8] sm:$0xff] 0
          %277 = vst [vmem:[#allocation2 + $0xe0] sm:$0xf] 0
          %278 = vst [vmem:[#allocation2 + $0xe4] sm:$0xff] 0
          %279 = vst [vmem:[#allocation2 + $0xec] sm:$0xf] 0
          %280 = vst [vmem:[#allocation2 + $0xf0] sm:$0xff] 0
          %281 = vst [vmem:[#allocation2 + $0xf8] sm:$0xf] 0
          %282 = vst [vmem:[#allocation2 + $0xfc] sm:$0xff] 0
          %283 = vst [vmem:[#allocation2 + $0x104] sm:$0xf] 0
          %284 = vst [vmem:[#allocation2 + $0x108] sm:$0xff] 0
          %285 = vst [vmem:[#allocation2 + $0x110] sm:$0xf] 0
          %286 = vst [vmem:[#allocation2 + $0x114] sm:$0xff] 0
          %287 = vst [vmem:[#allocation2 + $0x11c] sm:$0xf] 0
          %288 = vst [vmem:[#allocation2 + $0x120] sm:$0xff] 0
          %289 = vst [vmem:[#allocation2 + $0x128] sm:$0xf] 0
          %290 = vst [vmem:[#allocation2 + $0x12c] sm:$0xff] 0
          %291 = vst [vmem:[#allocation2 + $0x134] sm:$0xf] 0
          %292 = vst [vmem:[#allocation2 + $0x138] sm:$0xff] 0
          %293 = vst [vmem:[#allocation2 + $0x140] sm:$0xf] 0
          %294 = vst [vmem:[#allocation2 + $0x144] sm:$0xff] 0
          %295 = vst [vmem:[#allocation2 + $0x14c] sm:$0xf] 0
          %296 = vst [vmem:[#allocation2 + $0x150] sm:$0xff] 0
          %297 = vst [vmem:[#allocation2 + $0x158] sm:$0xf] 0
          %298 = vst [vmem:[#allocation2 + $0x15c] sm:$0xff] 0
          %299 = vst [vmem:[#allocation2 + $0x164] sm:$0xf] 0
          %300 = vst [vmem:[#allocation2 + $0x168] sm:$0xff] 0
          %301 = vst [vmem:[#allocation2 + $0x170] sm:$0xf] 0
          %302 = vst [vmem:[#allocation2 + $0x174] sm:$0xff] 0
          %303 = vst [vmem:[#allocation2 + $0x17c] sm:$0xf] 0
          %304 = vst [vmem:[#allocation2 + $0x180] sm:$0xff] 0
          %305 = vst [vmem:[#allocation2 + $0x188] sm:$0xf] 0
          %306 = vst [vmem:[#allocation2 + $0x18c] sm:$0xff] 0
          %307 = vst [vmem:[#allocation2 + $0x194] sm:$0xf] 0
          %308 = vst [vmem:[#allocation2 + $0x198] sm:$0xff] 0
          %309 = vst [vmem:[#allocation2 + $0x1a0] sm:$0xf] 0
          %310 = vst [vmem:[#allocation2 + $0x1a4] sm:$0xff] 0
          %311 = vst [vmem:[#allocation2 + $0x1ac] sm:$0xf] 0
          %vm312 = vcmask 261120
          %313 = vst.msk [vmem:[%s225] sm:$0xff] %vm312, 0.0
          %314 = vst.msk [vmem:[%s225 + $0x8] sm:$0xff] %vm312, 0.0
          %315 = vst.msk [vmem:[%s225 + $0x10] sm:$0xff] %vm312, 0.0
          %316 = vst.msk [vmem:[%s225 + $0x18] sm:$0xff] %vm312, 0.0
          %317 = vst.msk [vmem:[%s225 + $0x20] sm:$0xff] %vm312, 0.0
          %318 = vst.msk [vmem:[%s225 + $0x28] sm:$0xff] %vm312, 0.0
          %319 = vst.msk [vmem:[%s225 + $0x30] sm:$0xff] %vm312, 0.0
          %320 = vst.msk [vmem:[%s225 + $0x38] sm:$0xff] %vm312, 0.0
          %321 = vst.msk [vmem:[%s225 + $0x40] sm:$0xff] %vm312, 0.0
          %322 = vst.msk [vmem:[%s225 + $0x48] sm:$0xff] %vm312, 0.0
          %323 = vst.msk [vmem:[%s225 + $0x50] sm:$0xff] %vm312, 0.0
          %324 = vst.msk [vmem:[%s225 + $0x58] sm:$0xff] %vm312, 0.0
          %325 = vst.msk [vmem:[%s225 + $0x60] sm:$0xff] %vm312, 0.0
          %326 = vst.msk [vmem:[%s225 + $0x68] sm:$0xff] %vm312, 0.0
          %327 = vst.msk [vmem:[%s225 + $0x70] sm:$0xff] %vm312, 0.0
          %328 = vst.msk [vmem:[%s225 + $0x78] sm:$0xff] %vm312, 0.0
          %329 = vst.msk [vmem:[%s225 + $0x80] sm:$0xff] %vm312, 0.0
          %330 = vst.msk [vmem:[%s225 + $0x88] sm:$0xff] %vm312, 0.0
          %331 = vst.msk [vmem:[%s225 + $0x90] sm:$0xff] %vm312, 0.0
          %332 = vst.msk [vmem:[%s225 + $0x98] sm:$0xff] %vm312, 0.0
          %333 = vst.msk [vmem:[%s225 + $0xa0] sm:$0xff] %vm312, 0.0
          %334 = vst.msk [vmem:[%s225 + $0xa8] sm:$0xff] %vm312, 0.0
          %335 = vst.msk [vmem:[%s225 + $0xb0] sm:$0xff] %vm312, 0.0
          %336 = vst.msk [vmem:[%s225 + $0xb8] sm:$0xff] %vm312, 0.0
          %337 = vst.msk [vmem:[%s225 + $0xc0] sm:$0xff] %vm312, 0.0
          %338 = vst.msk [vmem:[%s225 + $0xc8] sm:$0xff] %vm312, 0.0
          %339 = vst.msk [vmem:[%s225 + $0xd0] sm:$0xff] %vm312, 0.0
          %340 = vst.msk [vmem:[%s225 + $0xd8] sm:$0xff] %vm312, 0.0
          %341 = vst.msk [vmem:[%s225 + $0xe0] sm:$0xff] %vm312, 0.0
          %342 = vst.msk [vmem:[%s225 + $0xe8] sm:$0xff] %vm312, 0.0
          %343 = vst.msk [vmem:[%s225 + $0xf0] sm:$0xff] %vm312, 0.0
          %344 = vst.msk [vmem:[%s225 + $0xf8] sm:$0xff] %vm312, 0.0
        $region36: #{tpu_custom_call.1} parent=31 // pred_fallthru
          _
        %v345 = vld [vmem:[%s234] sm:$0xf]
        %v346 = vld [vmem:[%s234 + $0x4] sm:$0xf]
        %v347 = vld [vmem:[%s234 + $0x8] sm:$0xf]
        %v348 = vld [vmem:[%s234 + $0xc] sm:$0xf]
        %v349 = vld [vmem:[%s234 + $0x10] sm:$0xf]
        %v350 = vld [vmem:[%s234 + $0x14] sm:$0xf]
        %v351 = vld [vmem:[%s234 + $0x18] sm:$0xf]
        %v352 = vld [vmem:[%s234 + $0x1c] sm:$0xf]
        %v353 = vld [vmem:[%s234 + $0x20] sm:$0xf]
        %v354 = vld [vmem:[%s234 + $0x24] sm:$0xf]
        %v355 = vld [vmem:[%s234 + $0x28] sm:$0xf]
        %v356 = vld [vmem:[%s234 + $0x2c] sm:$0xf]
        %v357 = vld [vmem:[%s234 + $0x30] sm:$0xf]
        %v358 = vld [vmem:[%s234 + $0x34] sm:$0xf]
        %v359 = vld [vmem:[%s234 + $0x38] sm:$0xf]
        %v360 = vld [vmem:[%s234 + $0x3c] sm:$0xf]
        %v361 = vld [vmem:[%s234 + $0x40] sm:$0xf]
        %v362 = vld [vmem:[%s234 + $0x44] sm:$0xf]
        %v363 = vld [vmem:[%s234 + $0x48] sm:$0xf]
        %v364 = vld [vmem:[%s234 + $0x4c] sm:$0xf]
        %v365 = vld [vmem:[%s234 + $0x50] sm:$0xf]
        %v366 = vld [vmem:[%s234 + $0x54] sm:$0xf]
        %v367 = vld [vmem:[%s234 + $0x58] sm:$0xf]
        %v368 = vld [vmem:[%s234 + $0x5c] sm:$0xf]
        %v369 = vld [vmem:[%s234 + $0x60] sm:$0xf]
        %v370 = vld [vmem:[%s234 + $0x64] sm:$0xf]
        %v371 = vld [vmem:[%s234 + $0x68] sm:$0xf]
        %v372 = vld [vmem:[%s234 + $0x6c] sm:$0xf]
        %v373 = vld [vmem:[%s234 + $0x70] sm:$0xf]
        %v374 = vld [vmem:[%s234 + $0x74] sm:$0xf]
        %v375 = vld [vmem:[%s234 + $0x78] sm:$0xf]
        %v376 = vld [vmem:[%s234 + $0x7c] sm:$0xf]
        %vm377 = vsmask.f32 256
        %vm378 = vsmask.f32 4368
        %vm379 = vmor %vm377, %vm378
        %v381 = vshrl.u32 %v345, 16
        %v383 = vrot.slane %v381, 7
        %v384 = vshll.u32 %v345, 16
        %v386 = vor.u32 %v383, %v384
        %v387 = vrot.slane %v383, 4
        %v389 = vshrl.u32 %v346, 16
        %v391 = vrot.slane %v389, 7
        %v392 = vshll.u32 %v346, 16
        %v394 = vor.u32 %v391, %v392
        %v395 = vsel %vm379, %v387, %v394
        %v397 = vshrl.u32 %v347, 16
        %v399 = vrot.slane %v397, 7
        %v400 = vshll.u32 %v347, 16
        %v402 = vor.u32 %v399, %v400
        %v403 = vrot.slane %v399, 4
        %v405 = vshrl.u32 %v348, 16
        %v407 = vrot.slane %v405, 7
        %v408 = vshll.u32 %v348, 16
        %v410 = vor.u32 %v407, %v408
        %v411 = vsel %vm379, %v403, %v410
        %v413 = vshrl.u32 %v349, 16
        %v415 = vrot.slane %v413, 7
        %v416 = vshll.u32 %v349, 16
        %v418 = vor.u32 %v415, %v416
        %v419 = vrot.slane %v415, 4
        %v421 = vshrl.u32 %v350, 16
        %v423 = vrot.slane %v421, 7
        %v424 = vshll.u32 %v350, 16
        %v426 = vor.u32 %v423, %v424
        %v427 = vsel %vm379, %v419, %v426
        %v429 = vshrl.u32 %v351, 16
        %v431 = vrot.slane %v429, 7
        %v432 = vshll.u32 %v351, 16
        %v434 = vor.u32 %v431, %v432
        %v435 = vrot.slane %v431, 4
        %v437 = vshrl.u32 %v352, 16
        %v439 = vrot.slane %v437, 7
        %v440 = vshll.u32 %v352, 16
        %v442 = vor.u32 %v439, %v440
        %v443 = vsel %vm379, %v435, %v442
        %v445 = vshrl.u32 %v353, 16
        %v447 = vrot.slane %v445, 7
        %v448 = vshll.u32 %v353, 16
        %v450 = vor.u32 %v447, %v448
        %v451 = vrot.slane %v447, 4
        %v453 = vshrl.u32 %v354, 16
        %v455 = vrot.slane %v453, 7
        %v456 = vshll.u32 %v354, 16
        %v458 = vor.u32 %v455, %v456
        %v459 = vsel %vm379, %v451, %v458
        %v461 = vshrl.u32 %v355, 16
        %v463 = vrot.slane %v461, 7
        %v464 = vshll.u32 %v355, 16
        %v466 = vor.u32 %v463, %v464
        %v467 = vrot.slane %v463, 4
        %v469 = vshrl.u32 %v356, 16
        %v471 = vrot.slane %v469, 7
        %v472 = vshll.u32 %v356, 16
        %v474 = vor.u32 %v471, %v472
        %v475 = vsel %vm379, %v467, %v474
        %v477 = vshrl.u32 %v357, 16
        %v479 = vrot.slane %v477, 7
        %v480 = vshll.u32 %v357, 16
        %v482 = vor.u32 %v479, %v480
        %v483 = vrot.slane %v479, 4
        %v485 = vshrl.u32 %v358, 16
        %v487 = vrot.slane %v485, 7
        %v488 = vshll.u32 %v358, 16
        %v490 = vor.u32 %v487, %v488
        %v491 = vsel %vm379, %v483, %v490
        %v493 = vshrl.u32 %v359, 16
        %v495 = vrot.slane %v493, 7
        %v496 = vshll.u32 %v359, 16
        %v498 = vor.u32 %v495, %v496
        %v499 = vrot.slane %v495, 4
        %v501 = vshrl.u32 %v360, 16
        %v503 = vrot.slane %v501, 7
        %v504 = vshll.u32 %v360, 16
        %v506 = vor.u32 %v503, %v504
        %v507 = vsel %vm379, %v499, %v506
        %v509 = vshrl.u32 %v361, 16
        %v511 = vrot.slane %v509, 7
        %v512 = vshll.u32 %v361, 16
        %v514 = vor.u32 %v511, %v512
        %v515 = vrot.slane %v511, 4
        %v517 = vshrl.u32 %v362, 16
        %v519 = vrot.slane %v517, 7
        %v520 = vshll.u32 %v362, 16
        %v522 = vor.u32 %v519, %v520
        %v523 = vsel %vm379, %v515, %v522
        %v525 = vshrl.u32 %v363, 16
        %v527 = vrot.slane %v525, 7
        %v528 = vshll.u32 %v363, 16
        %v530 = vor.u32 %v527, %v528
        %v531 = vrot.slane %v527, 4
        %v533 = vshrl.u32 %v364, 16
        %v535 = vrot.slane %v533, 7
        %v536 = vshll.u32 %v364, 16
        %v538 = vor.u32 %v535, %v536
        %v539 = vsel %vm379, %v531, %v538
        %v541 = vshrl.u32 %v365, 16
        %v543 = vrot.slane %v541, 7
        %v544 = vshll.u32 %v365, 16
        %v546 = vor.u32 %v543, %v544
        %v547 = vrot.slane %v543, 4
        %v549 = vshrl.u32 %v366, 16
        %v551 = vrot.slane %v549, 7
        %v552 = vshll.u32 %v366, 16
        %v554 = vor.u32 %v551, %v552
        %v555 = vsel %vm379, %v547, %v554
        %v557 = vshrl.u32 %v367, 16
        %v559 = vrot.slane %v557, 7
        %v560 = vshll.u32 %v367, 16
        %v562 = vor.u32 %v559, %v560
        %v563 = vrot.slane %v559, 4
        %v565 = vshrl.u32 %v368, 16
        %v567 = vrot.slane %v565, 7
        %v568 = vshll.u32 %v368, 16
        %v570 = vor.u32 %v567, %v568
        %v571 = vsel %vm379, %v563, %v570
        %v573 = vshrl.u32 %v369, 16
        %v575 = vrot.slane %v573, 7
        %v576 = vshll.u32 %v369, 16
        %v578 = vor.u32 %v575, %v576
        %v579 = vrot.slane %v575, 4
        %v581 = vshrl.u32 %v370, 16
        %v583 = vrot.slane %v581, 7
        %v584 = vshll.u32 %v370, 16
        %v586 = vor.u32 %v583, %v584
        %v587 = vsel %vm379, %v579, %v586
        %v589 = vshrl.u32 %v371, 16
        %v591 = vrot.slane %v589, 7
        %v592 = vshll.u32 %v371, 16
        %v594 = vor.u32 %v591, %v592
        %v595 = vrot.slane %v591, 4
        %v597 = vshrl.u32 %v372, 16
        %v599 = vrot.slane %v597, 7
        %v600 = vshll.u32 %v372, 16
        %v602 = vor.u32 %v599, %v600
        %v603 = vsel %vm379, %v595, %v602
        %v605 = vshrl.u32 %v373, 16
        %v607 = vrot.slane %v605, 7
        %v608 = vshll.u32 %v373, 16
        %v610 = vor.u32 %v607, %v608
        %v611 = vrot.slane %v607, 4
        %v613 = vshrl.u32 %v374, 16
        %v615 = vrot.slane %v613, 7
        %v616 = vshll.u32 %v374, 16
        %v618 = vor.u32 %v615, %v616
        %v619 = vsel %vm379, %v611, %v618
        %v621 = vshrl.u32 %v375, 16
        %v623 = vrot.slane %v621, 7
        %v624 = vshll.u32 %v375, 16
        %v626 = vor.u32 %v623, %v624
        %v627 = vrot.slane %v623, 4
        %v629 = vshrl.u32 %v376, 16
        %v631 = vrot.slane %v629, 7
        %v632 = vshll.u32 %v376, 16
        %v634 = vor.u32 %v631, %v632
        %v635 = vsel %vm379, %v627, %v634
        %s668 = scalar_lea.vmem [#allocation2], 24
        %vm669 = vcmask 27648
        %vm670 = vsmask.f32 7938
        %vm671 = vmand %vm669, %vm670
        %v672 = vld [vmem:[%s668] sm:$0xf]
        %v673 = vsel %vm671, %v386, %v672
        %674 = vst [vmem:[%s668] sm:$0xf] %v673
        %vm675 = vcmask 27648
        %676 = vst.msk [vmem:[%s668 + $0xc] sm:$0xf] %vm675, %v395
        %v677 = vld [vmem:[%s668 + $0x18] sm:$0xf]
        %v678 = vsel %vm671, %v402, %v677
        %679 = vst [vmem:[%s668 + $0x18] sm:$0xf] %v678
        %680 = vst.msk [vmem:[%s668 + $0x24] sm:$0xf] %vm675, %v411
        %v681 = vld [vmem:[%s668 + $0x30] sm:$0xf]
        %v682 = vsel %vm671, %v418, %v681
        %683 = vst [vmem:[%s668 + $0x30] sm:$0xf] %v682
        %684 = vst.msk [vmem:[%s668 + $0x3c] sm:$0xf] %vm675, %v427
        %v685 = vld [vmem:[%s668 + $0x48] sm:$0xf]
        %v686 = vsel %vm671, %v434, %v685
        %687 = vst [vmem:[%s668 + $0x48] sm:$0xf] %v686
        %688 = vst.msk [vmem:[%s668 + $0x54] sm:$0xf] %vm675, %v443
        %v689 = vld [vmem:[%s668 + $0x60] sm:$0xf]
        %v690 = vsel %vm671, %v450, %v689
        %691 = vst [vmem:[%s668 + $0x60] sm:$0xf] %v690
        %692 = vst.msk [vmem:[%s668 + $0x6c] sm:$0xf] %vm675, %v459
        %v693 = vld [vmem:[%s668 + $0x78] sm:$0xf]
        %v694 = vsel %vm671, %v466, %v693
        %695 = vst [vmem:[%s668 + $0x78] sm:$0xf] %v694
        %696 = vst.msk [vmem:[%s668 + $0x84] sm:$0xf] %vm675, %v475
        %v697 = vld [vmem:[%s668 + $0x90] sm:$0xf]
        %v698 = vsel %vm671, %v482, %v697
        %699 = vst [vmem:[%s668 + $0x90] sm:$0xf] %v698
        %700 = vst.msk [vmem:[%s668 + $0x9c] sm:$0xf] %vm675, %v491
        %v701 = vld [vmem:[%s668 + $0xa8] sm:$0xf]
        %v702 = vsel %vm671, %v498, %v701
        %703 = vst [vmem:[%s668 + $0xa8] sm:$0xf] %v702
        %704 = vst.msk [vmem:[%s668 + $0xb4] sm:$0xf] %vm675, %v507
        %v705 = vld [vmem:[%s668 + $0xc0] sm:$0xf]
        %v706 = vsel %vm671, %v514, %v705
        %707 = vst [vmem:[%s668 + $0xc0] sm:$0xf] %v706
        %708 = vst.msk [vmem:[%s668 + $0xcc] sm:$0xf] %vm675, %v523
        %v709 = vld [vmem:[%s668 + $0xd8] sm:$0xf]
        %v710 = vsel %vm671, %v530, %v709
        %711 = vst [vmem:[%s668 + $0xd8] sm:$0xf] %v710
        %712 = vst.msk [vmem:[%s668 + $0xe4] sm:$0xf] %vm675, %v539
        %v713 = vld [vmem:[%s668 + $0xf0] sm:$0xf]
        %v714 = vsel %vm671, %v546, %v713
        %715 = vst [vmem:[%s668 + $0xf0] sm:$0xf] %v714
        %716 = vst.msk [vmem:[%s668 + $0xfc] sm:$0xf] %vm675, %v555
        %v717 = vld [vmem:[%s668 + $0x108] sm:$0xf]
        %v718 = vsel %vm671, %v562, %v717
        %719 = vst [vmem:[%s668 + $0x108] sm:$0xf] %v718
        %720 = vst.msk [vmem:[%s668 + $0x114] sm:$0xf] %vm675, %v571
        %v721 = vld [vmem:[%s668 + $0x120] sm:$0xf]
        %v722 = vsel %vm671, %v578, %v721
        %723 = vst [vmem:[%s668 + $0x120] sm:$0xf] %v722
        %724 = vst.msk [vmem:[%s668 + $0x12c] sm:$0xf] %vm675, %v587
        %v725 = vld [vmem:[%s668 + $0x138] sm:$0xf]
        %v726 = vsel %vm671, %v594, %v725
        %727 = vst [vmem:[%s668 + $0x138] sm:$0xf] %v726
        %728 = vst.msk [vmem:[%s668 + $0x144] sm:$0xf] %vm675, %v603
        %v729 = vld [vmem:[%s668 + $0x150] sm:$0xf]
        %v730 = vsel %vm671, %v610, %v729
        %731 = vst [vmem:[%s668 + $0x150] sm:$0xf] %v730
        %732 = vst.msk [vmem:[%s668 + $0x15c] sm:$0xf] %vm675, %v619
        %v733 = vld [vmem:[%s668 + $0x168] sm:$0xf]
        %v734 = vsel %vm671, %v626, %v733
        %735 = vst [vmem:[%s668 + $0x168] sm:$0xf] %v734
        %736 = vst.msk [vmem:[%s668 + $0x174] sm:$0xf] %vm675, %v635
        %737 = vst.msk [vmem:[%s668 + $0x4] sm:$0xf] %vm675, %v345
        %738 = vst.msk [vmem:[%s668 + $0x10] sm:$0xf] %vm675, %v346
        %739 = vst.msk [vmem:[%s668 + $0x1c] sm:$0xf] %vm675, %v347
        %740 = vst.msk [vmem:[%s668 + $0x28] sm:$0xf] %vm675, %v348
        %741 = vst.msk [vmem:[%s668 + $0x34] sm:$0xf] %vm675, %v349
        %742 = vst.msk [vmem:[%s668 + $0x40] sm:$0xf] %vm675, %v350
        %743 = vst.msk [vmem:[%s668 + $0x4c] sm:$0xf] %vm675, %v351
        %744 = vst.msk [vmem:[%s668 + $0x58] sm:$0xf] %vm675, %v352
        %745 = vst.msk [vmem:[%s668 + $0x64] sm:$0xf] %vm675, %v353
        %746 = vst.msk [vmem:[%s668 + $0x70] sm:$0xf] %vm675, %v354
        %747 = vst.msk [vmem:[%s668 + $0x7c] sm:$0xf] %vm675, %v355
        %748 = vst.msk [vmem:[%s668 + $0x88] sm:$0xf] %vm675, %v356
        %749 = vst.msk [vmem:[%s668 + $0x94] sm:$0xf] %vm675, %v357
        %750 = vst.msk [vmem:[%s668 + $0xa0] sm:$0xf] %vm675, %v358
        %751 = vst.msk [vmem:[%s668 + $0xac] sm:$0xf] %vm675, %v359
        %752 = vst.msk [vmem:[%s668 + $0xb8] sm:$0xf] %vm675, %v360
        %753 = vst.msk [vmem:[%s668 + $0xc4] sm:$0xf] %vm675, %v361
        %754 = vst.msk [vmem:[%s668 + $0xd0] sm:$0xf] %vm675, %v362
        %755 = vst.msk [vmem:[%s668 + $0xdc] sm:$0xf] %vm675, %v363
        %756 = vst.msk [vmem:[%s668 + $0xe8] sm:$0xf] %vm675, %v364
        %757 = vst.msk [vmem:[%s668 + $0xf4] sm:$0xf] %vm675, %v365
        %758 = vst.msk [vmem:[%s668 + $0x100] sm:$0xf] %vm675, %v366
        %759 = vst.msk [vmem:[%s668 + $0x10c] sm:$0xf] %vm675, %v367
        %760 = vst.msk [vmem:[%s668 + $0x118] sm:$0xf] %vm675, %v368
        %761 = vst.msk [vmem:[%s668 + $0x124] sm:$0xf] %vm675, %v369
        %762 = vst.msk [vmem:[%s668 + $0x130] sm:$0xf] %vm675, %v370
        %763 = vst.msk [vmem:[%s668 + $0x13c] sm:$0xf] %vm675, %v371
        %764 = vst.msk [vmem:[%s668 + $0x148] sm:$0xf] %vm675, %v372
        %765 = vst.msk [vmem:[%s668 + $0x154] sm:$0xf] %vm675, %v373
        %766 = vst.msk [vmem:[%s668 + $0x160] sm:$0xf] %vm675, %v374
        %767 = vst.msk [vmem:[%s668 + $0x16c] sm:$0xf] %vm675, %v375
        %768 = vst.msk [vmem:[%s668 + $0x178] sm:$0xf] %vm675, %v376
        %vm769 = vsmask.f32 3328
        %vm770 = vsmask.f32 7440
        %vm771 = vmor %vm769, %vm770
        %v772 = vrot.slane %v381, 4
        %v773 = vrot.slane %v384, 5
        %v774 = vor.u32 %v772, %v773
        %v775 = vrot.slane %v774, 4
        %v776 = vrot.slane %v392, 5
        %v777 = vsel %vm771, %v775, %v776
        %v778 = vrot.slane %v389, 4
        %v779 = vor.u32 %v778, %v776
        %v780 = vrot.slane %v779, 4
        %v781 = vrot.slane %v397, 4
        %v782 = vrot.slane %v400, 5
        %v783 = vor.u32 %v781, %v782
        %v784 = vrot.slane %v783, 4
        %v785 = vrot.slane %v408, 5
        %v786 = vsel %vm771, %v784, %v785
        %v787 = vrot.slane %v405, 4
        %v788 = vor.u32 %v787, %v785
        %v789 = vrot.slane %v788, 4
        %v790 = vrot.slane %v413, 4
        %v791 = vrot.slane %v416, 5
        %v792 = vor.u32 %v790, %v791
        %v793 = vrot.slane %v792, 4
        %v794 = vrot.slane %v424, 5
        %v795 = vsel %vm771, %v793, %v794
        %v796 = vrot.slane %v421, 4
        %v797 = vor.u32 %v796, %v794
        %v798 = vrot.slane %v797, 4
        %v799 = vrot.slane %v429, 4
        %v800 = vrot.slane %v432, 5
        %v801 = vor.u32 %v799, %v800
        %v802 = vrot.slane %v801, 4
        %v803 = vrot.slane %v440, 5
        %v804 = vsel %vm771, %v802, %v803
        %v805 = vrot.slane %v437, 4
        %v806 = vor.u32 %v805, %v803
        %v807 = vrot.slane %v806, 4
        %v808 = vrot.slane %v445, 4
        %v809 = vrot.slane %v448, 5
        %v810 = vor.u32 %v808, %v809
        %v811 = vrot.slane %v810, 4
        %v812 = vrot.slane %v456, 5
        %v813 = vsel %vm771, %v811, %v812
        %v814 = vrot.slane %v453, 4
        %v815 = vor.u32 %v814, %v812
        %v816 = vrot.slane %v815, 4
        %v817 = vrot.slane %v461, 4
        %v818 = vrot.slane %v464, 5
        %v819 = vor.u32 %v817, %v818
        %v820 = vrot.slane %v819, 4
        %v821 = vrot.slane %v472, 5
        %v822 = vsel %vm771, %v820, %v821
        %v823 = vrot.slane %v469, 4
        %v824 = vor.u32 %v823, %v821
        %v825 = vrot.slane %v824, 4
        %v826 = vrot.slane %v477, 4
        %v827 = vrot.slane %v480, 5
        %v828 = vor.u32 %v826, %v827
        %v829 = vrot.slane %v828, 4
        %v830 = vrot.slane %v488, 5
        %v831 = vsel %vm771, %v829, %v830
        %v832 = vrot.slane %v485, 4
        %v833 = vor.u32 %v832, %v830
        %v834 = vrot.slane %v833, 4
        %v835 = vrot.slane %v493, 4
        %v836 = vrot.slane %v496, 5
        %v837 = vor.u32 %v835, %v836
        %v838 = vrot.slane %v837, 4
        %v839 = vrot.slane %v504, 5
        %v840 = vsel %vm771, %v838, %v839
        %v841 = vrot.slane %v501, 4
        %v842 = vor.u32 %v841, %v839
        %v843 = vrot.slane %v842, 4
        %v844 = vrot.slane %v509, 4
        %v845 = vrot.slane %v512, 5
        %v846 = vor.u32 %v844, %v845
        %v847 = vrot.slane %v846, 4
        %v848 = vrot.slane %v520, 5
        %v849 = vsel %vm771, %v847, %v848
        %v850 = vrot.slane %v517, 4
        %v851 = vor.u32 %v850, %v848
        %v852 = vrot.slane %v851, 4
        %v853 = vrot.slane %v525, 4
        %v854 = vrot.slane %v528, 5
        %v855 = vor.u32 %v853, %v854
        %v856 = vrot.slane %v855, 4
        %v857 = vrot.slane %v536, 5
        %v858 = vsel %vm771, %v856, %v857
        %v859 = vrot.slane %v533, 4
        %v860 = vor.u32 %v859, %v857
        %v861 = vrot.slane %v860, 4
        %v862 = vrot.slane %v541, 4
        %v863 = vrot.slane %v544, 5
        %v864 = vor.u32 %v862, %v863
        %v865 = vrot.slane %v864, 4
        %v866 = vrot.slane %v552, 5
        %v867 = vsel %vm771, %v865, %v866
        %v868 = vrot.slane %v549, 4
        %v869 = vor.u32 %v868, %v866
        %v870 = vrot.slane %v869, 4
        %v871 = vrot.slane %v557, 4
        %v872 = vrot.slane %v560, 5
        %v873 = vor.u32 %v871, %v872
        %v874 = vrot.slane %v873, 4
        %v875 = vrot.slane %v568, 5
        %v876 = vsel %vm771, %v874, %v875
        %v877 = vrot.slane %v565, 4
        %v878 = vor.u32 %v877, %v875
        %v879 = vrot.slane %v878, 4
        %v880 = vrot.slane %v573, 4
        %v881 = vrot.slane %v576, 5
        %v882 = vor.u32 %v880, %v881
        %v883 = vrot.slane %v882, 4
        %v884 = vrot.slane %v584, 5
        %v885 = vsel %vm771, %v883, %v884
        %v886 = vrot.slane %v581, 4
        %v887 = vor.u32 %v886, %v884
        %v888 = vrot.slane %v887, 4
        %v889 = vrot.slane %v589, 4
        %v890 = vrot.slane %v592, 5
        %v891 = vor.u32 %v889, %v890
        %v892 = vrot.slane %v891, 4
        %v893 = vrot.slane %v600, 5
        %v894 = vsel %vm771, %v892, %v893
        %v895 = vrot.slane %v597, 4
        %v896 = vor.u32 %v895, %v893
        %v897 = vrot.slane %v896, 4
        %v898 = vrot.slane %v605, 4
        %v899 = vrot.slane %v608, 5
        %v900 = vor.u32 %v898, %v899
        %v901 = vrot.slane %v900, 4
        %v902 = vrot.slane %v616, 5
        %v903 = vsel %vm771, %v901, %v902
        %v904 = vrot.slane %v613, 4
        %v905 = vor.u32 %v904, %v902
        %v906 = vrot.slane %v905, 4
        %v907 = vrot.slane %v621, 4
        %v908 = vrot.slane %v624, 5
        %v909 = vor.u32 %v907, %v908
        %v910 = vrot.slane %v909, 4
        %v911 = vrot.slane %v632, 5
        %v912 = vsel %vm771, %v910, %v911
        %v913 = vrot.slane %v629, 4
        %v914 = vor.u32 %v913, %v911
        %v915 = vrot.slane %v914, 4
        %948 = vst.msk [vmem:[%s668 + $0x8] sm:$0xf] %vm675, %v777
        %vm949 = vmand %vm669, %vm769
        %v950 = vld [vmem:[%s668 + $0x14] sm:$0xf]
        %v951 = vsel %vm949, %v780, %v950
        %952 = vst [vmem:[%s668 + $0x14] sm:$0xf] %v951
        %953 = vst.msk [vmem:[%s668 + $0x20] sm:$0xf] %vm675, %v786
        %v954 = vld [vmem:[%s668 + $0x2c] sm:$0xf]
        %v955 = vsel %vm949, %v789, %v954
        %956 = vst [vmem:[%s668 + $0x2c] sm:$0xf] %v955
        %957 = vst.msk [vmem:[%s668 + $0x38] sm:$0xf] %vm675, %v795
        %v958 = vld [vmem:[%s668 + $0x44] sm:$0xf]
        %v959 = vsel %vm949, %v798, %v958
        %960 = vst [vmem:[%s668 + $0x44] sm:$0xf] %v959
        %961 = vst.msk [vmem:[%s668 + $0x50] sm:$0xf] %vm675, %v804
        %v962 = vld [vmem:[%s668 + $0x5c] sm:$0xf]
        %v963 = vsel %vm949, %v807, %v962
        %964 = vst [vmem:[%s668 + $0x5c] sm:$0xf] %v963
        %965 = vst.msk [vmem:[%s668 + $0x68] sm:$0xf] %vm675, %v813
        %v966 = vld [vmem:[%s668 + $0x74] sm:$0xf]
        %v967 = vsel %vm949, %v816, %v966
        %968 = vst [vmem:[%s668 + $0x74] sm:$0xf] %v967
        %969 = vst.msk [vmem:[%s668 + $0x80] sm:$0xf] %vm675, %v822
        %v970 = vld [vmem:[%s668 + $0x8c] sm:$0xf]
        %v971 = vsel %vm949, %v825, %v970
        %972 = vst [vmem:[%s668 + $0x8c] sm:$0xf] %v971
        %973 = vst.msk [vmem:[%s668 + $0x98] sm:$0xf] %vm675, %v831
        %v974 = vld [vmem:[%s668 + $0xa4] sm:$0xf]
        %v975 = vsel %vm949, %v834, %v974
        %976 = vst [vmem:[%s668 + $0xa4] sm:$0xf] %v975
        %977 = vst.msk [vmem:[%s668 + $0xb0] sm:$0xf] %vm675, %v840
        %v978 = vld [vmem:[%s668 + $0xbc] sm:$0xf]
        %v979 = vsel %vm949, %v843, %v978
        %980 = vst [vmem:[%s668 + $0xbc] sm:$0xf] %v979
        %981 = vst.msk [vmem:[%s668 + $0xc8] sm:$0xf] %vm675, %v849
        %v982 = vld [vmem:[%s668 + $0xd4] sm:$0xf]
        %v983 = vsel %vm949, %v852, %v982
        %984 = vst [vmem:[%s668 + $0xd4] sm:$0xf] %v983
        %985 = vst.msk [vmem:[%s668 + $0xe0] sm:$0xf] %vm675, %v858
        %v986 = vld [vmem:[%s668 + $0xec] sm:$0xf]
        %v987 = vsel %vm949, %v861, %v986
        %988 = vst [vmem:[%s668 + $0xec] sm:$0xf] %v987
        %989 = vst.msk [vmem:[%s668 + $0xf8] sm:$0xf] %vm675, %v867
        %v990 = vld [vmem:[%s668 + $0x104] sm:$0xf]
        %v991 = vsel %vm949, %v870, %v990
        %992 = vst [vmem:[%s668 + $0x104] sm:$0xf] %v991
        %993 = vst.msk [vmem:[%s668 + $0x110] sm:$0xf] %vm675, %v876
        %v994 = vld [vmem:[%s668 + $0x11c] sm:$0xf]
        %v995 = vsel %vm949, %v879, %v994
        %996 = vst [vmem:[%s668 + $0x11c] sm:$0xf] %v995
        %997 = vst.msk [vmem:[%s668 + $0x128] sm:$0xf] %vm675, %v885
        %v998 = vld [vmem:[%s668 + $0x134] sm:$0xf]
        %v999 = vsel %vm949, %v888, %v998
        %1000 = vst [vmem:[%s668 + $0x134] sm:$0xf] %v999
        %1001 = vst.msk [vmem:[%s668 + $0x140] sm:$0xf] %vm675, %v894
        %v1002 = vld [vmem:[%s668 + $0x14c] sm:$0xf]
        %v1003 = vsel %vm949, %v897, %v1002
        %1004 = vst [vmem:[%s668 + $0x14c] sm:$0xf] %v1003
        %1005 = vst.msk [vmem:[%s668 + $0x158] sm:$0xf] %vm675, %v903
        %v1006 = vld [vmem:[%s668 + $0x164] sm:$0xf]
        %v1007 = vsel %vm949, %v906, %v1006
        %1008 = vst [vmem:[%s668 + $0x164] sm:$0xf] %v1007
        %1009 = vst.msk [vmem:[%s668 + $0x170] sm:$0xf] %vm675, %v912
        %v1010 = vld [vmem:[%s668 + $0x17c] sm:$0xf]
        %v1011 = vsel %vm949, %v915, %v1010
        %1012 = vst [vmem:[%s668 + $0x17c] sm:$0xf] %v1011
        %v1013 = vld [vmem:[#allocation2] sm:$0xff]
        %v1014 = vld [vmem:[#allocation2 + $0x8] sm:$0xf]
        %v1015 = vld [vmem:[#allocation2 + $0xc] sm:$0xff]
        %v1016 = vld [vmem:[#allocation2 + $0x14] sm:$0xf]
        %v1017 = vld [vmem:[#allocation2 + $0x18] sm:$0xff]
        %v1018 = vld [vmem:[#allocation2 + $0x20] sm:$0xf]
        %v1019 = vld [vmem:[#allocation2 + $0x24] sm:$0xff]
        %v1020 = vld [vmem:[#allocation2 + $0x2c] sm:$0xf]
        %v1021 = vld [vmem:[#allocation2 + $0x30] sm:$0xff]
        %v1022 = vld [vmem:[#allocation2 + $0x38] sm:$0xf]
        %v1023 = vld [vmem:[#allocation2 + $0x3c] sm:$0xff]
        %v1024 = vld [vmem:[#allocation2 + $0x44] sm:$0xf]
        %v1025 = vld [vmem:[#allocation2 + $0x48] sm:$0xff]
        %v1026 = vld [vmem:[#allocation2 + $0x50] sm:$0xf]
        %v1027 = vld [vmem:[#allocation2 + $0x54] sm:$0xff]
        %v1028 = vld [vmem:[#allocation2 + $0x5c] sm:$0xf]
        %v1029 = vld [vmem:[#allocation2 + $0x60] sm:$0xff]
        %v1030 = vld [vmem:[#allocation2 + $0x68] sm:$0xf]
        %v1031 = vld [vmem:[#allocation2 + $0x6c] sm:$0xff]
        %v1032 = vld [vmem:[#allocation2 + $0x74] sm:$0xf]
        %v1033 = vld [vmem:[#allocation2 + $0x78] sm:$0xff]
        %v1034 = vld [vmem:[#allocation2 + $0x80] sm:$0xf]
        %v1035 = vld [vmem:[#allocation2 + $0x84] sm:$0xff]
        %v1036 = vld [vmem:[#allocation2 + $0x8c] sm:$0xf]
        %v1037 = vld [vmem:[#allocation2 + $0x90] sm:$0xff]
        %v1038 = vld [vmem:[#allocation2 + $0x98] sm:$0xf]
        %v1039 = vld [vmem:[#allocation2 + $0x9c] sm:$0xff]
        %v1040 = vld [vmem:[#allocation2 + $0xa4] sm:$0xf]
        %v1041 = vld [vmem:[#allocation2 + $0xa8] sm:$0xff]
        %v1042 = vld [vmem:[#allocation2 + $0xb0] sm:$0xf]
        %v1043 = vld [vmem:[#allocation2 + $0xb4] sm:$0xff]
        %v1044 = vld [vmem:[#allocation2 + $0xbc] sm:$0xf]
        %v1045 = vld [vmem:[#allocation2 + $0xc0] sm:$0xff]
        %v1046 = vld [vmem:[#allocation2 + $0xc8] sm:$0xf]
        %v1047 = vld [vmem:[#allocation2 + $0xcc] sm:$0xff]
        %v1048 = vld [vmem:[#allocation2 + $0xd4] sm:$0xf]
        %v1049 = vld [vmem:[#allocation2 + $0xd8] sm:$0xff]
        %v1050 = vld [vmem:[#allocation2 + $0xe0] sm:$0xf]
        %v1051 = vld [vmem:[#allocation2 + $0xe4] sm:$0xff]
        %v1052 = vld [vmem:[#allocation2 + $0xec] sm:$0xf]
        %v1053 = vld [vmem:[#allocation2 + $0xf0] sm:$0xff]
        %v1054 = vld [vmem:[#allocation2 + $0xf8] sm:$0xf]
        %v1055 = vld [vmem:[#allocation2 + $0xfc] sm:$0xff]
        %v1056 = vld [vmem:[#allocation2 + $0x104] sm:$0xf]
        %v1057 = vld [vmem:[#allocation2 + $0x108] sm:$0xff]
        %v1058 = vld [vmem:[#allocation2 + $0x110] sm:$0xf]
        %v1059 = vld [vmem:[#allocation2 + $0x114] sm:$0xff]
        %v1060 = vld [vmem:[#allocation2 + $0x11c] sm:$0xf]
        %v1061 = vld [vmem:[#allocation2 + $0x120] sm:$0xff]
        %v1062 = vld [vmem:[#allocation2 + $0x128] sm:$0xf]
        %v1063 = vld [vmem:[#allocation2 + $0x12c] sm:$0xff]
        %v1064 = vld [vmem:[#allocation2 + $0x134] sm:$0xf]
        %v1065 = vld [vmem:[#allocation2 + $0x138] sm:$0xff]
        %v1066 = vld [vmem:[#allocation2 + $0x140] sm:$0xf]
        %v1067 = vld [vmem:[#allocation2 + $0x144] sm:$0xff]
        %v1068 = vld [vmem:[#allocation2 + $0x14c] sm:$0xf]
        %v1069 = vld [vmem:[#allocation2 + $0x150] sm:$0xff]
        %v1070 = vld [vmem:[#allocation2 + $0x158] sm:$0xf]
        %v1071 = vld [vmem:[#allocation2 + $0x15c] sm:$0xff]
        %v1072 = vld [vmem:[#allocation2 + $0x164] sm:$0xf]
        %v1073 = vld [vmem:[#allocation2 + $0x168] sm:$0xff]
        %v1074 = vld [vmem:[#allocation2 + $0x170] sm:$0xf]
        %v1075 = vld [vmem:[#allocation2 + $0x174] sm:$0xff]
        %v1076 = vld [vmem:[#allocation2 + $0x17c] sm:$0xf]
        %v1077 = vld [vmem:[%s1] sm:$0xf]
        %v1078 = vld [vmem:[%s1 + $0x4] sm:$0xf]
        %v1079 = vld [vmem:[%s1 + $0x8] sm:$0xf]
        %v1080 = vld [vmem:[%s1 + $0xc] sm:$0xf]
        %v1081 = vld [vmem:[%s1 + $0x10] sm:$0xf]
        %v1082 = vld [vmem:[%s1 + $0x14] sm:$0xf]
        %v1083 = vld [vmem:[%s1 + $0x18] sm:$0xf]
        %v1084 = vld [vmem:[%s1 + $0x1c] sm:$0xf]
        %v1085 = vld [vmem:[%s1 + $0x20] sm:$0xf]
        %v1086 = vld [vmem:[%s1 + $0x24] sm:$0xf]
        %v1087 = vld [vmem:[%s1 + $0x28] sm:$0xf]
        %v1088 = vld [vmem:[%s1 + $0x2c] sm:$0xf]
        %v1089 = vld [vmem:[%s1 + $0x30] sm:$0xf]
        %v1090 = vld [vmem:[%s1 + $0x34] sm:$0xf]
        %v1091 = vld [vmem:[%s1 + $0x38] sm:$0xf]
        %v1092 = vld [vmem:[%s1 + $0x3c] sm:$0xf]
        %v1093 = vld [vmem:[%s1 + $0x40] sm:$0xf]
        %v1094 = vld [vmem:[%s1 + $0x44] sm:$0xf]
        %v1095 = vld [vmem:[%s1 + $0x48] sm:$0xf]
        %v1096 = vld [vmem:[%s1 + $0x4c] sm:$0xf]
        %v1097 = vld [vmem:[%s1 + $0x50] sm:$0xf]
        %v1098 = vld [vmem:[%s1 + $0x54] sm:$0xf]
        %v1099 = vld [vmem:[%s1 + $0x58] sm:$0xf]
        %v1100 = vld [vmem:[%s1 + $0x5c] sm:$0xf]
        %v1101 = vld [vmem:[%s1 + $0x60] sm:$0xf]
        %v1102 = vld [vmem:[%s1 + $0x64] sm:$0xf]
        %v1103 = vld [vmem:[%s1 + $0x68] sm:$0xf]
        %v1104 = vld [vmem:[%s1 + $0x6c] sm:$0xf]
        %v1105 = vld [vmem:[%s1 + $0x70] sm:$0xf]
        %v1106 = vld [vmem:[%s1 + $0x74] sm:$0xf]
        %v1107 = vld [vmem:[%s1 + $0x78] sm:$0xf]
        %v1108 = vld [vmem:[%s1 + $0x7c] sm:$0xf]
        %v1109 = vld [vmem:[%s1 + $0x80] sm:$0xf]
        %v1110 = vld [vmem:[%s1 + $0x84] sm:$0xf]
        %v1111 = vld [vmem:[%s1 + $0x88] sm:$0xf]
        %v1112 = vld [vmem:[%s1 + $0x8c] sm:$0xf]
        %v1113 = vld [vmem:[%s1 + $0x90] sm:$0xf]
        %v1114 = vld [vmem:[%s1 + $0x94] sm:$0xf]
        %v1115 = vld [vmem:[%s1 + $0x98] sm:$0xf]
        %v1116 = vld [vmem:[%s1 + $0x9c] sm:$0xf]
        %v1117 = vld [vmem:[%s1 + $0xa0] sm:$0xf]
        %v1118 = vld [vmem:[%s1 + $0xa4] sm:$0xf]
        %v1119 = vld [vmem:[%s1 + $0xa8] sm:$0xf]
        %v1120 = vld [vmem:[%s1 + $0xac] sm:$0xf]
        %v1121 = vld [vmem:[%s1 + $0xb0] sm:$0xf]
        %v1122 = vld [vmem:[%s1 + $0xb4] sm:$0xf]
        %v1123 = vld [vmem:[%s1 + $0xb8] sm:$0xf]
        %v1124 = vld [vmem:[%s1 + $0xbc] sm:$0xf]
        %v1125 = vld [vmem:[%s668] sm:$0xff]
        %v1126 = vld [vmem:[%s668 + $0x8] sm:$0xf]
        %v1127 = vld [vmem:[%s668 + $0xc] sm:$0xff]
        %v1128 = vld [vmem:[%s668 + $0x14] sm:$0xf]
        %v1129 = vld [vmem:[%s668 + $0x18] sm:$0xff]
        %v1130 = vld [vmem:[%s668 + $0x20] sm:$0xf]
        %v1131 = vld [vmem:[%s668 + $0x24] sm:$0xff]
        %v1132 = vld [vmem:[%s668 + $0x2c] sm:$0xf]
        %v1133 = vld [vmem:[%s668 + $0x30] sm:$0xff]
        %v1134 = vld [vmem:[%s668 + $0x38] sm:$0xf]
        %v1135 = vld [vmem:[%s668 + $0x3c] sm:$0xff]
        %v1136 = vld [vmem:[%s668 + $0x44] sm:$0xf]
        %v1137 = vld [vmem:[%s668 + $0x48] sm:$0xff]
        %v1138 = vld [vmem:[%s668 + $0x50] sm:$0xf]
        %v1139 = vld [vmem:[%s668 + $0x54] sm:$0xff]
        %v1140 = vld [vmem:[%s668 + $0x5c] sm:$0xf]
        %v1141 = vld [vmem:[%s668 + $0x60] sm:$0xff]
        %v1142 = vld [vmem:[%s668 + $0x68] sm:$0xf]
        %v1143 = vld [vmem:[%s668 + $0x6c] sm:$0xff]
        %v1144 = vld [vmem:[%s668 + $0x74] sm:$0xf]
        %v1145 = vld [vmem:[%s668 + $0x78] sm:$0xff]
        %v1146 = vld [vmem:[%s668 + $0x80] sm:$0xf]
        %v1147 = vld [vmem:[%s668 + $0x84] sm:$0xff]
        %v1148 = vld [vmem:[%s668 + $0x8c] sm:$0xf]
        %v1149 = vld [vmem:[%s668 + $0x90] sm:$0xff]
        %v1150 = vld [vmem:[%s668 + $0x98] sm:$0xf]
        %v1151 = vld [vmem:[%s668 + $0x9c] sm:$0xff]
        %v1152 = vld [vmem:[%s668 + $0xa4] sm:$0xf]
        %v1153 = vld [vmem:[%s668 + $0xa8] sm:$0xff]
        %v1154 = vld [vmem:[%s668 + $0xb0] sm:$0xf]
        %v1155 = vld [vmem:[%s668 + $0xb4] sm:$0xff]
        %v1156 = vld [vmem:[%s668 + $0xbc] sm:$0xf]
        %v1157 = vld [vmem:[%s668 + $0xc0] sm:$0xff]
        %v1158 = vld [vmem:[%s668 + $0xc8] sm:$0xf]
        %v1159 = vld [vmem:[%s668 + $0xcc] sm:$0xff]
        %v1160 = vld [vmem:[%s668 + $0xd4] sm:$0xf]
        %v1161 = vld [vmem:[%s668 + $0xd8] sm:$0xff]
        %v1162 = vld [vmem:[%s668 + $0xe0] sm:$0xf]
        %v1163 = vld [vmem:[%s668 + $0xe4] sm:$0xff]
        %v1164 = vld [vmem:[%s668 + $0xec] sm:$0xf]
        %v1165 = vld [vmem:[%s668 + $0xf0] sm:$0xff]
        %v1166 = vld [vmem:[%s668 + $0xf8] sm:$0xf]
        %v1167 = vld [vmem:[%s668 + $0xfc] sm:$0xff]
        %v1168 = vld [vmem:[%s668 + $0x104] sm:$0xf]
        %v1169 = vld [vmem:[%s668 + $0x108] sm:$0xff]
        %v1170 = vld [vmem:[%s668 + $0x110] sm:$0xf]
        %v1171 = vld [vmem:[%s668 + $0x114] sm:$0xff]
        %v1172 = vld [vmem:[%s668 + $0x11c] sm:$0xf]
        %v1173 = vld [vmem:[%s668 + $0x120] sm:$0xff]
        %v1174 = vld [vmem:[%s668 + $0x128] sm:$0xf]
        %v1175 = vld [vmem:[%s668 + $0x12c] sm:$0xff]
        %v1176 = vld [vmem:[%s668 + $0x134] sm:$0xf]
        %v1177 = vld [vmem:[%s668 + $0x138] sm:$0xff]
        %v1178 = vld [vmem:[%s668 + $0x140] sm:$0xf]
        %v1179 = vld [vmem:[%s668 + $0x144] sm:$0xff]
        %v1180 = vld [vmem:[%s668 + $0x14c] sm:$0xf]
        %v1181 = vld [vmem:[%s668 + $0x150] sm:$0xff]
        %v1182 = vld [vmem:[%s668 + $0x158] sm:$0xf]
        %v1183 = vld [vmem:[%s668 + $0x15c] sm:$0xff]
        %v1184 = vld [vmem:[%s668 + $0x164] sm:$0xf]
        %v1185 = vld [vmem:[%s668 + $0x168] sm:$0xff]
        %v1186 = vld [vmem:[%s668 + $0x170] sm:$0xf]
        %v1187 = vld [vmem:[%s668 + $0x174] sm:$0xff]
        %v1188 = vld [vmem:[%s668 + $0x17c] sm:$0xf]
        %s1189 = scalar_lea.vmem %s1, 192
        %v1190 = vld [vmem:[%s1189] sm:$0xf]
        %v1191 = vld [vmem:[%s1189 + $0x4] sm:$0xf]
        %v1192 = vld [vmem:[%s1189 + $0x8] sm:$0xf]
        %v1193 = vld [vmem:[%s1189 + $0xc] sm:$0xf]
        %v1194 = vld [vmem:[%s1189 + $0x10] sm:$0xf]
        %v1195 = vld [vmem:[%s1189 + $0x14] sm:$0xf]
        %v1196 = vld [vmem:[%s1189 + $0x18] sm:$0xf]
        %v1197 = vld [vmem:[%s1189 + $0x1c] sm:$0xf]
        %v1198 = vld [vmem:[%s1189 + $0x20] sm:$0xf]
        %v1199 = vld [vmem:[%s1189 + $0x24] sm:$0xf]
        %v1200 = vld [vmem:[%s1189 + $0x28] sm:$0xf]
        %v1201 = vld [vmem:[%s1189 + $0x2c] sm:$0xf]
        %v1202 = vld [vmem:[%s1189 + $0x30] sm:$0xf]
        %v1203 = vld [vmem:[%s1189 + $0x34] sm:$0xf]
        %v1204 = vld [vmem:[%s1189 + $0x38] sm:$0xf]
        %v1205 = vld [vmem:[%s1189 + $0x3c] sm:$0xf]
        %v1206 = vld [vmem:[%s1189 + $0x40] sm:$0xf]
        %v1207 = vld [vmem:[%s1189 + $0x44] sm:$0xf]
        %v1208 = vld [vmem:[%s1189 + $0x48] sm:$0xf]
        %v1209 = vld [vmem:[%s1189 + $0x4c] sm:$0xf]
        %v1210 = vld [vmem:[%s1189 + $0x50] sm:$0xf]
        %v1211 = vld [vmem:[%s1189 + $0x54] sm:$0xf]
        %v1212 = vld [vmem:[%s1189 + $0x58] sm:$0xf]
        %v1213 = vld [vmem:[%s1189 + $0x5c] sm:$0xf]
        %v1214 = vld [vmem:[%s1189 + $0x60] sm:$0xf]
        %v1215 = vld [vmem:[%s1189 + $0x64] sm:$0xf]
        %v1216 = vld [vmem:[%s1189 + $0x68] sm:$0xf]
        %v1217 = vld [vmem:[%s1189 + $0x6c] sm:$0xf]
        %v1218 = vld [vmem:[%s1189 + $0x70] sm:$0xf]
        %v1219 = vld [vmem:[%s1189 + $0x74] sm:$0xf]
        %v1220 = vld [vmem:[%s1189 + $0x78] sm:$0xf]
        %v1221 = vld [vmem:[%s1189 + $0x7c] sm:$0xf]
        %v1222 = vld [vmem:[%s1189 + $0x80] sm:$0xf]
        %v1223 = vld [vmem:[%s1189 + $0x84] sm:$0xf]
        %v1224 = vld [vmem:[%s1189 + $0x88] sm:$0xf]
        %v1225 = vld [vmem:[%s1189 + $0x8c] sm:$0xf]
        %v1226 = vld [vmem:[%s1189 + $0x90] sm:$0xf]
        %v1227 = vld [vmem:[%s1189 + $0x94] sm:$0xf]
        %v1228 = vld [vmem:[%s1189 + $0x98] sm:$0xf]
        %v1229 = vld [vmem:[%s1189 + $0x9c] sm:$0xf]
        %v1230 = vld [vmem:[%s1189 + $0xa0] sm:$0xf]
        %v1231 = vld [vmem:[%s1189 + $0xa4] sm:$0xf]
        %v1232 = vld [vmem:[%s1189 + $0xa8] sm:$0xf]
        %v1233 = vld [vmem:[%s1189 + $0xac] sm:$0xf]
        %v1234 = vld [vmem:[%s1189 + $0xb0] sm:$0xf]
        %v1235 = vld [vmem:[%s1189 + $0xb4] sm:$0xf]
        %v1236 = vld [vmem:[%s1189 + $0xb8] sm:$0xf]
        %v1237 = vld [vmem:[%s1189 + $0xbc] sm:$0xf]
        %v1302 = vunpack.c.l.b16 %v1125
        %v1303 = vunpack.c.h.b16 %v1125
        %v1304 = vunpack.c.l.b16 %v1126
        %v1305 = vunpack.c.l.b16 %v1127
        %v1306 = vunpack.c.h.b16 %v1127
        %v1307 = vunpack.c.l.b16 %v1128
        %v1308 = vunpack.c.l.b16 %v1129
        %v1309 = vunpack.c.h.b16 %v1129
        %v1310 = vunpack.c.l.b16 %v1130
        %v1311 = vunpack.c.l.b16 %v1131
        %v1312 = vunpack.c.h.b16 %v1131
        %v1313 = vunpack.c.l.b16 %v1132
        %v1314 = vunpack.c.l.b16 %v1133
        %v1315 = vunpack.c.h.b16 %v1133
        %v1316 = vunpack.c.l.b16 %v1134
        %v1317 = vunpack.c.l.b16 %v1135
        %v1318 = vunpack.c.h.b16 %v1135
        %v1319 = vunpack.c.l.b16 %v1136
        %v1320 = vunpack.c.l.b16 %v1137
        %v1321 = vunpack.c.h.b16 %v1137
        %v1322 = vunpack.c.l.b16 %v1138
        %v1323 = vunpack.c.l.b16 %v1139
        %v1324 = vunpack.c.h.b16 %v1139
        %v1325 = vunpack.c.l.b16 %v1140
        %v1326 = vunpack.c.l.b16 %v1141
        %v1327 = vunpack.c.h.b16 %v1141
        %v1328 = vunpack.c.l.b16 %v1142
        %v1329 = vunpack.c.l.b16 %v1143
        %v1330 = vunpack.c.h.b16 %v1143
        %v1331 = vunpack.c.l.b16 %v1144
        %v1332 = vunpack.c.l.b16 %v1145
        %v1333 = vunpack.c.h.b16 %v1145
        %v1334 = vunpack.c.l.b16 %v1146
        %v1335 = vunpack.c.l.b16 %v1147
        %v1336 = vunpack.c.h.b16 %v1147
        %v1337 = vunpack.c.l.b16 %v1148
        %v1338 = vunpack.c.l.b16 %v1149
        %v1339 = vunpack.c.h.b16 %v1149
        %v1340 = vunpack.c.l.b16 %v1150
        %v1341 = vunpack.c.l.b16 %v1151
        %v1342 = vunpack.c.h.b16 %v1151
        %v1343 = vunpack.c.l.b16 %v1152
        %v1344 = vunpack.c.l.b16 %v1153
        %v1345 = vunpack.c.h.b16 %v1153
        %v1346 = vunpack.c.l.b16 %v1154
        %v1347 = vunpack.c.l.b16 %v1155
        %v1348 = vunpack.c.h.b16 %v1155
        %v1349 = vunpack.c.l.b16 %v1156
        %v1350 = vunpack.c.l.b16 %v1157
        %v1351 = vunpack.c.h.b16 %v1157
        %v1352 = vunpack.c.l.b16 %v1158
        %v1353 = vunpack.c.l.b16 %v1159
        %v1354 = vunpack.c.h.b16 %v1159
        %v1355 = vunpack.c.l.b16 %v1160
        %v1356 = vunpack.c.l.b16 %v1161
        %v1357 = vunpack.c.h.b16 %v1161
        %v1358 = vunpack.c.l.b16 %v1162
        %v1359 = vunpack.c.l.b16 %v1163
        %v1360 = vunpack.c.h.b16 %v1163
        %v1361 = vunpack.c.l.b16 %v1164
        %v1362 = vunpack.c.l.b16 %v1165
        %v1363 = vunpack.c.h.b16 %v1165
        %v1364 = vunpack.c.l.b16 %v1166
        %v1365 = vunpack.c.l.b16 %v1167
        %v1366 = vunpack.c.h.b16 %v1167
        %v1367 = vunpack.c.l.b16 %v1168
        %v1368 = vunpack.c.l.b16 %v1169
        %v1369 = vunpack.c.h.b16 %v1169
        %v1370 = vunpack.c.l.b16 %v1170
        %v1371 = vunpack.c.l.b16 %v1171
        %v1372 = vunpack.c.h.b16 %v1171
        %v1373 = vunpack.c.l.b16 %v1172
        %v1374 = vunpack.c.l.b16 %v1173
        %v1375 = vunpack.c.h.b16 %v1173
        %v1376 = vunpack.c.l.b16 %v1174
        %v1377 = vunpack.c.l.b16 %v1175
        %v1378 = vunpack.c.h.b16 %v1175
        %v1379 = vunpack.c.l.b16 %v1176
        %v1380 = vunpack.c.l.b16 %v1177
        %v1381 = vunpack.c.h.b16 %v1177
        %v1382 = vunpack.c.l.b16 %v1178
        %v1383 = vunpack.c.l.b16 %v1179
        %v1384 = vunpack.c.h.b16 %v1179
        %v1385 = vunpack.c.l.b16 %v1180
        %v1386 = vunpack.c.l.b16 %v1181
        %v1387 = vunpack.c.h.b16 %v1181
        %v1388 = vunpack.c.l.b16 %v1182
        %v1389 = vunpack.c.l.b16 %v1183
        %v1390 = vunpack.c.h.b16 %v1183
        %v1391 = vunpack.c.l.b16 %v1184
        %v1392 = vunpack.c.l.b16 %v1185
        %v1393 = vunpack.c.h.b16 %v1185
        %v1394 = vunpack.c.l.b16 %v1186
        %v1395 = vunpack.c.l.b16 %v1187
        %v1396 = vunpack.c.h.b16 %v1187
        %v1397 = vunpack.c.l.b16 %v1188
        %v1398 = vpack.c.b16 %v1305, %v1302
        %v1399 = vpack.c.b16 %v1306, %v1303
        %v1400 = vpack.c.b16 %v1307, %v1304
        %v1401 = vpack.c.b16 %v1311, %v1308
        %v1402 = vpack.c.b16 %v1312, %v1309
        %v1403 = vpack.c.b16 %v1313, %v1310
        %v1404 = vpack.c.b16 %v1317, %v1314
        %v1405 = vpack.c.b16 %v1318, %v1315
        %v1406 = vpack.c.b16 %v1319, %v1316
        %v1407 = vpack.c.b16 %v1323, %v1320
        %v1408 = vpack.c.b16 %v1324, %v1321
        %v1409 = vpack.c.b16 %v1325, %v1322
        %v1410 = vpack.c.b16 %v1329, %v1326
        %v1411 = vpack.c.b16 %v1330, %v1327
        %v1412 = vpack.c.b16 %v1331, %v1328
        %v1413 = vpack.c.b16 %v1335, %v1332
        %v1414 = vpack.c.b16 %v1336, %v1333
        %v1415 = vpack.c.b16 %v1337, %v1334
        %v1416 = vpack.c.b16 %v1341, %v1338
        %v1417 = vpack.c.b16 %v1342, %v1339
        %v1418 = vpack.c.b16 %v1343, %v1340
        %v1419 = vpack.c.b16 %v1347, %v1344
        %v1420 = vpack.c.b16 %v1348, %v1345
        %v1421 = vpack.c.b16 %v1349, %v1346
        %v1422 = vpack.c.b16 %v1353, %v1350
        %v1423 = vpack.c.b16 %v1354, %v1351
        %v1424 = vpack.c.b16 %v1355, %v1352
        %v1425 = vpack.c.b16 %v1359, %v1356
        %v1426 = vpack.c.b16 %v1360, %v1357
        %v1427 = vpack.c.b16 %v1361, %v1358
        %v1428 = vpack.c.b16 %v1365, %v1362
        %v1429 = vpack.c.b16 %v1366, %v1363
        %v1430 = vpack.c.b16 %v1367, %v1364
        %v1431 = vpack.c.b16 %v1371, %v1368
        %v1432 = vpack.c.b16 %v1372, %v1369
        %v1433 = vpack.c.b16 %v1373, %v1370
        %v1434 = vpack.c.b16 %v1377, %v1374
        %v1435 = vpack.c.b16 %v1378, %v1375
        %v1436 = vpack.c.b16 %v1379, %v1376
        %v1437 = vpack.c.b16 %v1383, %v1380
        %v1438 = vpack.c.b16 %v1384, %v1381
        %v1439 = vpack.c.b16 %v1385, %v1382
        %v1440 = vpack.c.b16 %v1389, %v1386
        %v1441 = vpack.c.b16 %v1390, %v1387
        %v1442 = vpack.c.b16 %v1391, %v1388
        %v1443 = vpack.c.b16 %v1395, %v1392
        %v1444 = vpack.c.b16 %v1396, %v1393
        %v1445 = vpack.c.b16 %v1397, %v1394
        %v1542 = vunpack.c.l.b16 %v1190
        %v1543 = vunpack.c.l.b16 %v1191
        %v1544 = vunpack.c.l.b16 %v1192
        %v1545 = vunpack.c.l.b16 %v1193
        %v1546 = vunpack.c.l.b16 %v1194
        %v1547 = vunpack.c.l.b16 %v1195
        %v1548 = vunpack.c.l.b16 %v1196
        %v1549 = vunpack.c.l.b16 %v1197
        %v1550 = vunpack.c.l.b16 %v1198
        %v1551 = vunpack.c.l.b16 %v1199
        %v1552 = vunpack.c.l.b16 %v1200
        %v1553 = vunpack.c.l.b16 %v1201
        %v1554 = vunpack.c.l.b16 %v1202
        %v1555 = vunpack.c.l.b16 %v1203
        %v1556 = vunpack.c.l.b16 %v1204
        %v1557 = vunpack.c.l.b16 %v1205
        %v1558 = vunpack.c.l.b16 %v1206
        %v1559 = vunpack.c.l.b16 %v1207
        %v1560 = vunpack.c.l.b16 %v1208
        %v1561 = vunpack.c.l.b16 %v1209
        %v1562 = vunpack.c.l.b16 %v1210
        %v1563 = vunpack.c.l.b16 %v1211
        %v1564 = vunpack.c.l.b16 %v1212
        %v1565 = vunpack.c.l.b16 %v1213
        %v1566 = vunpack.c.l.b16 %v1214
        %v1567 = vunpack.c.l.b16 %v1215
        %v1568 = vunpack.c.l.b16 %v1216
        %v1569 = vunpack.c.l.b16 %v1217
        %v1570 = vunpack.c.l.b16 %v1218
        %v1571 = vunpack.c.l.b16 %v1219
        %v1572 = vunpack.c.l.b16 %v1220
        %v1573 = vunpack.c.l.b16 %v1221
        %v1574 = vunpack.c.l.b16 %v1222
        %v1575 = vunpack.c.l.b16 %v1223
        %v1576 = vunpack.c.l.b16 %v1224
        %v1577 = vunpack.c.l.b16 %v1225
        %v1578 = vunpack.c.l.b16 %v1226
        %v1579 = vunpack.c.l.b16 %v1227
        %v1580 = vunpack.c.l.b16 %v1228
        %v1581 = vunpack.c.l.b16 %v1229
        %v1582 = vunpack.c.l.b16 %v1230
        %v1583 = vunpack.c.l.b16 %v1231
        %v1584 = vunpack.c.l.b16 %v1232
        %v1585 = vunpack.c.l.b16 %v1233
        %v1586 = vunpack.c.l.b16 %v1234
        %v1587 = vunpack.c.l.b16 %v1235
        %v1588 = vunpack.c.l.b16 %v1236
        %v1589 = vunpack.c.l.b16 %v1237
        %v1590 = vpack.c.b16 %v1543, %v1542
        %v1591 = vpack.c.b16 %v1545, %v1544
        %v1592 = vpack.c.b16 %v1547, %v1546
        %v1593 = vpack.c.b16 %v1549, %v1548
        %v1594 = vpack.c.b16 %v1551, %v1550
        %v1595 = vpack.c.b16 %v1553, %v1552
        %v1596 = vpack.c.b16 %v1555, %v1554
        %v1597 = vpack.c.b16 %v1557, %v1556
        %v1598 = vpack.c.b16 %v1559, %v1558
        %v1599 = vpack.c.b16 %v1561, %v1560
        %v1600 = vpack.c.b16 %v1563, %v1562
        %v1601 = vpack.c.b16 %v1565, %v1564
        %v1602 = vpack.c.b16 %v1567, %v1566
        %v1603 = vpack.c.b16 %v1569, %v1568
        %v1604 = vpack.c.b16 %v1571, %v1570
        %v1605 = vpack.c.b16 %v1573, %v1572
        %v1606 = vpack.c.b16 %v1575, %v1574
        %v1607 = vpack.c.b16 %v1577, %v1576
        %v1608 = vpack.c.b16 %v1579, %v1578
        %v1609 = vpack.c.b16 %v1581, %v1580
        %v1610 = vpack.c.b16 %v1583, %v1582
        %v1611 = vpack.c.b16 %v1585, %v1584
        %v1612 = vpack.c.b16 %v1587, %v1586
        %v1613 = vpack.c.b16 %v1589, %v1588
        %1638 = vmatpush.bf16.msra.mxu0 %v1597
        %1639 = vmatpush.bf16.msra.mxu0 %v1596
        %1640 = vmatpush.bf16.msra.mxu0 %v1595
        %1641 = vmatpush.bf16.msra.mxu0 %v1594
        %1642 = vmatpush.bf16.msra.mxu0 %v1593
        %1643 = vmatpush.bf16.msra.mxu0 %v1592
        %1644 = vmatpush.bf16.msra.mxu0 %v1591
        %1645 = vmatpush.bf16.msra.mxu0 %v1590
        %1646 = vmatmul.bf16.gmra.mxu0 %v1398
        %v1647 = vpop.f32.mrf.mxu0
        %v1648 = vadd.f32 0.0, %v1647
        %v1649 = vpop.f32.mrf.mxu0
        %v1650 = vadd.f32 0.0, %v1649
        %1651 = vmatmul.bf16.gmra.mxu0 %v1401
        %v1652 = vpop.f32.mrf.mxu0
        %v1653 = vadd.f32 0.0, %v1652
        %v1654 = vpop.f32.mrf.mxu0
        %v1655 = vadd.f32 0.0, %v1654
        %1656 = vmatmul.bf16.gmra.mxu0 %v1404
        %v1657 = vpop.f32.mrf.mxu0
        %v1658 = vadd.f32 0.0, %v1657
        %v1659 = vpop.f32.mrf.mxu0
        %v1660 = vadd.f32 0.0, %v1659
        %1661 = vmatmul.bf16.gmra.mxu0 %v1407
        %v1662 = vpop.f32.mrf.mxu0
        %v1663 = vadd.f32 0.0, %v1662
        %v1664 = vpop.f32.mrf.mxu0
        %v1665 = vadd.f32 0.0, %v1664
        %1666 = vmatmul.bf16.gmra.mxu0 %v1410
        %v1667 = vpop.f32.mrf.mxu0
        %v1668 = vadd.f32 0.0, %v1667
        %v1669 = vpop.f32.mrf.mxu0
        %v1670 = vadd.f32 0.0, %v1669
        %1671 = vmatmul.bf16.gmra.mxu0 %v1413
        %v1672 = vpop.f32.mrf.mxu0
        %v1673 = vadd.f32 0.0, %v1672
        %v1674 = vpop.f32.mrf.mxu0
        %v1675 = vadd.f32 0.0, %v1674
        %1676 = vmatmul.bf16.gmra.mxu0 %v1416
        %v1677 = vpop.f32.mrf.mxu0
        %v1678 = vadd.f32 0.0, %v1677
        %v1679 = vpop.f32.mrf.mxu0
        %v1680 = vadd.f32 0.0, %v1679
        %1681 = vmatmul.bf16.gmra.mxu0 %v1419
        %v1682 = vpop.f32.mrf.mxu0
        %v1683 = vadd.f32 0.0, %v1682
        %v1684 = vpop.f32.mrf.mxu0
        %v1685 = vadd.f32 0.0, %v1684
        %1686 = vmatmul.bf16.gmra.mxu0 %v1422
        %v1687 = vpop.f32.mrf.mxu0
        %v1688 = vadd.f32 0.0, %v1687
        %v1689 = vpop.f32.mrf.mxu0
        %v1690 = vadd.f32 0.0, %v1689
        %1691 = vmatmul.bf16.gmra.mxu0 %v1425
        %v1692 = vpop.f32.mrf.mxu0
        %v1693 = vadd.f32 0.0, %v1692
        %v1694 = vpop.f32.mrf.mxu0
        %v1695 = vadd.f32 0.0, %v1694
        %1696 = vmatmul.bf16.gmra.mxu0 %v1428
        %v1697 = vpop.f32.mrf.mxu0
        %v1698 = vadd.f32 0.0, %v1697
        %v1699 = vpop.f32.mrf.mxu0
        %v1700 = vadd.f32 0.0, %v1699
        %1701 = vmatmul.bf16.gmra.mxu0 %v1431
        %v1702 = vpop.f32.mrf.mxu0
        %v1703 = vadd.f32 0.0, %v1702
        %v1704 = vpop.f32.mrf.mxu0
        %v1705 = vadd.f32 0.0, %v1704
        %1706 = vmatmul.bf16.gmra.mxu0 %v1434
        %v1707 = vpop.f32.mrf.mxu0
        %v1708 = vadd.f32 0.0, %v1707
        %v1709 = vpop.f32.mrf.mxu0
        %v1710 = vadd.f32 0.0, %v1709
        %1711 = vmatmul.bf16.gmra.mxu0 %v1437
        %v1712 = vpop.f32.mrf.mxu0
        %v1713 = vadd.f32 0.0, %v1712
        %v1714 = vpop.f32.mrf.mxu0
        %v1715 = vadd.f32 0.0, %v1714
        %1716 = vmatmul.bf16.gmra.mxu0 %v1440
        %v1717 = vpop.f32.mrf.mxu0
        %v1718 = vadd.f32 0.0, %v1717
        %v1719 = vpop.f32.mrf.mxu0
        %v1720 = vadd.f32 0.0, %v1719
        %1721 = vmatmul.bf16.gmra.mxu0 %v1443
        %v1722 = vpop.f32.mrf.mxu0
        %v1723 = vadd.f32 0.0, %v1722
        %v1724 = vpop.f32.mrf.mxu0
        %v1725 = vadd.f32 0.0, %v1724
        %1726 = vdwg.mxu0
        %1727 = vmatpush.bf16.msra.mxu0 %v1605
        %1728 = vmatpush.bf16.msra.mxu0 %v1604
        %1729 = vmatpush.bf16.msra.mxu0 %v1603
        %1730 = vmatpush.bf16.msra.mxu0 %v1602
        %1731 = vmatpush.bf16.msra.mxu0 %v1601
        %1732 = vmatpush.bf16.msra.mxu0 %v1600
        %1733 = vmatpush.bf16.msra.mxu0 %v1599
        %1734 = vmatpush.bf16.msra.mxu0 %v1598
        %1735 = vmatmul.bf16.gmra.mxu0 %v1399
        %v1736 = vpop.f32.mrf.mxu0
        %v1737 = vadd.f32 %v1648, %v1736
        %v1738 = vpop.f32.mrf.mxu0
        %v1739 = vadd.f32 %v1650, %v1738
        %1740 = vmatmul.bf16.gmra.mxu0 %v1402
        %v1741 = vpop.f32.mrf.mxu0
        %v1742 = vadd.f32 %v1653, %v1741
        %v1743 = vpop.f32.mrf.mxu0
        %v1744 = vadd.f32 %v1655, %v1743
        %1745 = vmatmul.bf16.gmra.mxu0 %v1405
        %v1746 = vpop.f32.mrf.mxu0
        %v1747 = vadd.f32 %v1658, %v1746
        %v1748 = vpop.f32.mrf.mxu0
        %v1749 = vadd.f32 %v1660, %v1748
        %1750 = vmatmul.bf16.gmra.mxu0 %v1408
        %v1751 = vpop.f32.mrf.mxu0
        %v1752 = vadd.f32 %v1663, %v1751
        %v1753 = vpop.f32.mrf.mxu0
        %v1754 = vadd.f32 %v1665, %v1753
        %1755 = vmatmul.bf16.gmra.mxu0 %v1411
        %v1756 = vpop.f32.mrf.mxu0
        %v1757 = vadd.f32 %v1668, %v1756
        %v1758 = vpop.f32.mrf.mxu0
        %v1759 = vadd.f32 %v1670, %v1758
        %1760 = vmatmul.bf16.gmra.mxu0 %v1414
        %v1761 = vpop.f32.mrf.mxu0
        %v1762 = vadd.f32 %v1673, %v1761
        %v1763 = vpop.f32.mrf.mxu0
        %v1764 = vadd.f32 %v1675, %v1763
        %1765 = vmatmul.bf16.gmra.mxu0 %v1417
        %v1766 = vpop.f32.mrf.mxu0
        %v1767 = vadd.f32 %v1678, %v1766
        %v1768 = vpop.f32.mrf.mxu0
        %v1769 = vadd.f32 %v1680, %v1768
        %1770 = vmatmul.bf16.gmra.mxu0 %v1420
        %v1771 = vpop.f32.mrf.mxu0
        %v1772 = vadd.f32 %v1683, %v1771
        %v1773 = vpop.f32.mrf.mxu0
        %v1774 = vadd.f32 %v1685, %v1773
        %1775 = vmatmul.bf16.gmra.mxu0 %v1423
        %v1776 = vpop.f32.mrf.mxu0
        %v1777 = vadd.f32 %v1688, %v1776
        %v1778 = vpop.f32.mrf.mxu0
        %v1779 = vadd.f32 %v1690, %v1778
        %1780 = vmatmul.bf16.gmra.mxu0 %v1426
        %v1781 = vpop.f32.mrf.mxu0
        %v1782 = vadd.f32 %v1693, %v1781
        %v1783 = vpop.f32.mrf.mxu0
        %v1784 = vadd.f32 %v1695, %v1783
        %1785 = vmatmul.bf16.gmra.mxu0 %v1429
        %v1786 = vpop.f32.mrf.mxu0
        %v1787 = vadd.f32 %v1698, %v1786
        %v1788 = vpop.f32.mrf.mxu0
        %v1789 = vadd.f32 %v1700, %v1788
        %1790 = vmatmul.bf16.gmra.mxu0 %v1432
        %v1791 = vpop.f32.mrf.mxu0
        %v1792 = vadd.f32 %v1703, %v1791
        %v1793 = vpop.f32.mrf.mxu0
        %v1794 = vadd.f32 %v1705, %v1793
        %1795 = vmatmul.bf16.gmra.mxu0 %v1435
        %v1796 = vpop.f32.mrf.mxu0
        %v1797 = vadd.f32 %v1708, %v1796
        %v1798 = vpop.f32.mrf.mxu0
        %v1799 = vadd.f32 %v1710, %v1798
        %1800 = vmatmul.bf16.gmra.mxu0 %v1438
        %v1801 = vpop.f32.mrf.mxu0
        %v1802 = vadd.f32 %v1713, %v1801
        %v1803 = vpop.f32.mrf.mxu0
        %v1804 = vadd.f32 %v1715, %v1803
        %1805 = vmatmul.bf16.gmra.mxu0 %v1441
        %v1806 = vpop.f32.mrf.mxu0
        %v1807 = vadd.f32 %v1718, %v1806
        %v1808 = vpop.f32.mrf.mxu0
        %v1809 = vadd.f32 %v1720, %v1808
        %1810 = vmatmul.bf16.gmra.mxu0 %v1444
        %v1811 = vpop.f32.mrf.mxu0
        %v1812 = vadd.f32 %v1723, %v1811
        %v1813 = vpop.f32.mrf.mxu0
        %v1814 = vadd.f32 %v1725, %v1813
        %1815 = vdwg.mxu0
        %1816 = vmatpush.bf16.msra.mxu0 %v1613
        %1817 = vmatpush.bf16.msra.mxu0 %v1612
        %1818 = vmatpush.bf16.msra.mxu0 %v1611
        %1819 = vmatpush.bf16.msra.mxu0 %v1610
        %1820 = vmatpush.bf16.msra.mxu0 %v1609
        %1821 = vmatpush.bf16.msra.mxu0 %v1608
        %1822 = vmatpush.bf16.msra.mxu0 %v1607
        %1823 = vmatpush.bf16.msra.mxu0 %v1606
        %1824 = vmatmul.bf16.gmra.mxu0 %v1400
        %v1825 = vpop.f32.mrf.mxu0
        %v1826 = vadd.f32 %v1737, %v1825
        %v1827 = vpop.f32.mrf.mxu0
        %v1828 = vadd.f32 %v1739, %v1827
        %1829 = vmatmul.bf16.gmra.mxu0 %v1403
        %v1830 = vpop.f32.mrf.mxu0
        %v1831 = vadd.f32 %v1742, %v1830
        %v1832 = vpop.f32.mrf.mxu0
        %v1833 = vadd.f32 %v1744, %v1832
        %1834 = vmatmul.bf16.gmra.mxu0 %v1406
        %v1835 = vpop.f32.mrf.mxu0
        %v1836 = vadd.f32 %v1747, %v1835
        %v1837 = vpop.f32.mrf.mxu0
        %v1838 = vadd.f32 %v1749, %v1837
        %1839 = vmatmul.bf16.gmra.mxu0 %v1409
        %v1840 = vpop.f32.mrf.mxu0
        %v1841 = vadd.f32 %v1752, %v1840
        %v1842 = vpop.f32.mrf.mxu0
        %v1843 = vadd.f32 %v1754, %v1842
        %1844 = vmatmul.bf16.gmra.mxu0 %v1412
        %v1845 = vpop.f32.mrf.mxu0
        %v1846 = vadd.f32 %v1757, %v1845
        %v1847 = vpop.f32.mrf.mxu0
        %v1848 = vadd.f32 %v1759, %v1847
        %1849 = vmatmul.bf16.gmra.mxu0 %v1415
        %v1850 = vpop.f32.mrf.mxu0
        %v1851 = vadd.f32 %v1762, %v1850
        %v1852 = vpop.f32.mrf.mxu0
        %v1853 = vadd.f32 %v1764, %v1852
        %1854 = vmatmul.bf16.gmra.mxu0 %v1418
        %v1855 = vpop.f32.mrf.mxu0
        %v1856 = vadd.f32 %v1767, %v1855
        %v1857 = vpop.f32.mrf.mxu0
        %v1858 = vadd.f32 %v1769, %v1857
        %1859 = vmatmul.bf16.gmra.mxu0 %v1421
        %v1860 = vpop.f32.mrf.mxu0
        %v1861 = vadd.f32 %v1772, %v1860
        %v1862 = vpop.f32.mrf.mxu0
        %v1863 = vadd.f32 %v1774, %v1862
        %1864 = vmatmul.bf16.gmra.mxu0 %v1424
        %v1865 = vpop.f32.mrf.mxu0
        %v1866 = vadd.f32 %v1777, %v1865
        %v1867 = vpop.f32.mrf.mxu0
        %v1868 = vadd.f32 %v1779, %v1867
        %1869 = vmatmul.bf16.gmra.mxu0 %v1427
        %v1870 = vpop.f32.mrf.mxu0
        %v1871 = vadd.f32 %v1782, %v1870
        %v1872 = vpop.f32.mrf.mxu0
        %v1873 = vadd.f32 %v1784, %v1872
        %1874 = vmatmul.bf16.gmra.mxu0 %v1430
        %v1875 = vpop.f32.mrf.mxu0
        %v1876 = vadd.f32 %v1787, %v1875
        %v1877 = vpop.f32.mrf.mxu0
        %v1878 = vadd.f32 %v1789, %v1877
        %1879 = vmatmul.bf16.gmra.mxu0 %v1433
        %v1880 = vpop.f32.mrf.mxu0
        %v1881 = vadd.f32 %v1792, %v1880
        %v1882 = vpop.f32.mrf.mxu0
        %v1883 = vadd.f32 %v1794, %v1882
        %1884 = vmatmul.bf16.gmra.mxu0 %v1436
        %v1885 = vpop.f32.mrf.mxu0
        %v1886 = vadd.f32 %v1797, %v1885
        %v1887 = vpop.f32.mrf.mxu0
        %v1888 = vadd.f32 %v1799, %v1887
        %1889 = vmatmul.bf16.gmra.mxu0 %v1439
        %v1890 = vpop.f32.mrf.mxu0
        %v1891 = vadd.f32 %v1802, %v1890
        %v1892 = vpop.f32.mrf.mxu0
        %v1893 = vadd.f32 %v1804, %v1892
        %1894 = vmatmul.bf16.gmra.mxu0 %v1442
        %v1895 = vpop.f32.mrf.mxu0
        %v1896 = vadd.f32 %v1807, %v1895
        %v1897 = vpop.f32.mrf.mxu0
        %v1898 = vadd.f32 %v1809, %v1897
        %1899 = vmatmul.bf16.gmra.mxu0 %v1445
        %v1900 = vpop.f32.mrf.mxu0
        %v1901 = vadd.f32 %v1812, %v1900
        %v1902 = vpop.f32.mrf.mxu0
        %v1903 = vadd.f32 %v1814, %v1902
        %1904 = vdwg.mxu0
        %v1969 = vunpack.c.l.b16 %v1013
        %v1970 = vunpack.c.h.b16 %v1013
        %v1971 = vunpack.c.l.b16 %v1014
        %v1972 = vunpack.c.l.b16 %v1015
        %v1973 = vunpack.c.h.b16 %v1015
        %v1974 = vunpack.c.l.b16 %v1016
        %v1975 = vunpack.c.l.b16 %v1017
        %v1976 = vunpack.c.h.b16 %v1017
        %v1977 = vunpack.c.l.b16 %v1018
        %v1978 = vunpack.c.l.b16 %v1019
        %v1979 = vunpack.c.h.b16 %v1019
        %v1980 = vunpack.c.l.b16 %v1020
        %v1981 = vunpack.c.l.b16 %v1021
        %v1982 = vunpack.c.h.b16 %v1021
        %v1983 = vunpack.c.l.b16 %v1022
        %v1984 = vunpack.c.l.b16 %v1023
        %v1985 = vunpack.c.h.b16 %v1023
        %v1986 = vunpack.c.l.b16 %v1024
        %v1987 = vunpack.c.l.b16 %v1025
        %v1988 = vunpack.c.h.b16 %v1025
        %v1989 = vunpack.c.l.b16 %v1026
        %v1990 = vunpack.c.l.b16 %v1027
        %v1991 = vunpack.c.h.b16 %v1027
        %v1992 = vunpack.c.l.b16 %v1028
        %v1993 = vunpack.c.l.b16 %v1029
        %v1994 = vunpack.c.h.b16 %v1029
        %v1995 = vunpack.c.l.b16 %v1030
        %v1996 = vunpack.c.l.b16 %v1031
        %v1997 = vunpack.c.h.b16 %v1031
        %v1998 = vunpack.c.l.b16 %v1032
        %v1999 = vunpack.c.l.b16 %v1033
        %v2000 = vunpack.c.h.b16 %v1033
        %v2001 = vunpack.c.l.b16 %v1034
        %v2002 = vunpack.c.l.b16 %v1035
        %v2003 = vunpack.c.h.b16 %v1035
        %v2004 = vunpack.c.l.b16 %v1036
        %v2005 = vunpack.c.l.b16 %v1037
        %v2006 = vunpack.c.h.b16 %v1037
        %v2007 = vunpack.c.l.b16 %v1038
        %v2008 = vunpack.c.l.b16 %v1039
        %v2009 = vunpack.c.h.b16 %v1039
        %v2010 = vunpack.c.l.b16 %v1040
        %v2011 = vunpack.c.l.b16 %v1041
        %v2012 = vunpack.c.h.b16 %v1041
        %v2013 = vunpack.c.l.b16 %v1042
        %v2014 = vunpack.c.l.b16 %v1043
        %v2015 = vunpack.c.h.b16 %v1043
        %v2016 = vunpack.c.l.b16 %v1044
        %v2017 = vunpack.c.l.b16 %v1045
        %v2018 = vunpack.c.h.b16 %v1045
        %v2019 = vunpack.c.l.b16 %v1046
        %v2020 = vunpack.c.l.b16 %v1047
        %v2021 = vunpack.c.h.b16 %v1047
        %v2022 = vunpack.c.l.b16 %v1048
        %v2023 = vunpack.c.l.b16 %v1049
        %v2024 = vunpack.c.h.b16 %v1049
        %v2025 = vunpack.c.l.b16 %v1050
        %v2026 = vunpack.c.l.b16 %v1051
        %v2027 = vunpack.c.h.b16 %v1051
        %v2028 = vunpack.c.l.b16 %v1052
        %v2029 = vunpack.c.l.b16 %v1053
        %v2030 = vunpack.c.h.b16 %v1053
        %v2031 = vunpack.c.l.b16 %v1054
        %v2032 = vunpack.c.l.b16 %v1055
        %v2033 = vunpack.c.h.b16 %v1055
        %v2034 = vunpack.c.l.b16 %v1056
        %v2035 = vunpack.c.l.b16 %v1057
        %v2036 = vunpack.c.h.b16 %v1057
        %v2037 = vunpack.c.l.b16 %v1058
        %v2038 = vunpack.c.l.b16 %v1059
        %v2039 = vunpack.c.h.b16 %v1059
        %v2040 = vunpack.c.l.b16 %v1060
        %v2041 = vunpack.c.l.b16 %v1061
        %v2042 = vunpack.c.h.b16 %v1061
        %v2043 = vunpack.c.l.b16 %v1062
        %v2044 = vunpack.c.l.b16 %v1063
        %v2045 = vunpack.c.h.b16 %v1063
        %v2046 = vunpack.c.l.b16 %v1064
        %v2047 = vunpack.c.l.b16 %v1065
        %v2048 = vunpack.c.h.b16 %v1065
        %v2049 = vunpack.c.l.b16 %v1066
        %v2050 = vunpack.c.l.b16 %v1067
        %v2051 = vunpack.c.h.b16 %v1067
        %v2052 = vunpack.c.l.b16 %v1068
        %v2053 = vunpack.c.l.b16 %v1069
        %v2054 = vunpack.c.h.b16 %v1069
        %v2055 = vunpack.c.l.b16 %v1070
        %v2056 = vunpack.c.l.b16 %v1071
        %v2057 = vunpack.c.h.b16 %v1071
        %v2058 = vunpack.c.l.b16 %v1072
        %v2059 = vunpack.c.l.b16 %v1073
        %v2060 = vunpack.c.h.b16 %v1073
        %v2061 = vunpack.c.l.b16 %v1074
        %v2062 = vunpack.c.l.b16 %v1075
        %v2063 = vunpack.c.h.b16 %v1075
        %v2064 = vunpack.c.l.b16 %v1076
        %v2065 = vpack.c.b16 %v1972, %v1969
        %v2066 = vpack.c.b16 %v1973, %v1970
        %v2067 = vpack.c.b16 %v1974, %v1971
        %v2068 = vpack.c.b16 %v1978, %v1975
        %v2069 = vpack.c.b16 %v1979, %v1976
        %v2070 = vpack.c.b16 %v1980, %v1977
        %v2071 = vpack.c.b16 %v1984, %v1981
        %v2072 = vpack.c.b16 %v1985, %v1982
        %v2073 = vpack.c.b16 %v1986, %v1983
        %v2074 = vpack.c.b16 %v1990, %v1987
        %v2075 = vpack.c.b16 %v1991, %v1988
        %v2076 = vpack.c.b16 %v1992, %v1989
        %v2077 = vpack.c.b16 %v1996, %v1993
        %v2078 = vpack.c.b16 %v1997, %v1994
        %v2079 = vpack.c.b16 %v1998, %v1995
        %v2080 = vpack.c.b16 %v2002, %v1999
        %v2081 = vpack.c.b16 %v2003, %v2000
        %v2082 = vpack.c.b16 %v2004, %v2001
        %v2083 = vpack.c.b16 %v2008, %v2005
        %v2084 = vpack.c.b16 %v2009, %v2006
        %v2085 = vpack.c.b16 %v2010, %v2007
        %v2086 = vpack.c.b16 %v2014, %v2011
        %v2087 = vpack.c.b16 %v2015, %v2012
        %v2088 = vpack.c.b16 %v2016, %v2013
        %v2089 = vpack.c.b16 %v2020, %v2017
        %v2090 = vpack.c.b16 %v2021, %v2018
        %v2091 = vpack.c.b16 %v2022, %v2019
        %v2092 = vpack.c.b16 %v2026, %v2023
        %v2093 = vpack.c.b16 %v2027, %v2024
        %v2094 = vpack.c.b16 %v2028, %v2025
        %v2095 = vpack.c.b16 %v2032, %v2029
        %v2096 = vpack.c.b16 %v2033, %v2030
        %v2097 = vpack.c.b16 %v2034, %v2031
        %v2098 = vpack.c.b16 %v2038, %v2035
        %v2099 = vpack.c.b16 %v2039, %v2036
        %v2100 = vpack.c.b16 %v2040, %v2037
        %v2101 = vpack.c.b16 %v2044, %v2041
        %v2102 = vpack.c.b16 %v2045, %v2042
        %v2103 = vpack.c.b16 %v2046, %v2043
        %v2104 = vpack.c.b16 %v2050, %v2047
        %v2105 = vpack.c.b16 %v2051, %v2048
        %v2106 = vpack.c.b16 %v2052, %v2049
        %v2107 = vpack.c.b16 %v2056, %v2053
        %v2108 = vpack.c.b16 %v2057, %v2054
        %v2109 = vpack.c.b16 %v2058, %v2055
        %v2110 = vpack.c.b16 %v2062, %v2059
        %v2111 = vpack.c.b16 %v2063, %v2060
        %v2112 = vpack.c.b16 %v2064, %v2061
        %v2209 = vunpack.c.l.b16 %v1077
        %v2210 = vunpack.c.l.b16 %v1078
        %v2211 = vunpack.c.l.b16 %v1079
        %v2212 = vunpack.c.l.b16 %v1080
        %v2213 = vunpack.c.l.b16 %v1081
        %v2214 = vunpack.c.l.b16 %v1082
        %v2215 = vunpack.c.l.b16 %v1083
        %v2216 = vunpack.c.l.b16 %v1084
        %v2217 = vunpack.c.l.b16 %v1085
        %v2218 = vunpack.c.l.b16 %v1086
        %v2219 = vunpack.c.l.b16 %v1087
        %v2220 = vunpack.c.l.b16 %v1088
        %v2221 = vunpack.c.l.b16 %v1089
        %v2222 = vunpack.c.l.b16 %v1090
        %v2223 = vunpack.c.l.b16 %v1091
        %v2224 = vunpack.c.l.b16 %v1092
        %v2225 = vunpack.c.l.b16 %v1093
        %v2226 = vunpack.c.l.b16 %v1094
        %v2227 = vunpack.c.l.b16 %v1095
        %v2228 = vunpack.c.l.b16 %v1096
        %v2229 = vunpack.c.l.b16 %v1097
        %v2230 = vunpack.c.l.b16 %v1098
        %v2231 = vunpack.c.l.b16 %v1099
        %v2232 = vunpack.c.l.b16 %v1100
        %v2233 = vunpack.c.l.b16 %v1101
        %v2234 = vunpack.c.l.b16 %v1102
        %v2235 = vunpack.c.l.b16 %v1103
        %v2236 = vunpack.c.l.b16 %v1104
        %v2237 = vunpack.c.l.b16 %v1105
        %v2238 = vunpack.c.l.b16 %v1106
        %v2239 = vunpack.c.l.b16 %v1107
        %v2240 = vunpack.c.l.b16 %v1108
        %v2241 = vunpack.c.l.b16 %v1109
        %v2242 = vunpack.c.l.b16 %v1110
        %v2243 = vunpack.c.l.b16 %v1111
        %v2244 = vunpack.c.l.b16 %v1112
        %v2245 = vunpack.c.l.b16 %v1113
        %v2246 = vunpack.c.l.b16 %v1114
        %v2247 = vunpack.c.l.b16 %v1115
        %v2248 = vunpack.c.l.b16 %v1116
        %v2249 = vunpack.c.l.b16 %v1117
        %v2250 = vunpack.c.l.b16 %v1118
        %v2251 = vunpack.c.l.b16 %v1119
        %v2252 = vunpack.c.l.b16 %v1120
        %v2253 = vunpack.c.l.b16 %v1121
        %v2254 = vunpack.c.l.b16 %v1122
        %v2255 = vunpack.c.l.b16 %v1123
        %v2256 = vunpack.c.l.b16 %v1124
        %v2257 = vpack.c.b16 %v2210, %v2209
        %v2258 = vpack.c.b16 %v2212, %v2211
        %v2259 = vpack.c.b16 %v2214, %v2213
        %v2260 = vpack.c.b16 %v2216, %v2215
        %v2261 = vpack.c.b16 %v2218, %v2217
        %v2262 = vpack.c.b16 %v2220, %v2219
        %v2263 = vpack.c.b16 %v2222, %v2221
        %v2264 = vpack.c.b16 %v2224, %v2223
        %v2265 = vpack.c.b16 %v2226, %v2225
        %v2266 = vpack.c.b16 %v2228, %v2227
        %v2267 = vpack.c.b16 %v2230, %v2229
        %v2268 = vpack.c.b16 %v2232, %v2231
        %v2269 = vpack.c.b16 %v2234, %v2233
        %v2270 = vpack.c.b16 %v2236, %v2235
        %v2271 = vpack.c.b16 %v2238, %v2237
        %v2272 = vpack.c.b16 %v2240, %v2239
        %v2273 = vpack.c.b16 %v2242, %v2241
        %v2274 = vpack.c.b16 %v2244, %v2243
        %v2275 = vpack.c.b16 %v2246, %v2245
        %v2276 = vpack.c.b16 %v2248, %v2247
        %v2277 = vpack.c.b16 %v2250, %v2249
        %v2278 = vpack.c.b16 %v2252, %v2251
        %v2279 = vpack.c.b16 %v2254, %v2253
        %v2280 = vpack.c.b16 %v2256, %v2255
        %2305 = vmatpush.bf16.msra.mxu0 %v2264
        %2306 = vmatpush.bf16.msra.mxu0 %v2263
        %2307 = vmatpush.bf16.msra.mxu0 %v2262
        %2308 = vmatpush.bf16.msra.mxu0 %v2261
        %2309 = vmatpush.bf16.msra.mxu0 %v2260
        %2310 = vmatpush.bf16.msra.mxu0 %v2259
        %2311 = vmatpush.bf16.msra.mxu0 %v2258
        %2312 = vmatpush.bf16.msra.mxu0 %v2257
        %2313 = vmatmul.bf16.gmra.mxu0 %v2065
        %v2314 = vpop.f32.mrf.mxu0
        %v2315 = vadd.f32 %v1826, %v2314
        %v2316 = vpop.f32.mrf.mxu0
        %v2317 = vadd.f32 %v1828, %v2316
        %2318 = vmatmul.bf16.gmra.mxu0 %v2068
        %v2319 = vpop.f32.mrf.mxu0
        %v2320 = vadd.f32 %v1831, %v2319
        %v2321 = vpop.f32.mrf.mxu0
        %v2322 = vadd.f32 %v1833, %v2321
        %2323 = vmatmul.bf16.gmra.mxu0 %v2071
        %v2324 = vpop.f32.mrf.mxu0
        %v2325 = vadd.f32 %v1836, %v2324
        %v2326 = vpop.f32.mrf.mxu0
        %v2327 = vadd.f32 %v1838, %v2326
        %2328 = vmatmul.bf16.gmra.mxu0 %v2074
        %v2329 = vpop.f32.mrf.mxu0
        %v2330 = vadd.f32 %v1841, %v2329
        %v2331 = vpop.f32.mrf.mxu0
        %v2332 = vadd.f32 %v1843, %v2331
        %2333 = vmatmul.bf16.gmra.mxu0 %v2077
        %v2334 = vpop.f32.mrf.mxu0
        %v2335 = vadd.f32 %v1846, %v2334
        %v2336 = vpop.f32.mrf.mxu0
        %v2337 = vadd.f32 %v1848, %v2336
        %2338 = vmatmul.bf16.gmra.mxu0 %v2080
        %v2339 = vpop.f32.mrf.mxu0
        %v2340 = vadd.f32 %v1851, %v2339
        %v2341 = vpop.f32.mrf.mxu0
        %v2342 = vadd.f32 %v1853, %v2341
        %2343 = vmatmul.bf16.gmra.mxu0 %v2083
        %v2344 = vpop.f32.mrf.mxu0
        %v2345 = vadd.f32 %v1856, %v2344
        %v2346 = vpop.f32.mrf.mxu0
        %v2347 = vadd.f32 %v1858, %v2346
        %2348 = vmatmul.bf16.gmra.mxu0 %v2086
        %v2349 = vpop.f32.mrf.mxu0
        %v2350 = vadd.f32 %v1861, %v2349
        %v2351 = vpop.f32.mrf.mxu0
        %v2352 = vadd.f32 %v1863, %v2351
        %2353 = vmatmul.bf16.gmra.mxu0 %v2089
        %v2354 = vpop.f32.mrf.mxu0
        %v2355 = vadd.f32 %v1866, %v2354
        %v2356 = vpop.f32.mrf.mxu0
        %v2357 = vadd.f32 %v1868, %v2356
        %2358 = vmatmul.bf16.gmra.mxu0 %v2092
        %v2359 = vpop.f32.mrf.mxu0
        %v2360 = vadd.f32 %v1871, %v2359
        %v2361 = vpop.f32.mrf.mxu0
        %v2362 = vadd.f32 %v1873, %v2361
        %2363 = vmatmul.bf16.gmra.mxu0 %v2095
        %v2364 = vpop.f32.mrf.mxu0
        %v2365 = vadd.f32 %v1876, %v2364
        %v2366 = vpop.f32.mrf.mxu0
        %v2367 = vadd.f32 %v1878, %v2366
        %2368 = vmatmul.bf16.gmra.mxu0 %v2098
        %v2369 = vpop.f32.mrf.mxu0
        %v2370 = vadd.f32 %v1881, %v2369
        %v2371 = vpop.f32.mrf.mxu0
        %v2372 = vadd.f32 %v1883, %v2371
        %2373 = vmatmul.bf16.gmra.mxu0 %v2101
        %v2374 = vpop.f32.mrf.mxu0
        %v2375 = vadd.f32 %v1886, %v2374
        %v2376 = vpop.f32.mrf.mxu0
        %v2377 = vadd.f32 %v1888, %v2376
        %2378 = vmatmul.bf16.gmra.mxu0 %v2104
        %v2379 = vpop.f32.mrf.mxu0
        %v2380 = vadd.f32 %v1891, %v2379
        %v2381 = vpop.f32.mrf.mxu0
        %v2382 = vadd.f32 %v1893, %v2381
        %2383 = vmatmul.bf16.gmra.mxu0 %v2107
        %v2384 = vpop.f32.mrf.mxu0
        %v2385 = vadd.f32 %v1896, %v2384
        %v2386 = vpop.f32.mrf.mxu0
        %v2387 = vadd.f32 %v1898, %v2386
        %2388 = vmatmul.bf16.gmra.mxu0 %v2110
        %v2389 = vpop.f32.mrf.mxu0
        %v2390 = vadd.f32 %v1901, %v2389
        %v2391 = vpop.f32.mrf.mxu0
        %v2392 = vadd.f32 %v1903, %v2391
        %2393 = vdwg.mxu0
        %2394 = vmatpush.bf16.msra.mxu0 %v2272
        %2395 = vmatpush.bf16.msra.mxu0 %v2271
        %2396 = vmatpush.bf16.msra.mxu0 %v2270
        %2397 = vmatpush.bf16.msra.mxu0 %v2269
        %2398 = vmatpush.bf16.msra.mxu0 %v2268
        %2399 = vmatpush.bf16.msra.mxu0 %v2267
        %2400 = vmatpush.bf16.msra.mxu0 %v2266
        %2401 = vmatpush.bf16.msra.mxu0 %v2265
        %2402 = vmatmul.bf16.gmra.mxu0 %v2066
        %v2403 = vpop.f32.mrf.mxu0
        %v2404 = vadd.f32 %v2315, %v2403
        %v2405 = vpop.f32.mrf.mxu0
        %v2406 = vadd.f32 %v2317, %v2405
        %2407 = vmatmul.bf16.gmra.mxu0 %v2069
        %v2408 = vpop.f32.mrf.mxu0
        %v2409 = vadd.f32 %v2320, %v2408
        %v2410 = vpop.f32.mrf.mxu0
        %v2411 = vadd.f32 %v2322, %v2410
        %2412 = vmatmul.bf16.gmra.mxu0 %v2072
        %v2413 = vpop.f32.mrf.mxu0
        %v2414 = vadd.f32 %v2325, %v2413
        %v2415 = vpop.f32.mrf.mxu0
        %v2416 = vadd.f32 %v2327, %v2415
        %2417 = vmatmul.bf16.gmra.mxu0 %v2075
        %v2418 = vpop.f32.mrf.mxu0
        %v2419 = vadd.f32 %v2330, %v2418
        %v2420 = vpop.f32.mrf.mxu0
        %v2421 = vadd.f32 %v2332, %v2420
        %2422 = vmatmul.bf16.gmra.mxu0 %v2078
        %v2423 = vpop.f32.mrf.mxu0
        %v2424 = vadd.f32 %v2335, %v2423
        %v2425 = vpop.f32.mrf.mxu0
        %v2426 = vadd.f32 %v2337, %v2425
        %2427 = vmatmul.bf16.gmra.mxu0 %v2081
        %v2428 = vpop.f32.mrf.mxu0
        %v2429 = vadd.f32 %v2340, %v2428
        %v2430 = vpop.f32.mrf.mxu0
        %v2431 = vadd.f32 %v2342, %v2430
        %2432 = vmatmul.bf16.gmra.mxu0 %v2084
        %v2433 = vpop.f32.mrf.mxu0
        %v2434 = vadd.f32 %v2345, %v2433
        %v2435 = vpop.f32.mrf.mxu0
        %v2436 = vadd.f32 %v2347, %v2435
        %2437 = vmatmul.bf16.gmra.mxu0 %v2087
        %v2438 = vpop.f32.mrf.mxu0
        %v2439 = vadd.f32 %v2350, %v2438
        %v2440 = vpop.f32.mrf.mxu0
        %v2441 = vadd.f32 %v2352, %v2440
        %2442 = vmatmul.bf16.gmra.mxu0 %v2090
        %v2443 = vpop.f32.mrf.mxu0
        %v2444 = vadd.f32 %v2355, %v2443
        %v2445 = vpop.f32.mrf.mxu0
        %v2446 = vadd.f32 %v2357, %v2445
        %2447 = vmatmul.bf16.gmra.mxu0 %v2093
        %v2448 = vpop.f32.mrf.mxu0
        %v2449 = vadd.f32 %v2360, %v2448
        %v2450 = vpop.f32.mrf.mxu0
        %v2451 = vadd.f32 %v2362, %v2450
        %2452 = vmatmul.bf16.gmra.mxu0 %v2096
        %v2453 = vpop.f32.mrf.mxu0
        %v2454 = vadd.f32 %v2365, %v2453
        %v2455 = vpop.f32.mrf.mxu0
        %v2456 = vadd.f32 %v2367, %v2455
        %2457 = vmatmul.bf16.gmra.mxu0 %v2099
        %v2458 = vpop.f32.mrf.mxu0
        %v2459 = vadd.f32 %v2370, %v2458
        %v2460 = vpop.f32.mrf.mxu0
        %v2461 = vadd.f32 %v2372, %v2460
        %2462 = vmatmul.bf16.gmra.mxu0 %v2102
        %v2463 = vpop.f32.mrf.mxu0
        %v2464 = vadd.f32 %v2375, %v2463
        %v2465 = vpop.f32.mrf.mxu0
        %v2466 = vadd.f32 %v2377, %v2465
        %2467 = vmatmul.bf16.gmra.mxu0 %v2105
        %v2468 = vpop.f32.mrf.mxu0
        %v2469 = vadd.f32 %v2380, %v2468
        %v2470 = vpop.f32.mrf.mxu0
        %v2471 = vadd.f32 %v2382, %v2470
        %2472 = vmatmul.bf16.gmra.mxu0 %v2108
        %v2473 = vpop.f32.mrf.mxu0
        %v2474 = vadd.f32 %v2385, %v2473
        %v2475 = vpop.f32.mrf.mxu0
        %v2476 = vadd.f32 %v2387, %v2475
        %2477 = vmatmul.bf16.gmra.mxu0 %v2111
        %v2478 = vpop.f32.mrf.mxu0
        %v2479 = vadd.f32 %v2390, %v2478
        %v2480 = vpop.f32.mrf.mxu0
        %v2481 = vadd.f32 %v2392, %v2480
        %2482 = vdwg.mxu0
        %2483 = vmatpush.bf16.msra.mxu0 %v2280
        %2484 = vmatpush.bf16.msra.mxu0 %v2279
        %2485 = vmatpush.bf16.msra.mxu0 %v2278
        %2486 = vmatpush.bf16.msra.mxu0 %v2277
        %2487 = vmatpush.bf16.msra.mxu0 %v2276
        %2488 = vmatpush.bf16.msra.mxu0 %v2275
        %2489 = vmatpush.bf16.msra.mxu0 %v2274
        %2490 = vmatpush.bf16.msra.mxu0 %v2273
        %2491 = vmatmul.bf16.gmra.mxu0 %v2067
        %v2492 = vpop.f32.mrf.mxu0
        %v2493 = vadd.f32 %v2404, %v2492
        %v2494 = vpop.f32.mrf.mxu0
        %v2495 = vadd.f32 %v2406, %v2494
        %2496 = vmatmul.bf16.gmra.mxu0 %v2070
        %v2497 = vpop.f32.mrf.mxu0
        %v2498 = vadd.f32 %v2409, %v2497
        %v2499 = vpop.f32.mrf.mxu0
        %v2500 = vadd.f32 %v2411, %v2499
        %2501 = vmatmul.bf16.gmra.mxu0 %v2073
        %v2502 = vpop.f32.mrf.mxu0
        %v2503 = vadd.f32 %v2414, %v2502
        %v2504 = vpop.f32.mrf.mxu0
        %v2505 = vadd.f32 %v2416, %v2504
        %2506 = vmatmul.bf16.gmra.mxu0 %v2076
        %v2507 = vpop.f32.mrf.mxu0
        %v2508 = vadd.f32 %v2419, %v2507
        %v2509 = vpop.f32.mrf.mxu0
        %v2510 = vadd.f32 %v2421, %v2509
        %2511 = vmatmul.bf16.gmra.mxu0 %v2079
        %v2512 = vpop.f32.mrf.mxu0
        %v2513 = vadd.f32 %v2424, %v2512
        %v2514 = vpop.f32.mrf.mxu0
        %v2515 = vadd.f32 %v2426, %v2514
        %2516 = vmatmul.bf16.gmra.mxu0 %v2082
        %v2517 = vpop.f32.mrf.mxu0
        %v2518 = vadd.f32 %v2429, %v2517
        %v2519 = vpop.f32.mrf.mxu0
        %v2520 = vadd.f32 %v2431, %v2519
        %2521 = vmatmul.bf16.gmra.mxu0 %v2085
        %v2522 = vpop.f32.mrf.mxu0
        %v2523 = vadd.f32 %v2434, %v2522
        %v2524 = vpop.f32.mrf.mxu0
        %v2525 = vadd.f32 %v2436, %v2524
        %2526 = vmatmul.bf16.gmra.mxu0 %v2088
        %v2527 = vpop.f32.mrf.mxu0
        %v2528 = vadd.f32 %v2439, %v2527
        %v2529 = vpop.f32.mrf.mxu0
        %v2530 = vadd.f32 %v2441, %v2529
        %2531 = vmatmul.bf16.gmra.mxu0 %v2091
        %v2532 = vpop.f32.mrf.mxu0
        %v2533 = vadd.f32 %v2444, %v2532
        %v2534 = vpop.f32.mrf.mxu0
        %v2535 = vadd.f32 %v2446, %v2534
        %2536 = vmatmul.bf16.gmra.mxu0 %v2094
        %v2537 = vpop.f32.mrf.mxu0
        %v2538 = vadd.f32 %v2449, %v2537
        %v2539 = vpop.f32.mrf.mxu0
        %v2540 = vadd.f32 %v2451, %v2539
        %2541 = vmatmul.bf16.gmra.mxu0 %v2097
        %v2542 = vpop.f32.mrf.mxu0
        %v2543 = vadd.f32 %v2454, %v2542
        %v2544 = vpop.f32.mrf.mxu0
        %v2545 = vadd.f32 %v2456, %v2544
        %2546 = vmatmul.bf16.gmra.mxu0 %v2100
        %v2547 = vpop.f32.mrf.mxu0
        %v2548 = vadd.f32 %v2459, %v2547
        %v2549 = vpop.f32.mrf.mxu0
        %v2550 = vadd.f32 %v2461, %v2549
        %2551 = vmatmul.bf16.gmra.mxu0 %v2103
        %v2552 = vpop.f32.mrf.mxu0
        %v2553 = vadd.f32 %v2464, %v2552
        %v2554 = vpop.f32.mrf.mxu0
        %v2555 = vadd.f32 %v2466, %v2554
        %2556 = vmatmul.bf16.gmra.mxu0 %v2106
        %v2557 = vpop.f32.mrf.mxu0
        %v2558 = vadd.f32 %v2469, %v2557
        %v2559 = vpop.f32.mrf.mxu0
        %v2560 = vadd.f32 %v2471, %v2559
        %2561 = vmatmul.bf16.gmra.mxu0 %v2109
        %v2562 = vpop.f32.mrf.mxu0
        %v2563 = vadd.f32 %v2474, %v2562
        %v2564 = vpop.f32.mrf.mxu0
        %v2565 = vadd.f32 %v2476, %v2564
        %2566 = vmatmul.bf16.gmra.mxu0 %v2112
        %v2567 = vpop.f32.mrf.mxu0
        %v2568 = vadd.f32 %v2479, %v2567
        %v2569 = vpop.f32.mrf.mxu0
        %v2570 = vadd.f32 %v2481, %v2569
        %2571 = vdwg.mxu0
        %s2572 = scalar_lea.vmem [#allocation2], 48
        %v2573 = vld [vmem:[%s2572] sm:$0xff]
        %v2574 = vld [vmem:[%s2572 + $0x8] sm:$0xf]
        %v2575 = vld [vmem:[%s2572 + $0xc] sm:$0xff]
        %v2576 = vld [vmem:[%s2572 + $0x14] sm:$0xf]
        %v2577 = vld [vmem:[%s2572 + $0x18] sm:$0xff]
        %v2578 = vld [vmem:[%s2572 + $0x20] sm:$0xf]
        %v2579 = vld [vmem:[%s2572 + $0x24] sm:$0xff]
        %v2580 = vld [vmem:[%s2572 + $0x2c] sm:$0xf]
        %v2581 = vld [vmem:[%s2572 + $0x30] sm:$0xff]
        %v2582 = vld [vmem:[%s2572 + $0x38] sm:$0xf]
        %v2583 = vld [vmem:[%s2572 + $0x3c] sm:$0xff]
        %v2584 = vld [vmem:[%s2572 + $0x44] sm:$0xf]
        %v2585 = vld [vmem:[%s2572 + $0x48] sm:$0xff]
        %v2586 = vld [vmem:[%s2572 + $0x50] sm:$0xf]
        %v2587 = vld [vmem:[%s2572 + $0x54] sm:$0xff]
        %v2588 = vld [vmem:[%s2572 + $0x5c] sm:$0xf]
        %v2589 = vld [vmem:[%s2572 + $0x60] sm:$0xff]
        %v2590 = vld [vmem:[%s2572 + $0x68] sm:$0xf]
        %v2591 = vld [vmem:[%s2572 + $0x6c] sm:$0xff]
        %v2592 = vld [vmem:[%s2572 + $0x74] sm:$0xf]
        %v2593 = vld [vmem:[%s2572 + $0x78] sm:$0xff]
        %v2594 = vld [vmem:[%s2572 + $0x80] sm:$0xf]
        %v2595 = vld [vmem:[%s2572 + $0x84] sm:$0xff]
        %v2596 = vld [vmem:[%s2572 + $0x8c] sm:$0xf]
        %v2597 = vld [vmem:[%s2572 + $0x90] sm:$0xff]
        %v2598 = vld [vmem:[%s2572 + $0x98] sm:$0xf]
        %v2599 = vld [vmem:[%s2572 + $0x9c] sm:$0xff]
        %v2600 = vld [vmem:[%s2572 + $0xa4] sm:$0xf]
        %v2601 = vld [vmem:[%s2572 + $0xa8] sm:$0xff]
        %v2602 = vld [vmem:[%s2572 + $0xb0] sm:$0xf]
        %v2603 = vld [vmem:[%s2572 + $0xb4] sm:$0xff]
        %v2604 = vld [vmem:[%s2572 + $0xbc] sm:$0xf]
        %v2605 = vld [vmem:[%s2572 + $0xc0] sm:$0xff]
        %v2606 = vld [vmem:[%s2572 + $0xc8] sm:$0xf]
        %v2607 = vld [vmem:[%s2572 + $0xcc] sm:$0xff]
        %v2608 = vld [vmem:[%s2572 + $0xd4] sm:$0xf]
        %v2609 = vld [vmem:[%s2572 + $0xd8] sm:$0xff]
        %v2610 = vld [vmem:[%s2572 + $0xe0] sm:$0xf]
        %v2611 = vld [vmem:[%s2572 + $0xe4] sm:$0xff]
        %v2612 = vld [vmem:[%s2572 + $0xec] sm:$0xf]
        %v2613 = vld [vmem:[%s2572 + $0xf0] sm:$0xff]
        %v2614 = vld [vmem:[%s2572 + $0xf8] sm:$0xf]
        %v2615 = vld [vmem:[%s2572 + $0xfc] sm:$0xff]
        %v2616 = vld [vmem:[%s2572 + $0x104] sm:$0xf]
        %v2617 = vld [vmem:[%s2572 + $0x108] sm:$0xff]
        %v2618 = vld [vmem:[%s2572 + $0x110] sm:$0xf]
        %v2619 = vld [vmem:[%s2572 + $0x114] sm:$0xff]
        %v2620 = vld [vmem:[%s2572 + $0x11c] sm:$0xf]
        %v2621 = vld [vmem:[%s2572 + $0x120] sm:$0xff]
        %v2622 = vld [vmem:[%s2572 + $0x128] sm:$0xf]
        %v2623 = vld [vmem:[%s2572 + $0x12c] sm:$0xff]
        %v2624 = vld [vmem:[%s2572 + $0x134] sm:$0xf]
        %v2625 = vld [vmem:[%s2572 + $0x138] sm:$0xff]
        %v2626 = vld [vmem:[%s2572 + $0x140] sm:$0xf]
        %v2627 = vld [vmem:[%s2572 + $0x144] sm:$0xff]
        %v2628 = vld [vmem:[%s2572 + $0x14c] sm:$0xf]
        %v2629 = vld [vmem:[%s2572 + $0x150] sm:$0xff]
        %v2630 = vld [vmem:[%s2572 + $0x158] sm:$0xf]
        %v2631 = vld [vmem:[%s2572 + $0x15c] sm:$0xff]
        %v2632 = vld [vmem:[%s2572 + $0x164] sm:$0xf]
        %v2633 = vld [vmem:[%s2572 + $0x168] sm:$0xff]
        %v2634 = vld [vmem:[%s2572 + $0x170] sm:$0xf]
        %v2635 = vld [vmem:[%s2572 + $0x174] sm:$0xff]
        %v2636 = vld [vmem:[%s2572 + $0x17c] sm:$0xf]
        %s2637 = scalar_lea.vmem %s1, 384
        %v2638 = vld [vmem:[%s2637] sm:$0xf]
        %v2639 = vld [vmem:[%s2637 + $0x4] sm:$0xf]
        %v2640 = vld [vmem:[%s2637 + $0x8] sm:$0xf]
        %v2641 = vld [vmem:[%s2637 + $0xc] sm:$0xf]
        %v2642 = vld [vmem:[%s2637 + $0x10] sm:$0xf]
        %v2643 = vld [vmem:[%s2637 + $0x14] sm:$0xf]
        %v2644 = vld [vmem:[%s2637 + $0x18] sm:$0xf]
        %v2645 = vld [vmem:[%s2637 + $0x1c] sm:$0xf]
        %v2646 = vld [vmem:[%s2637 + $0x20] sm:$0xf]
        %v2647 = vld [vmem:[%s2637 + $0x24] sm:$0xf]
        %v2648 = vld [vmem:[%s2637 + $0x28] sm:$0xf]
        %v2649 = vld [vmem:[%s2637 + $0x2c] sm:$0xf]
        %v2650 = vld [vmem:[%s2637 + $0x30] sm:$0xf]
        %v2651 = vld [vmem:[%s2637 + $0x34] sm:$0xf]
        %v2652 = vld [vmem:[%s2637 + $0x38] sm:$0xf]
        %v2653 = vld [vmem:[%s2637 + $0x3c] sm:$0xf]
        %v2654 = vld [vmem:[%s2637 + $0x40] sm:$0xf]
        %v2655 = vld [vmem:[%s2637 + $0x44] sm:$0xf]
        %v2656 = vld [vmem:[%s2637 + $0x48] sm:$0xf]
        %v2657 = vld [vmem:[%s2637 + $0x4c] sm:$0xf]
        %v2658 = vld [vmem:[%s2637 + $0x50] sm:$0xf]
        %v2659 = vld [vmem:[%s2637 + $0x54] sm:$0xf]
        %v2660 = vld [vmem:[%s2637 + $0x58] sm:$0xf]
        %v2661 = vld [vmem:[%s2637 + $0x5c] sm:$0xf]
        %v2662 = vld [vmem:[%s2637 + $0x60] sm:$0xf]
        %v2663 = vld [vmem:[%s2637 + $0x64] sm:$0xf]
        %v2664 = vld [vmem:[%s2637 + $0x68] sm:$0xf]
        %v2665 = vld [vmem:[%s2637 + $0x6c] sm:$0xf]
        %v2666 = vld [vmem:[%s2637 + $0x70] sm:$0xf]
        %v2667 = vld [vmem:[%s2637 + $0x74] sm:$0xf]
        %v2668 = vld [vmem:[%s2637 + $0x78] sm:$0xf]
        %v2669 = vld [vmem:[%s2637 + $0x7c] sm:$0xf]
        %v2670 = vld [vmem:[%s2637 + $0x80] sm:$0xf]
        %v2671 = vld [vmem:[%s2637 + $0x84] sm:$0xf]
        %v2672 = vld [vmem:[%s2637 + $0x88] sm:$0xf]
        %v2673 = vld [vmem:[%s2637 + $0x8c] sm:$0xf]
        %v2674 = vld [vmem:[%s2637 + $0x90] sm:$0xf]
        %v2675 = vld [vmem:[%s2637 + $0x94] sm:$0xf]
        %v2676 = vld [vmem:[%s2637 + $0x98] sm:$0xf]
        %v2677 = vld [vmem:[%s2637 + $0x9c] sm:$0xf]
        %v2678 = vld [vmem:[%s2637 + $0xa0] sm:$0xf]
        %v2679 = vld [vmem:[%s2637 + $0xa4] sm:$0xf]
        %v2680 = vld [vmem:[%s2637 + $0xa8] sm:$0xf]
        %v2681 = vld [vmem:[%s2637 + $0xac] sm:$0xf]
        %v2682 = vld [vmem:[%s2637 + $0xb0] sm:$0xf]
        %v2683 = vld [vmem:[%s2637 + $0xb4] sm:$0xf]
        %v2684 = vld [vmem:[%s2637 + $0xb8] sm:$0xf]
        %v2685 = vld [vmem:[%s2637 + $0xbc] sm:$0xf]
        %v2750 = vunpack.c.l.b16 %v2573
        %v2751 = vunpack.c.h.b16 %v2573
        %v2752 = vunpack.c.l.b16 %v2574
        %v2753 = vunpack.c.l.b16 %v2575
        %v2754 = vunpack.c.h.b16 %v2575
        %v2755 = vunpack.c.l.b16 %v2576
        %v2756 = vunpack.c.l.b16 %v2577
        %v2757 = vunpack.c.h.b16 %v2577
        %v2758 = vunpack.c.l.b16 %v2578
        %v2759 = vunpack.c.l.b16 %v2579
        %v2760 = vunpack.c.h.b16 %v2579
        %v2761 = vunpack.c.l.b16 %v2580
        %v2762 = vunpack.c.l.b16 %v2581
        %v2763 = vunpack.c.h.b16 %v2581
        %v2764 = vunpack.c.l.b16 %v2582
        %v2765 = vunpack.c.l.b16 %v2583
        %v2766 = vunpack.c.h.b16 %v2583
        %v2767 = vunpack.c.l.b16 %v2584
        %v2768 = vunpack.c.l.b16 %v2585
        %v2769 = vunpack.c.h.b16 %v2585
        %v2770 = vunpack.c.l.b16 %v2586
        %v2771 = vunpack.c.l.b16 %v2587
        %v2772 = vunpack.c.h.b16 %v2587
        %v2773 = vunpack.c.l.b16 %v2588
        %v2774 = vunpack.c.l.b16 %v2589
        %v2775 = vunpack.c.h.b16 %v2589
        %v2776 = vunpack.c.l.b16 %v2590
        %v2777 = vunpack.c.l.b16 %v2591
        %v2778 = vunpack.c.h.b16 %v2591
        %v2779 = vunpack.c.l.b16 %v2592
        %v2780 = vunpack.c.l.b16 %v2593
        %v2781 = vunpack.c.h.b16 %v2593
        %v2782 = vunpack.c.l.b16 %v2594
        %v2783 = vunpack.c.l.b16 %v2595
        %v2784 = vunpack.c.h.b16 %v2595
        %v2785 = vunpack.c.l.b16 %v2596
        %v2786 = vunpack.c.l.b16 %v2597
        %v2787 = vunpack.c.h.b16 %v2597
        %v2788 = vunpack.c.l.b16 %v2598
        %v2789 = vunpack.c.l.b16 %v2599
        %v2790 = vunpack.c.h.b16 %v2599
        %v2791 = vunpack.c.l.b16 %v2600
        %v2792 = vunpack.c.l.b16 %v2601
        %v2793 = vunpack.c.h.b16 %v2601
        %v2794 = vunpack.c.l.b16 %v2602
        %v2795 = vunpack.c.l.b16 %v2603
        %v2796 = vunpack.c.h.b16 %v2603
        %v2797 = vunpack.c.l.b16 %v2604
        %v2798 = vunpack.c.l.b16 %v2605
        %v2799 = vunpack.c.h.b16 %v2605
        %v2800 = vunpack.c.l.b16 %v2606
        %v2801 = vunpack.c.l.b16 %v2607
        %v2802 = vunpack.c.h.b16 %v2607
        %v2803 = vunpack.c.l.b16 %v2608
        %v2804 = vunpack.c.l.b16 %v2609
        %v2805 = vunpack.c.h.b16 %v2609
        %v2806 = vunpack.c.l.b16 %v2610
        %v2807 = vunpack.c.l.b16 %v2611
        %v2808 = vunpack.c.h.b16 %v2611
        %v2809 = vunpack.c.l.b16 %v2612
        %v2810 = vunpack.c.l.b16 %v2613
        %v2811 = vunpack.c.h.b16 %v2613
        %v2812 = vunpack.c.l.b16 %v2614
        %v2813 = vunpack.c.l.b16 %v2615
        %v2814 = vunpack.c.h.b16 %v2615
        %v2815 = vunpack.c.l.b16 %v2616
        %v2816 = vunpack.c.l.b16 %v2617
        %v2817 = vunpack.c.h.b16 %v2617
        %v2818 = vunpack.c.l.b16 %v2618
        %v2819 = vunpack.c.l.b16 %v2619
        %v2820 = vunpack.c.h.b16 %v2619
        %v2821 = vunpack.c.l.b16 %v2620
        %v2822 = vunpack.c.l.b16 %v2621
        %v2823 = vunpack.c.h.b16 %v2621
        %v2824 = vunpack.c.l.b16 %v2622
        %v2825 = vunpack.c.l.b16 %v2623
        %v2826 = vunpack.c.h.b16 %v2623
        %v2827 = vunpack.c.l.b16 %v2624
        %v2828 = vunpack.c.l.b16 %v2625
        %v2829 = vunpack.c.h.b16 %v2625
        %v2830 = vunpack.c.l.b16 %v2626
        %v2831 = vunpack.c.l.b16 %v2627
        %v2832 = vunpack.c.h.b16 %v2627
        %v2833 = vunpack.c.l.b16 %v2628
        %v2834 = vunpack.c.l.b16 %v2629
        %v2835 = vunpack.c.h.b16 %v2629
        %v2836 = vunpack.c.l.b16 %v2630
        %v2837 = vunpack.c.l.b16 %v2631
        %v2838 = vunpack.c.h.b16 %v2631
        %v2839 = vunpack.c.l.b16 %v2632
        %v2840 = vunpack.c.l.b16 %v2633
        %v2841 = vunpack.c.h.b16 %v2633
        %v2842 = vunpack.c.l.b16 %v2634
        %v2843 = vunpack.c.l.b16 %v2635
        %v2844 = vunpack.c.h.b16 %v2635
        %v2845 = vunpack.c.l.b16 %v2636
        %v2846 = vpack.c.b16 %v2753, %v2750
        %v2847 = vpack.c.b16 %v2754, %v2751
        %v2848 = vpack.c.b16 %v2755, %v2752
        %v2849 = vpack.c.b16 %v2759, %v2756
        %v2850 = vpack.c.b16 %v2760, %v2757
        %v2851 = vpack.c.b16 %v2761, %v2758
        %v2852 = vpack.c.b16 %v2765, %v2762
        %v2853 = vpack.c.b16 %v2766, %v2763
        %v2854 = vpack.c.b16 %v2767, %v2764
        %v2855 = vpack.c.b16 %v2771, %v2768
        %v2856 = vpack.c.b16 %v2772, %v2769
        %v2857 = vpack.c.b16 %v2773, %v2770
        %v2858 = vpack.c.b16 %v2777, %v2774
        %v2859 = vpack.c.b16 %v2778, %v2775
        %v2860 = vpack.c.b16 %v2779, %v2776
        %v2861 = vpack.c.b16 %v2783, %v2780
        %v2862 = vpack.c.b16 %v2784, %v2781
        %v2863 = vpack.c.b16 %v2785, %v2782
        %v2864 = vpack.c.b16 %v2789, %v2786
        %v2865 = vpack.c.b16 %v2790, %v2787
        %v2866 = vpack.c.b16 %v2791, %v2788
        %v2867 = vpack.c.b16 %v2795, %v2792
        %v2868 = vpack.c.b16 %v2796, %v2793
        %v2869 = vpack.c.b16 %v2797, %v2794
        %v2870 = vpack.c.b16 %v2801, %v2798
        %v2871 = vpack.c.b16 %v2802, %v2799
        %v2872 = vpack.c.b16 %v2803, %v2800
        %v2873 = vpack.c.b16 %v2807, %v2804
        %v2874 = vpack.c.b16 %v2808, %v2805
        %v2875 = vpack.c.b16 %v2809, %v2806
        %v2876 = vpack.c.b16 %v2813, %v2810
        %v2877 = vpack.c.b16 %v2814, %v2811
        %v2878 = vpack.c.b16 %v2815, %v2812
        %v2879 = vpack.c.b16 %v2819, %v2816
        %v2880 = vpack.c.b16 %v2820, %v2817
        %v2881 = vpack.c.b16 %v2821, %v2818
        %v2882 = vpack.c.b16 %v2825, %v2822
        %v2883 = vpack.c.b16 %v2826, %v2823
        %v2884 = vpack.c.b16 %v2827, %v2824
        %v2885 = vpack.c.b16 %v2831, %v2828
        %v2886 = vpack.c.b16 %v2832, %v2829
        %v2887 = vpack.c.b16 %v2833, %v2830
        %v2888 = vpack.c.b16 %v2837, %v2834
        %v2889 = vpack.c.b16 %v2838, %v2835
        %v2890 = vpack.c.b16 %v2839, %v2836
        %v2891 = vpack.c.b16 %v2843, %v2840
        %v2892 = vpack.c.b16 %v2844, %v2841
        %v2893 = vpack.c.b16 %v2845, %v2842
        %v2990 = vunpack.c.l.b16 %v2638
        %v2991 = vunpack.c.l.b16 %v2639
        %v2992 = vunpack.c.l.b16 %v2640
        %v2993 = vunpack.c.l.b16 %v2641
        %v2994 = vunpack.c.l.b16 %v2642
        %v2995 = vunpack.c.l.b16 %v2643
        %v2996 = vunpack.c.l.b16 %v2644
        %v2997 = vunpack.c.l.b16 %v2645
        %v2998 = vunpack.c.l.b16 %v2646
        %v2999 = vunpack.c.l.b16 %v2647
        %v3000 = vunpack.c.l.b16 %v2648
        %v3001 = vunpack.c.l.b16 %v2649
        %v3002 = vunpack.c.l.b16 %v2650
        %v3003 = vunpack.c.l.b16 %v2651
        %v3004 = vunpack.c.l.b16 %v2652
        %v3005 = vunpack.c.l.b16 %v2653
        %v3006 = vunpack.c.l.b16 %v2654
        %v3007 = vunpack.c.l.b16 %v2655
        %v3008 = vunpack.c.l.b16 %v2656
        %v3009 = vunpack.c.l.b16 %v2657
        %v3010 = vunpack.c.l.b16 %v2658
        %v3011 = vunpack.c.l.b16 %v2659
        %v3012 = vunpack.c.l.b16 %v2660
        %v3013 = vunpack.c.l.b16 %v2661
        %v3014 = vunpack.c.l.b16 %v2662
        %v3015 = vunpack.c.l.b16 %v2663
        %v3016 = vunpack.c.l.b16 %v2664
        %v3017 = vunpack.c.l.b16 %v2665
        %v3018 = vunpack.c.l.b16 %v2666
        %v3019 = vunpack.c.l.b16 %v2667
        %v3020 = vunpack.c.l.b16 %v2668
        %v3021 = vunpack.c.l.b16 %v2669
        %v3022 = vunpack.c.l.b16 %v2670
        %v3023 = vunpack.c.l.b16 %v2671
        %v3024 = vunpack.c.l.b16 %v2672
        %v3025 = vunpack.c.l.b16 %v2673
        %v3026 = vunpack.c.l.b16 %v2674
        %v3027 = vunpack.c.l.b16 %v2675
        %v3028 = vunpack.c.l.b16 %v2676
        %v3029 = vunpack.c.l.b16 %v2677
        %v3030 = vunpack.c.l.b16 %v2678
        %v3031 = vunpack.c.l.b16 %v2679
        %v3032 = vunpack.c.l.b16 %v2680
        %v3033 = vunpack.c.l.b16 %v2681
        %v3034 = vunpack.c.l.b16 %v2682
        %v3035 = vunpack.c.l.b16 %v2683
        %v3036 = vunpack.c.l.b16 %v2684
        %v3037 = vunpack.c.l.b16 %v2685
        %v3038 = vpack.c.b16 %v2991, %v2990
        %v3039 = vpack.c.b16 %v2993, %v2992
        %v3040 = vpack.c.b16 %v2995, %v2994
        %v3041 = vpack.c.b16 %v2997, %v2996
        %v3042 = vpack.c.b16 %v2999, %v2998
        %v3043 = vpack.c.b16 %v3001, %v3000
        %v3044 = vpack.c.b16 %v3003, %v3002
        %v3045 = vpack.c.b16 %v3005, %v3004
        %v3046 = vpack.c.b16 %v3007, %v3006
        %v3047 = vpack.c.b16 %v3009, %v3008
        %v3048 = vpack.c.b16 %v3011, %v3010
        %v3049 = vpack.c.b16 %v3013, %v3012
        %v3050 = vpack.c.b16 %v3015, %v3014
        %v3051 = vpack.c.b16 %v3017, %v3016
        %v3052 = vpack.c.b16 %v3019, %v3018
        %v3053 = vpack.c.b16 %v3021, %v3020
        %v3054 = vpack.c.b16 %v3023, %v3022
        %v3055 = vpack.c.b16 %v3025, %v3024
        %v3056 = vpack.c.b16 %v3027, %v3026
        %v3057 = vpack.c.b16 %v3029, %v3028
        %v3058 = vpack.c.b16 %v3031, %v3030
        %v3059 = vpack.c.b16 %v3033, %v3032
        %v3060 = vpack.c.b16 %v3035, %v3034
        %v3061 = vpack.c.b16 %v3037, %v3036
        %3086 = vmatpush.bf16.msra.mxu0 %v3045
        %3087 = vmatpush.bf16.msra.mxu0 %v3044
        %3088 = vmatpush.bf16.msra.mxu0 %v3043
        %3089 = vmatpush.bf16.msra.mxu0 %v3042
        %3090 = vmatpush.bf16.msra.mxu0 %v3041
        %3091 = vmatpush.bf16.msra.mxu0 %v3040
        %3092 = vmatpush.bf16.msra.mxu0 %v3039
        %3093 = vmatpush.bf16.msra.mxu0 %v3038
        %3094 = vmatmul.bf16.gmra.mxu0 %v2846
        %v3095 = vpop.f32.mrf.mxu0
        %v3096 = vadd.f32 0.0, %v3095
        %v3097 = vpop.f32.mrf.mxu0
        %v3098 = vadd.f32 0.0, %v3097
        %3099 = vmatmul.bf16.gmra.mxu0 %v2849
        %v3100 = vpop.f32.mrf.mxu0
        %v3101 = vadd.f32 0.0, %v3100
        %v3102 = vpop.f32.mrf.mxu0
        %v3103 = vadd.f32 0.0, %v3102
        %3104 = vmatmul.bf16.gmra.mxu0 %v2852
        %v3105 = vpop.f32.mrf.mxu0
        %v3106 = vadd.f32 0.0, %v3105
        %v3107 = vpop.f32.mrf.mxu0
        %v3108 = vadd.f32 0.0, %v3107
        %3109 = vmatmul.bf16.gmra.mxu0 %v2855
        %v3110 = vpop.f32.mrf.mxu0
        %v3111 = vadd.f32 0.0, %v3110
        %v3112 = vpop.f32.mrf.mxu0
        %v3113 = vadd.f32 0.0, %v3112
        %3114 = vmatmul.bf16.gmra.mxu0 %v2858
        %v3115 = vpop.f32.mrf.mxu0
        %v3116 = vadd.f32 0.0, %v3115
        %v3117 = vpop.f32.mrf.mxu0
        %v3118 = vadd.f32 0.0, %v3117
        %3119 = vmatmul.bf16.gmra.mxu0 %v2861
        %v3120 = vpop.f32.mrf.mxu0
        %v3121 = vadd.f32 0.0, %v3120
        %v3122 = vpop.f32.mrf.mxu0
        %v3123 = vadd.f32 0.0, %v3122
        %3124 = vmatmul.bf16.gmra.mxu0 %v2864
        %v3125 = vpop.f32.mrf.mxu0
        %v3126 = vadd.f32 0.0, %v3125
        %v3127 = vpop.f32.mrf.mxu0
        %v3128 = vadd.f32 0.0, %v3127
        %3129 = vmatmul.bf16.gmra.mxu0 %v2867
        %v3130 = vpop.f32.mrf.mxu0
        %v3131 = vadd.f32 0.0, %v3130
        %v3132 = vpop.f32.mrf.mxu0
        %v3133 = vadd.f32 0.0, %v3132
        %3134 = vmatmul.bf16.gmra.mxu0 %v2870
        %v3135 = vpop.f32.mrf.mxu0
        %v3136 = vadd.f32 0.0, %v3135
        %v3137 = vpop.f32.mrf.mxu0
        %v3138 = vadd.f32 0.0, %v3137
        %3139 = vmatmul.bf16.gmra.mxu0 %v2873
        %v3140 = vpop.f32.mrf.mxu0
        %v3141 = vadd.f32 0.0, %v3140
        %v3142 = vpop.f32.mrf.mxu0
        %v3143 = vadd.f32 0.0, %v3142
        %3144 = vmatmul.bf16.gmra.mxu0 %v2876
        %v3145 = vpop.f32.mrf.mxu0
        %v3146 = vadd.f32 0.0, %v3145
        %v3147 = vpop.f32.mrf.mxu0
        %v3148 = vadd.f32 0.0, %v3147
        %3149 = vmatmul.bf16.gmra.mxu0 %v2879
        %v3150 = vpop.f32.mrf.mxu0
        %v3151 = vadd.f32 0.0, %v3150
        %v3152 = vpop.f32.mrf.mxu0
        %v3153 = vadd.f32 0.0, %v3152
        %3154 = vmatmul.bf16.gmra.mxu0 %v2882
        %v3155 = vpop.f32.mrf.mxu0
        %v3156 = vadd.f32 0.0, %v3155
        %v3157 = vpop.f32.mrf.mxu0
        %v3158 = vadd.f32 0.0, %v3157
        %3159 = vmatmul.bf16.gmra.mxu0 %v2885
        %v3160 = vpop.f32.mrf.mxu0
        %v3161 = vadd.f32 0.0, %v3160
        %v3162 = vpop.f32.mrf.mxu0
        %v3163 = vadd.f32 0.0, %v3162
        %3164 = vmatmul.bf16.gmra.mxu0 %v2888
        %v3165 = vpop.f32.mrf.mxu0
        %v3166 = vadd.f32 0.0, %v3165
        %v3167 = vpop.f32.mrf.mxu0
        %v3168 = vadd.f32 0.0, %v3167
        %3169 = vmatmul.bf16.gmra.mxu0 %v2891
        %v3170 = vpop.f32.mrf.mxu0
        %v3171 = vadd.f32 0.0, %v3170
        %v3172 = vpop.f32.mrf.mxu0
        %v3173 = vadd.f32 0.0, %v3172
        %3174 = vdwg.mxu0
        %3175 = vmatpush.bf16.msra.mxu0 %v3053
        %3176 = vmatpush.bf16.msra.mxu0 %v3052
        %3177 = vmatpush.bf16.msra.mxu0 %v3051
        %3178 = vmatpush.bf16.msra.mxu0 %v3050
        %3179 = vmatpush.bf16.msra.mxu0 %v3049
        %3180 = vmatpush.bf16.msra.mxu0 %v3048
        %3181 = vmatpush.bf16.msra.mxu0 %v3047
        %3182 = vmatpush.bf16.msra.mxu0 %v3046
        %3183 = vmatmul.bf16.gmra.mxu0 %v2847
        %v3184 = vpop.f32.mrf.mxu0
        %v3185 = vadd.f32 %v3096, %v3184
        %v3186 = vpop.f32.mrf.mxu0
        %v3187 = vadd.f32 %v3098, %v3186
        %3188 = vmatmul.bf16.gmra.mxu0 %v2850
        %v3189 = vpop.f32.mrf.mxu0
        %v3190 = vadd.f32 %v3101, %v3189
        %v3191 = vpop.f32.mrf.mxu0
        %v3192 = vadd.f32 %v3103, %v3191
        %3193 = vmatmul.bf16.gmra.mxu0 %v2853
        %v3194 = vpop.f32.mrf.mxu0
        %v3195 = vadd.f32 %v3106, %v3194
        %v3196 = vpop.f32.mrf.mxu0
        %v3197 = vadd.f32 %v3108, %v3196
        %3198 = vmatmul.bf16.gmra.mxu0 %v2856
        %v3199 = vpop.f32.mrf.mxu0
        %v3200 = vadd.f32 %v3111, %v3199
        %v3201 = vpop.f32.mrf.mxu0
        %v3202 = vadd.f32 %v3113, %v3201
        %3203 = vmatmul.bf16.gmra.mxu0 %v2859
        %v3204 = vpop.f32.mrf.mxu0
        %v3205 = vadd.f32 %v3116, %v3204
        %v3206 = vpop.f32.mrf.mxu0
        %v3207 = vadd.f32 %v3118, %v3206
        %3208 = vmatmul.bf16.gmra.mxu0 %v2862
        %v3209 = vpop.f32.mrf.mxu0
        %v3210 = vadd.f32 %v3121, %v3209
        %v3211 = vpop.f32.mrf.mxu0
        %v3212 = vadd.f32 %v3123, %v3211
        %3213 = vmatmul.bf16.gmra.mxu0 %v2865
        %v3214 = vpop.f32.mrf.mxu0
        %v3215 = vadd.f32 %v3126, %v3214
        %v3216 = vpop.f32.mrf.mxu0
        %v3217 = vadd.f32 %v3128, %v3216
        %3218 = vmatmul.bf16.gmra.mxu0 %v2868
        %v3219 = vpop.f32.mrf.mxu0
        %v3220 = vadd.f32 %v3131, %v3219
        %v3221 = vpop.f32.mrf.mxu0
        %v3222 = vadd.f32 %v3133, %v3221
        %3223 = vmatmul.bf16.gmra.mxu0 %v2871
        %v3224 = vpop.f32.mrf.mxu0
        %v3225 = vadd.f32 %v3136, %v3224
        %v3226 = vpop.f32.mrf.mxu0
        %v3227 = vadd.f32 %v3138, %v3226
        %3228 = vmatmul.bf16.gmra.mxu0 %v2874
        %v3229 = vpop.f32.mrf.mxu0
        %v3230 = vadd.f32 %v3141, %v3229
        %v3231 = vpop.f32.mrf.mxu0
        %v3232 = vadd.f32 %v3143, %v3231
        %3233 = vmatmul.bf16.gmra.mxu0 %v2877
        %v3234 = vpop.f32.mrf.mxu0
        %v3235 = vadd.f32 %v3146, %v3234
        %v3236 = vpop.f32.mrf.mxu0
        %v3237 = vadd.f32 %v3148, %v3236
        %3238 = vmatmul.bf16.gmra.mxu0 %v2880
        %v3239 = vpop.f32.mrf.mxu0
        %v3240 = vadd.f32 %v3151, %v3239
        %v3241 = vpop.f32.mrf.mxu0
        %v3242 = vadd.f32 %v3153, %v3241
        %3243 = vmatmul.bf16.gmra.mxu0 %v2883
        %v3244 = vpop.f32.mrf.mxu0
        %v3245 = vadd.f32 %v3156, %v3244
        %v3246 = vpop.f32.mrf.mxu0
        %v3247 = vadd.f32 %v3158, %v3246
        %3248 = vmatmul.bf16.gmra.mxu0 %v2886
        %v3249 = vpop.f32.mrf.mxu0
        %v3250 = vadd.f32 %v3161, %v3249
        %v3251 = vpop.f32.mrf.mxu0
        %v3252 = vadd.f32 %v3163, %v3251
        %3253 = vmatmul.bf16.gmra.mxu0 %v2889
        %v3254 = vpop.f32.mrf.mxu0
        %v3255 = vadd.f32 %v3166, %v3254
        %v3256 = vpop.f32.mrf.mxu0
        %v3257 = vadd.f32 %v3168, %v3256
        %3258 = vmatmul.bf16.gmra.mxu0 %v2892
        %v3259 = vpop.f32.mrf.mxu0
        %v3260 = vadd.f32 %v3171, %v3259
        %v3261 = vpop.f32.mrf.mxu0
        %v3262 = vadd.f32 %v3173, %v3261
        %3263 = vdwg.mxu0
        %3264 = vmatpush.bf16.msra.mxu0 %v3061
        %3265 = vmatpush.bf16.msra.mxu0 %v3060
        %3266 = vmatpush.bf16.msra.mxu0 %v3059
        %3267 = vmatpush.bf16.msra.mxu0 %v3058
        %3268 = vmatpush.bf16.msra.mxu0 %v3057
        %3269 = vmatpush.bf16.msra.mxu0 %v3056
        %3270 = vmatpush.bf16.msra.mxu0 %v3055
        %3271 = vmatpush.bf16.msra.mxu0 %v3054
        %3272 = vmatmul.bf16.gmra.mxu0 %v2848
        %v3273 = vpop.f32.mrf.mxu0
        %v3274 = vadd.f32 %v3185, %v3273
        %v3275 = vpop.f32.mrf.mxu0
        %v3276 = vadd.f32 %v3187, %v3275
        %3277 = vmatmul.bf16.gmra.mxu0 %v2851
        %v3278 = vpop.f32.mrf.mxu0
        %v3279 = vadd.f32 %v3190, %v3278
        %v3280 = vpop.f32.mrf.mxu0
        %v3281 = vadd.f32 %v3192, %v3280
        %3282 = vmatmul.bf16.gmra.mxu0 %v2854
        %v3283 = vpop.f32.mrf.mxu0
        %v3284 = vadd.f32 %v3195, %v3283
        %v3285 = vpop.f32.mrf.mxu0
        %v3286 = vadd.f32 %v3197, %v3285
        %3287 = vmatmul.bf16.gmra.mxu0 %v2857
        %v3288 = vpop.f32.mrf.mxu0
        %v3289 = vadd.f32 %v3200, %v3288
        %v3290 = vpop.f32.mrf.mxu0
        %v3291 = vadd.f32 %v3202, %v3290
        %3292 = vmatmul.bf16.gmra.mxu0 %v2860
        %v3293 = vpop.f32.mrf.mxu0
        %v3294 = vadd.f32 %v3205, %v3293
        %v3295 = vpop.f32.mrf.mxu0
        %v3296 = vadd.f32 %v3207, %v3295
        %3297 = vmatmul.bf16.gmra.mxu0 %v2863
        %v3298 = vpop.f32.mrf.mxu0
        %v3299 = vadd.f32 %v3210, %v3298
        %v3300 = vpop.f32.mrf.mxu0
        %v3301 = vadd.f32 %v3212, %v3300
        %3302 = vmatmul.bf16.gmra.mxu0 %v2866
        %v3303 = vpop.f32.mrf.mxu0
        %v3304 = vadd.f32 %v3215, %v3303
        %v3305 = vpop.f32.mrf.mxu0
        %v3306 = vadd.f32 %v3217, %v3305
        %3307 = vmatmul.bf16.gmra.mxu0 %v2869
        %v3308 = vpop.f32.mrf.mxu0
        %v3309 = vadd.f32 %v3220, %v3308
        %v3310 = vpop.f32.mrf.mxu0
        %v3311 = vadd.f32 %v3222, %v3310
        %3312 = vmatmul.bf16.gmra.mxu0 %v2872
        %v3313 = vpop.f32.mrf.mxu0
        %v3314 = vadd.f32 %v3225, %v3313
        %v3315 = vpop.f32.mrf.mxu0
        %v3316 = vadd.f32 %v3227, %v3315
        %3317 = vmatmul.bf16.gmra.mxu0 %v2875
        %v3318 = vpop.f32.mrf.mxu0
        %v3319 = vadd.f32 %v3230, %v3318
        %v3320 = vpop.f32.mrf.mxu0
        %v3321 = vadd.f32 %v3232, %v3320
        %3322 = vmatmul.bf16.gmra.mxu0 %v2878
        %v3323 = vpop.f32.mrf.mxu0
        %v3324 = vadd.f32 %v3235, %v3323
        %v3325 = vpop.f32.mrf.mxu0
        %v3326 = vadd.f32 %v3237, %v3325
        %3327 = vmatmul.bf16.gmra.mxu0 %v2881
        %v3328 = vpop.f32.mrf.mxu0
        %v3329 = vadd.f32 %v3240, %v3328
        %v3330 = vpop.f32.mrf.mxu0
        %v3331 = vadd.f32 %v3242, %v3330
        %3332 = vmatmul.bf16.gmra.mxu0 %v2884
        %v3333 = vpop.f32.mrf.mxu0
        %v3334 = vadd.f32 %v3245, %v3333
        %v3335 = vpop.f32.mrf.mxu0
        %v3336 = vadd.f32 %v3247, %v3335
        %3337 = vmatmul.bf16.gmra.mxu0 %v2887
        %v3338 = vpop.f32.mrf.mxu0
        %v3339 = vadd.f32 %v3250, %v3338
        %v3340 = vpop.f32.mrf.mxu0
        %v3341 = vadd.f32 %v3252, %v3340
        %3342 = vmatmul.bf16.gmra.mxu0 %v2890
        %v3343 = vpop.f32.mrf.mxu0
        %v3344 = vadd.f32 %v3255, %v3343
        %v3345 = vpop.f32.mrf.mxu0
        %v3346 = vadd.f32 %v3257, %v3345
        %3347 = vmatmul.bf16.gmra.mxu0 %v2893
        %v3348 = vpop.f32.mrf.mxu0
        %v3349 = vadd.f32 %v3260, %v3348
        %v3350 = vpop.f32.mrf.mxu0
        %v3351 = vadd.f32 %v3262, %v3350
        %3352 = vdwg.mxu0
        %v3353 = vadd.f32 %v2493, %v3274
        %v3354 = vadd.f32 %v2495, %v3276
        %v3355 = vadd.f32 %v2498, %v3279
        %v3356 = vadd.f32 %v2500, %v3281
        %v3357 = vadd.f32 %v2503, %v3284
        %v3358 = vadd.f32 %v2505, %v3286
        %v3359 = vadd.f32 %v2508, %v3289
        %v3360 = vadd.f32 %v2510, %v3291
        %v3361 = vadd.f32 %v2513, %v3294
        %v3362 = vadd.f32 %v2515, %v3296
        %v3363 = vadd.f32 %v2518, %v3299
        %v3364 = vadd.f32 %v2520, %v3301
        %v3365 = vadd.f32 %v2523, %v3304
        %v3366 = vadd.f32 %v2525, %v3306
        %v3367 = vadd.f32 %v2528, %v3309
        %v3368 = vadd.f32 %v2530, %v3311
        %v3369 = vadd.f32 %v2533, %v3314
        %v3370 = vadd.f32 %v2535, %v3316
        %v3371 = vadd.f32 %v2538, %v3319
        %v3372 = vadd.f32 %v2540, %v3321
        %v3373 = vadd.f32 %v2543, %v3324
        %v3374 = vadd.f32 %v2545, %v3326
        %v3375 = vadd.f32 %v2548, %v3329
        %v3376 = vadd.f32 %v2550, %v3331
        %v3377 = vadd.f32 %v2553, %v3334
        %v3378 = vadd.f32 %v2555, %v3336
        %v3379 = vadd.f32 %v2558, %v3339
        %v3380 = vadd.f32 %v2560, %v3341
        %v3381 = vadd.f32 %v2563, %v3344
        %v3382 = vadd.f32 %v2565, %v3346
        %v3383 = vadd.f32 %v2568, %v3349
        %v3384 = vadd.f32 %v2570, %v3351
        %v3385 = vld [vmem:[%s2] sm:$0x1]
        %v3387 = vperm.slane %v3385, 0
        %v3389 = vadd.f32 %v3353, %v3387
        %v3390 = vadd.f32 %v3354, %v3387
        %v3391 = vadd.f32 %v3355, %v3387
        %v3392 = vadd.f32 %v3356, %v3387
        %v3393 = vadd.f32 %v3357, %v3387
        %v3394 = vadd.f32 %v3358, %v3387
        %v3395 = vadd.f32 %v3359, %v3387
        %v3396 = vadd.f32 %v3360, %v3387
        %v3397 = vadd.f32 %v3361, %v3387
        %v3398 = vadd.f32 %v3362, %v3387
        %v3399 = vadd.f32 %v3363, %v3387
        %v3400 = vadd.f32 %v3364, %v3387
        %v3401 = vadd.f32 %v3365, %v3387
        %v3402 = vadd.f32 %v3366, %v3387
        %v3403 = vadd.f32 %v3367, %v3387
        %v3404 = vadd.f32 %v3368, %v3387
        %v3405 = vadd.f32 %v3369, %v3387
        %v3406 = vadd.f32 %v3370, %v3387
        %v3407 = vadd.f32 %v3371, %v3387
        %v3408 = vadd.f32 %v3372, %v3387
        %v3409 = vadd.f32 %v3373, %v3387
        %v3410 = vadd.f32 %v3374, %v3387
        %v3411 = vadd.f32 %v3375, %v3387
        %v3412 = vadd.f32 %v3376, %v3387
        %v3413 = vadd.f32 %v3377, %v3387
        %v3414 = vadd.f32 %v3378, %v3387
        %v3415 = vadd.f32 %v3379, %v3387
        %v3416 = vadd.f32 %v3380, %v3387
        %v3417 = vadd.f32 %v3381, %v3387
        %v3418 = vadd.f32 %v3382, %v3387
        %v3419 = vadd.f32 %v3383, %v3387
        %v3420 = vadd.f32 %v3384, %v3387
        %v3421 = vlaneseq
        %v3422 = vand.u32 %v3421, 127
        %vm3423 = vcmp.lt.s32.totalorder %v3422, 96
        %v3424 = vxor.u32 %v3389, 2147483648
        %v3425 = vxor.u32 %v3390, 2147483648
        %v3426 = vxor.u32 %v3391, 2147483648
        %v3427 = vxor.u32 %v3392, 2147483648
        %v3428 = vxor.u32 %v3393, 2147483648
        %v3429 = vxor.u32 %v3394, 2147483648
        %v3430 = vxor.u32 %v3395, 2147483648
        %v3431 = vxor.u32 %v3396, 2147483648
        %v3432 = vxor.u32 %v3397, 2147483648
        %v3433 = vxor.u32 %v3398, 2147483648
        %v3434 = vxor.u32 %v3399, 2147483648
        %v3435 = vxor.u32 %v3400, 2147483648
        %v3436 = vxor.u32 %v3401, 2147483648
        %v3437 = vxor.u32 %v3402, 2147483648
        %v3438 = vxor.u32 %v3403, 2147483648
        %v3439 = vxor.u32 %v3404, 2147483648
        %v3440 = vxor.u32 %v3405, 2147483648
        %v3441 = vxor.u32 %v3406, 2147483648
        %v3442 = vxor.u32 %v3407, 2147483648
        %v3443 = vxor.u32 %v3408, 2147483648
        %v3444 = vxor.u32 %v3409, 2147483648
        %v3445 = vxor.u32 %v3410, 2147483648
        %v3446 = vxor.u32 %v3411, 2147483648
        %v3447 = vxor.u32 %v3412, 2147483648
        %v3448 = vxor.u32 %v3413, 2147483648
        %v3449 = vxor.u32 %v3414, 2147483648
        %v3450 = vxor.u32 %v3415, 2147483648
        %v3451 = vxor.u32 %v3416, 2147483648
        %v3452 = vxor.u32 %v3417, 2147483648
        %v3453 = vxor.u32 %v3418, 2147483648
        %v3454 = vxor.u32 %v3419, 2147483648
        %v3455 = vxor.u32 %v3420, 2147483648
        %v3456 = vmul.f32 %v3424, 1.442695
        %v3457 = vpow.pop %v3456
        %v3458 = vmul.f32 %v3425, 1.442695
        %v3459 = vpow.pop %v3458
        %v3460 = vmul.f32 %v3426, 1.442695
        %v3461 = vpow.pop %v3460
        %v3462 = vmul.f32 %v3427, 1.442695
        %v3463 = vpow.pop %v3462
        %v3464 = vmul.f32 %v3428, 1.442695
        %v3465 = vpow.pop %v3464
        %v3466 = vmul.f32 %v3429, 1.442695
        %v3467 = vpow.pop %v3466
        %v3468 = vmul.f32 %v3430, 1.442695
        %v3469 = vpow.pop %v3468
        %v3470 = vmul.f32 %v3431, 1.442695
        %v3471 = vpow.pop %v3470
        %v3472 = vmul.f32 %v3432, 1.442695
        %v3473 = vpow.pop %v3472
        %v3474 = vmul.f32 %v3433, 1.442695
        %v3475 = vpow.pop %v3474
        %v3476 = vmul.f32 %v3434, 1.442695
        %v3477 = vpow.pop %v3476
        %v3478 = vmul.f32 %v3435, 1.442695
        %v3479 = vpow.pop %v3478
        %v3480 = vmul.f32 %v3436, 1.442695
        %v3481 = vpow.pop %v3480
        %v3482 = vmul.f32 %v3437, 1.442695
        %v3483 = vpow.pop %v3482
        %v3484 = vmul.f32 %v3438, 1.442695
        %v3485 = vpow.pop %v3484
        %v3486 = vmul.f32 %v3439, 1.442695
        %v3487 = vpow.pop %v3486
        %v3488 = vmul.f32 %v3440, 1.442695
        %v3489 = vpow.pop %v3488
        %v3490 = vmul.f32 %v3441, 1.442695
        %v3491 = vpow.pop %v3490
        %v3492 = vmul.f32 %v3442, 1.442695
        %v3493 = vpow.pop %v3492
        %v3494 = vmul.f32 %v3443, 1.442695
        %v3495 = vpow.pop %v3494
        %v3496 = vmul.f32 %v3444, 1.442695
        %v3497 = vpow.pop %v3496
        %v3498 = vmul.f32 %v3445, 1.442695
        %v3499 = vpow.pop %v3498
        %v3500 = vmul.f32 %v3446, 1.442695
        %v3501 = vpow.pop %v3500
        %v3502 = vmul.f32 %v3447, 1.442695
        %v3503 = vpow.pop %v3502
        %v3504 = vmul.f32 %v3448, 1.442695
        %v3505 = vpow.pop %v3504
        %v3506 = vmul.f32 %v3449, 1.442695
        %v3507 = vpow.pop %v3506
        %v3508 = vmul.f32 %v3450, 1.442695
        %v3509 = vpow.pop %v3508
        %v3510 = vmul.f32 %v3451, 1.442695
        %v3511 = vpow.pop %v3510
        %v3512 = vmul.f32 %v3452, 1.442695
        %v3513 = vpow.pop %v3512
        %v3514 = vmul.f32 %v3453, 1.442695
        %v3515 = vpow.pop %v3514
        %v3516 = vmul.f32 %v3454, 1.442695
        %v3517 = vpow.pop %v3516
        %v3518 = vmul.f32 %v3455, 1.442695
        %v3519 = vpow.pop %v3518
        %v3520 = vadd.f32 %v3457, 1.0
        %v3521 = vadd.f32 %v3459, 1.0
        %v3522 = vadd.f32 %v3461, 1.0
        %v3523 = vadd.f32 %v3463, 1.0
        %v3524 = vadd.f32 %v3465, 1.0
        %v3525 = vadd.f32 %v3467, 1.0
        %v3526 = vadd.f32 %v3469, 1.0
        %v3527 = vadd.f32 %v3471, 1.0
        %v3528 = vadd.f32 %v3473, 1.0
        %v3529 = vadd.f32 %v3475, 1.0
        %v3530 = vadd.f32 %v3477, 1.0
        %v3531 = vadd.f32 %v3479, 1.0
        %v3532 = vadd.f32 %v3481, 1.0
        %v3533 = vadd.f32 %v3483, 1.0
        %v3534 = vadd.f32 %v3485, 1.0
        %v3535 = vadd.f32 %v3487, 1.0
        %v3536 = vadd.f32 %v3489, 1.0
        %v3537 = vadd.f32 %v3491, 1.0
        %v3538 = vadd.f32 %v3493, 1.0
        %v3539 = vadd.f32 %v3495, 1.0
        %v3540 = vadd.f32 %v3497, 1.0
        %v3541 = vadd.f32 %v3499, 1.0
        %v3542 = vadd.f32 %v3501, 1.0
        %v3543 = vadd.f32 %v3503, 1.0
        %v3544 = vadd.f32 %v3505, 1.0
        %v3545 = vadd.f32 %v3507, 1.0
        %v3546 = vadd.f32 %v3509, 1.0
        %v3547 = vadd.f32 %v3511, 1.0
        %v3548 = vadd.f32 %v3513, 1.0
        %v3549 = vadd.f32 %v3515, 1.0
        %v3550 = vadd.f32 %v3517, 1.0
        %v3551 = vadd.f32 %v3519, 1.0
        %v3552 = vrcp.pop %v3520
        %v3553 = vmul.f32 %v3520, %v3552
        %v3554 = vsub.f32 1.0, %v3553
        %v3555 = vmul.f32 %v3552, %v3554
        %v3556 = vadd.f32 %v3552, %v3555
        %vm3557 = vweird.f32 %v3520
        %vm3558 = vweird.f32 %v3552
        %vm3559 = vmor %vm3557, %vm3558
        %v3560 = vsel %vm3559, %v3552, %v3556
        %v3561 = vand.u32 2147483647, %v3520
        %vm3562 = vcmp.eq.f32.partialorder %v3561, 8.507059e+37
        %v3563 = vand.u32 %v3520, 2147483648
        %v3564 = vor.u32 1.1754944e-38, %v3563
        %v3565 = vsel %vm3562, %v3564, %v3560
        %v3566 = vmul.f32 1.0, %v3565
        %v3567 = vrcp.pop %v3521
        %v3568 = vmul.f32 %v3521, %v3567
        %v3569 = vsub.f32 1.0, %v3568
        %v3570 = vmul.f32 %v3567, %v3569
        %v3571 = vadd.f32 %v3567, %v3570
        %vm3572 = vweird.f32 %v3521
        %vm3573 = vweird.f32 %v3567
        %vm3574 = vmor %vm3572, %vm3573
        %v3575 = vsel %vm3574, %v3567, %v3571
        %v3576 = vand.u32 2147483647, %v3521
        %vm3577 = vcmp.eq.f32.partialorder %v3576, 8.507059e+37
        %v3578 = vand.u32 %v3521, 2147483648
        %v3579 = vor.u32 1.1754944e-38, %v3578
        %v3580 = vsel %vm3577, %v3579, %v3575
        %v3581 = vmul.f32 1.0, %v3580
        %v3582 = vrcp.pop %v3522
        %v3583 = vmul.f32 %v3522, %v3582
        %v3584 = vsub.f32 1.0, %v3583
        %v3585 = vmul.f32 %v3582, %v3584
        %v3586 = vadd.f32 %v3582, %v3585
        %vm3587 = vweird.f32 %v3522
        %vm3588 = vweird.f32 %v3582
        %vm3589 = vmor %vm3587, %vm3588
        %v3590 = vsel %vm3589, %v3582, %v3586
        %v3591 = vand.u32 2147483647, %v3522
        %vm3592 = vcmp.eq.f32.partialorder %v3591, 8.507059e+37
        %v3593 = vand.u32 %v3522, 2147483648
        %v3594 = vor.u32 1.1754944e-38, %v3593
        %v3595 = vsel %vm3592, %v3594, %v3590
        %v3596 = vmul.f32 1.0, %v3595
        %v3597 = vrcp.pop %v3523
        %v3598 = vmul.f32 %v3523, %v3597
        %v3599 = vsub.f32 1.0, %v3598
        %v3600 = vmul.f32 %v3597, %v3599
        %v3601 = vadd.f32 %v3597, %v3600
        %vm3602 = vweird.f32 %v3523
        %vm3603 = vweird.f32 %v3597
        %vm3604 = vmor %vm3602, %vm3603
        %v3605 = vsel %vm3604, %v3597, %v3601
        %v3606 = vand.u32 2147483647, %v3523
        %vm3607 = vcmp.eq.f32.partialorder %v3606, 8.507059e+37
        %v3608 = vand.u32 %v3523, 2147483648
        %v3609 = vor.u32 1.1754944e-38, %v3608
        %v3610 = vsel %vm3607, %v3609, %v3605
        %v3611 = vmul.f32 1.0, %v3610
        %v3612 = vrcp.pop %v3524
        %v3613 = vmul.f32 %v3524, %v3612
        %v3614 = vsub.f32 1.0, %v3613
        %v3615 = vmul.f32 %v3612, %v3614
        %v3616 = vadd.f32 %v3612, %v3615
        %vm3617 = vweird.f32 %v3524
        %vm3618 = vweird.f32 %v3612
        %vm3619 = vmor %vm3617, %vm3618
        %v3620 = vsel %vm3619, %v3612, %v3616
        %v3621 = vand.u32 2147483647, %v3524
        %vm3622 = vcmp.eq.f32.partialorder %v3621, 8.507059e+37
        %v3623 = vand.u32 %v3524, 2147483648
        %v3624 = vor.u32 1.1754944e-38, %v3623
        %v3625 = vsel %vm3622, %v3624, %v3620
        %v3626 = vmul.f32 1.0, %v3625
        %v3627 = vrcp.pop %v3525
        %v3628 = vmul.f32 %v3525, %v3627
        %v3629 = vsub.f32 1.0, %v3628
        %v3630 = vmul.f32 %v3627, %v3629
        %v3631 = vadd.f32 %v3627, %v3630
        %vm3632 = vweird.f32 %v3525
        %vm3633 = vweird.f32 %v3627
        %vm3634 = vmor %vm3632, %vm3633
        %v3635 = vsel %vm3634, %v3627, %v3631
        %v3636 = vand.u32 2147483647, %v3525
        %vm3637 = vcmp.eq.f32.partialorder %v3636, 8.507059e+37
        %v3638 = vand.u32 %v3525, 2147483648
        %v3639 = vor.u32 1.1754944e-38, %v3638
        %v3640 = vsel %vm3637, %v3639, %v3635
        %v3641 = vmul.f32 1.0, %v3640
        %v3642 = vrcp.pop %v3526
        %v3643 = vmul.f32 %v3526, %v3642
        %v3644 = vsub.f32 1.0, %v3643
        %v3645 = vmul.f32 %v3642, %v3644
        %v3646 = vadd.f32 %v3642, %v3645
        %vm3647 = vweird.f32 %v3526
        %vm3648 = vweird.f32 %v3642
        %vm3649 = vmor %vm3647, %vm3648
        %v3650 = vsel %vm3649, %v3642, %v3646
        %v3651 = vand.u32 2147483647, %v3526
        %vm3652 = vcmp.eq.f32.partialorder %v3651, 8.507059e+37
        %v3653 = vand.u32 %v3526, 2147483648
        %v3654 = vor.u32 1.1754944e-38, %v3653
        %v3655 = vsel %vm3652, %v3654, %v3650
        %v3656 = vmul.f32 1.0, %v3655
        %v3657 = vrcp.pop %v3527
        %v3658 = vmul.f32 %v3527, %v3657
        %v3659 = vsub.f32 1.0, %v3658
        %v3660 = vmul.f32 %v3657, %v3659
        %v3661 = vadd.f32 %v3657, %v3660
        %vm3662 = vweird.f32 %v3527
        %vm3663 = vweird.f32 %v3657
        %vm3664 = vmor %vm3662, %vm3663
        %v3665 = vsel %vm3664, %v3657, %v3661
        %v3666 = vand.u32 2147483647, %v3527
        %vm3667 = vcmp.eq.f32.partialorder %v3666, 8.507059e+37
        %v3668 = vand.u32 %v3527, 2147483648
        %v3669 = vor.u32 1.1754944e-38, %v3668
        %v3670 = vsel %vm3667, %v3669, %v3665
        %v3671 = vmul.f32 1.0, %v3670
        %v3672 = vrcp.pop %v3528
        %v3673 = vmul.f32 %v3528, %v3672
        %v3674 = vsub.f32 1.0, %v3673
        %v3675 = vmul.f32 %v3672, %v3674
        %v3676 = vadd.f32 %v3672, %v3675
        %vm3677 = vweird.f32 %v3528
        %vm3678 = vweird.f32 %v3672
        %vm3679 = vmor %vm3677, %vm3678
        %v3680 = vsel %vm3679, %v3672, %v3676
        %v3681 = vand.u32 2147483647, %v3528
        %vm3682 = vcmp.eq.f32.partialorder %v3681, 8.507059e+37
        %v3683 = vand.u32 %v3528, 2147483648
        %v3684 = vor.u32 1.1754944e-38, %v3683
        %v3685 = vsel %vm3682, %v3684, %v3680
        %v3686 = vmul.f32 1.0, %v3685
        %v3687 = vrcp.pop %v3529
        %v3688 = vmul.f32 %v3529, %v3687
        %v3689 = vsub.f32 1.0, %v3688
        %v3690 = vmul.f32 %v3687, %v3689
        %v3691 = vadd.f32 %v3687, %v3690
        %vm3692 = vweird.f32 %v3529
        %vm3693 = vweird.f32 %v3687
        %vm3694 = vmor %vm3692, %vm3693
        %v3695 = vsel %vm3694, %v3687, %v3691
        %v3696 = vand.u32 2147483647, %v3529
        %vm3697 = vcmp.eq.f32.partialorder %v3696, 8.507059e+37
        %v3698 = vand.u32 %v3529, 2147483648
        %v3699 = vor.u32 1.1754944e-38, %v3698
        %v3700 = vsel %vm3697, %v3699, %v3695
        %v3701 = vmul.f32 1.0, %v3700
        %v3702 = vrcp.pop %v3530
        %v3703 = vmul.f32 %v3530, %v3702
        %v3704 = vsub.f32 1.0, %v3703
        %v3705 = vmul.f32 %v3702, %v3704
        %v3706 = vadd.f32 %v3702, %v3705
        %vm3707 = vweird.f32 %v3530
        %vm3708 = vweird.f32 %v3702
        %vm3709 = vmor %vm3707, %vm3708
        %v3710 = vsel %vm3709, %v3702, %v3706
        %v3711 = vand.u32 2147483647, %v3530
        %vm3712 = vcmp.eq.f32.partialorder %v3711, 8.507059e+37
        %v3713 = vand.u32 %v3530, 2147483648
        %v3714 = vor.u32 1.1754944e-38, %v3713
        %v3715 = vsel %vm3712, %v3714, %v3710
        %v3716 = vmul.f32 1.0, %v3715
        %v3717 = vrcp.pop %v3531
        %v3718 = vmul.f32 %v3531, %v3717
        %v3719 = vsub.f32 1.0, %v3718
        %v3720 = vmul.f32 %v3717, %v3719
        %v3721 = vadd.f32 %v3717, %v3720
        %vm3722 = vweird.f32 %v3531
        %vm3723 = vweird.f32 %v3717
        %vm3724 = vmor %vm3722, %vm3723
        %v3725 = vsel %vm3724, %v3717, %v3721
        %v3726 = vand.u32 2147483647, %v3531
        %vm3727 = vcmp.eq.f32.partialorder %v3726, 8.507059e+37
        %v3728 = vand.u32 %v3531, 2147483648
        %v3729 = vor.u32 1.1754944e-38, %v3728
        %v3730 = vsel %vm3727, %v3729, %v3725
        %v3731 = vmul.f32 1.0, %v3730
        %v3732 = vrcp.pop %v3532
        %v3733 = vmul.f32 %v3532, %v3732
        %v3734 = vsub.f32 1.0, %v3733
        %v3735 = vmul.f32 %v3732, %v3734
        %v3736 = vadd.f32 %v3732, %v3735
        %vm3737 = vweird.f32 %v3532
        %vm3738 = vweird.f32 %v3732
        %vm3739 = vmor %vm3737, %vm3738
        %v3740 = vsel %vm3739, %v3732, %v3736
        %v3741 = vand.u32 2147483647, %v3532
        %vm3742 = vcmp.eq.f32.partialorder %v3741, 8.507059e+37
        %v3743 = vand.u32 %v3532, 2147483648
        %v3744 = vor.u32 1.1754944e-38, %v3743
        %v3745 = vsel %vm3742, %v3744, %v3740
        %v3746 = vmul.f32 1.0, %v3745
        %v3747 = vrcp.pop %v3533
        %v3748 = vmul.f32 %v3533, %v3747
        %v3749 = vsub.f32 1.0, %v3748
        %v3750 = vmul.f32 %v3747, %v3749
        %v3751 = vadd.f32 %v3747, %v3750
        %vm3752 = vweird.f32 %v3533
        %vm3753 = vweird.f32 %v3747
        %vm3754 = vmor %vm3752, %vm3753
        %v3755 = vsel %vm3754, %v3747, %v3751
        %v3756 = vand.u32 2147483647, %v3533
        %vm3757 = vcmp.eq.f32.partialorder %v3756, 8.507059e+37
        %v3758 = vand.u32 %v3533, 2147483648
        %v3759 = vor.u32 1.1754944e-38, %v3758
        %v3760 = vsel %vm3757, %v3759, %v3755
        %v3761 = vmul.f32 1.0, %v3760
        %v3762 = vrcp.pop %v3534
        %v3763 = vmul.f32 %v3534, %v3762
        %v3764 = vsub.f32 1.0, %v3763
        %v3765 = vmul.f32 %v3762, %v3764
        %v3766 = vadd.f32 %v3762, %v3765
        %vm3767 = vweird.f32 %v3534
        %vm3768 = vweird.f32 %v3762
        %vm3769 = vmor %vm3767, %vm3768
        %v3770 = vsel %vm3769, %v3762, %v3766
        %v3771 = vand.u32 2147483647, %v3534
        %vm3772 = vcmp.eq.f32.partialorder %v3771, 8.507059e+37
        %v3773 = vand.u32 %v3534, 2147483648
        %v3774 = vor.u32 1.1754944e-38, %v3773
        %v3775 = vsel %vm3772, %v3774, %v3770
        %v3776 = vmul.f32 1.0, %v3775
        %v3777 = vrcp.pop %v3535
        %v3778 = vmul.f32 %v3535, %v3777
        %v3779 = vsub.f32 1.0, %v3778
        %v3780 = vmul.f32 %v3777, %v3779
        %v3781 = vadd.f32 %v3777, %v3780
        %vm3782 = vweird.f32 %v3535
        %vm3783 = vweird.f32 %v3777
        %vm3784 = vmor %vm3782, %vm3783
        %v3785 = vsel %vm3784, %v3777, %v3781
        %v3786 = vand.u32 2147483647, %v3535
        %vm3787 = vcmp.eq.f32.partialorder %v3786, 8.507059e+37
        %v3788 = vand.u32 %v3535, 2147483648
        %v3789 = vor.u32 1.1754944e-38, %v3788
        %v3790 = vsel %vm3787, %v3789, %v3785
        %v3791 = vmul.f32 1.0, %v3790
        %v3792 = vrcp.pop %v3536
        %v3793 = vmul.f32 %v3536, %v3792
        %v3794 = vsub.f32 1.0, %v3793
        %v3795 = vmul.f32 %v3792, %v3794
        %v3796 = vadd.f32 %v3792, %v3795
        %vm3797 = vweird.f32 %v3536
        %vm3798 = vweird.f32 %v3792
        %vm3799 = vmor %vm3797, %vm3798
        %v3800 = vsel %vm3799, %v3792, %v3796
        %v3801 = vand.u32 2147483647, %v3536
        %vm3802 = vcmp.eq.f32.partialorder %v3801, 8.507059e+37
        %v3803 = vand.u32 %v3536, 2147483648
        %v3804 = vor.u32 1.1754944e-38, %v3803
        %v3805 = vsel %vm3802, %v3804, %v3800
        %v3806 = vmul.f32 1.0, %v3805
        %v3807 = vrcp.pop %v3537
        %v3808 = vmul.f32 %v3537, %v3807
        %v3809 = vsub.f32 1.0, %v3808
        %v3810 = vmul.f32 %v3807, %v3809
        %v3811 = vadd.f32 %v3807, %v3810
        %vm3812 = vweird.f32 %v3537
        %vm3813 = vweird.f32 %v3807
        %vm3814 = vmor %vm3812, %vm3813
        %v3815 = vsel %vm3814, %v3807, %v3811
        %v3816 = vand.u32 2147483647, %v3537
        %vm3817 = vcmp.eq.f32.partialorder %v3816, 8.507059e+37
        %v3818 = vand.u32 %v3537, 2147483648
        %v3819 = vor.u32 1.1754944e-38, %v3818
        %v3820 = vsel %vm3817, %v3819, %v3815
        %v3821 = vmul.f32 1.0, %v3820
        %v3822 = vrcp.pop %v3538
        %v3823 = vmul.f32 %v3538, %v3822
        %v3824 = vsub.f32 1.0, %v3823
        %v3825 = vmul.f32 %v3822, %v3824
        %v3826 = vadd.f32 %v3822, %v3825
        %vm3827 = vweird.f32 %v3538
        %vm3828 = vweird.f32 %v3822
        %vm3829 = vmor %vm3827, %vm3828
        %v3830 = vsel %vm3829, %v3822, %v3826
        %v3831 = vand.u32 2147483647, %v3538
        %vm3832 = vcmp.eq.f32.partialorder %v3831, 8.507059e+37
        %v3833 = vand.u32 %v3538, 2147483648
        %v3834 = vor.u32 1.1754944e-38, %v3833
        %v3835 = vsel %vm3832, %v3834, %v3830
        %v3836 = vmul.f32 1.0, %v3835
        %v3837 = vrcp.pop %v3539
        %v3838 = vmul.f32 %v3539, %v3837
        %v3839 = vsub.f32 1.0, %v3838
        %v3840 = vmul.f32 %v3837, %v3839
        %v3841 = vadd.f32 %v3837, %v3840
        %vm3842 = vweird.f32 %v3539
        %vm3843 = vweird.f32 %v3837
        %vm3844 = vmor %vm3842, %vm3843
        %v3845 = vsel %vm3844, %v3837, %v3841
        %v3846 = vand.u32 2147483647, %v3539
        %vm3847 = vcmp.eq.f32.partialorder %v3846, 8.507059e+37
        %v3848 = vand.u32 %v3539, 2147483648
        %v3849 = vor.u32 1.1754944e-38, %v3848
        %v3850 = vsel %vm3847, %v3849, %v3845
        %v3851 = vmul.f32 1.0, %v3850
        %v3852 = vrcp.pop %v3540
        %v3853 = vmul.f32 %v3540, %v3852
        %v3854 = vsub.f32 1.0, %v3853
        %v3855 = vmul.f32 %v3852, %v3854
        %v3856 = vadd.f32 %v3852, %v3855
        %vm3857 = vweird.f32 %v3540
        %vm3858 = vweird.f32 %v3852
        %vm3859 = vmor %vm3857, %vm3858
        %v3860 = vsel %vm3859, %v3852, %v3856
        %v3861 = vand.u32 2147483647, %v3540
        %vm3862 = vcmp.eq.f32.partialorder %v3861, 8.507059e+37
        %v3863 = vand.u32 %v3540, 2147483648
        %v3864 = vor.u32 1.1754944e-38, %v3863
        %v3865 = vsel %vm3862, %v3864, %v3860
        %v3866 = vmul.f32 1.0, %v3865
        %v3867 = vrcp.pop %v3541
        %v3868 = vmul.f32 %v3541, %v3867
        %v3869 = vsub.f32 1.0, %v3868
        %v3870 = vmul.f32 %v3867, %v3869
        %v3871 = vadd.f32 %v3867, %v3870
        %vm3872 = vweird.f32 %v3541
        %vm3873 = vweird.f32 %v3867
        %vm3874 = vmor %vm3872, %vm3873
        %v3875 = vsel %vm3874, %v3867, %v3871
        %v3876 = vand.u32 2147483647, %v3541
        %vm3877 = vcmp.eq.f32.partialorder %v3876, 8.507059e+37
        %v3878 = vand.u32 %v3541, 2147483648
        %v3879 = vor.u32 1.1754944e-38, %v3878
        %v3880 = vsel %vm3877, %v3879, %v3875
        %v3881 = vmul.f32 1.0, %v3880
        %v3882 = vrcp.pop %v3542
        %v3883 = vmul.f32 %v3542, %v3882
        %v3884 = vsub.f32 1.0, %v3883
        %v3885 = vmul.f32 %v3882, %v3884
        %v3886 = vadd.f32 %v3882, %v3885
        %vm3887 = vweird.f32 %v3542
        %vm3888 = vweird.f32 %v3882
        %vm3889 = vmor %vm3887, %vm3888
        %v3890 = vsel %vm3889, %v3882, %v3886
        %v3891 = vand.u32 2147483647, %v3542
        %vm3892 = vcmp.eq.f32.partialorder %v3891, 8.507059e+37
        %v3893 = vand.u32 %v3542, 2147483648
        %v3894 = vor.u32 1.1754944e-38, %v3893
        %v3895 = vsel %vm3892, %v3894, %v3890
        %v3896 = vmul.f32 1.0, %v3895
        %v3897 = vrcp.pop %v3543
        %v3898 = vmul.f32 %v3543, %v3897
        %v3899 = vsub.f32 1.0, %v3898
        %v3900 = vmul.f32 %v3897, %v3899
        %v3901 = vadd.f32 %v3897, %v3900
        %vm3902 = vweird.f32 %v3543
        %vm3903 = vweird.f32 %v3897
        %vm3904 = vmor %vm3902, %vm3903
        %v3905 = vsel %vm3904, %v3897, %v3901
        %v3906 = vand.u32 2147483647, %v3543
        %vm3907 = vcmp.eq.f32.partialorder %v3906, 8.507059e+37
        %v3908 = vand.u32 %v3543, 2147483648
        %v3909 = vor.u32 1.1754944e-38, %v3908
        %v3910 = vsel %vm3907, %v3909, %v3905
        %v3911 = vmul.f32 1.0, %v3910
        %v3912 = vrcp.pop %v3544
        %v3913 = vmul.f32 %v3544, %v3912
        %v3914 = vsub.f32 1.0, %v3913
        %v3915 = vmul.f32 %v3912, %v3914
        %v3916 = vadd.f32 %v3912, %v3915
        %vm3917 = vweird.f32 %v3544
        %vm3918 = vweird.f32 %v3912
        %vm3919 = vmor %vm3917, %vm3918
        %v3920 = vsel %vm3919, %v3912, %v3916
        %v3921 = vand.u32 2147483647, %v3544
        %vm3922 = vcmp.eq.f32.partialorder %v3921, 8.507059e+37
        %v3923 = vand.u32 %v3544, 2147483648
        %v3924 = vor.u32 1.1754944e-38, %v3923
        %v3925 = vsel %vm3922, %v3924, %v3920
        %v3926 = vmul.f32 1.0, %v3925
        %v3927 = vrcp.pop %v3545
        %v3928 = vmul.f32 %v3545, %v3927
        %v3929 = vsub.f32 1.0, %v3928
        %v3930 = vmul.f32 %v3927, %v3929
        %v3931 = vadd.f32 %v3927, %v3930
        %vm3932 = vweird.f32 %v3545
        %vm3933 = vweird.f32 %v3927
        %vm3934 = vmor %vm3932, %vm3933
        %v3935 = vsel %vm3934, %v3927, %v3931
        %v3936 = vand.u32 2147483647, %v3545
        %vm3937 = vcmp.eq.f32.partialorder %v3936, 8.507059e+37
        %v3938 = vand.u32 %v3545, 2147483648
        %v3939 = vor.u32 1.1754944e-38, %v3938
        %v3940 = vsel %vm3937, %v3939, %v3935
        %v3941 = vmul.f32 1.0, %v3940
        %v3942 = vrcp.pop %v3546
        %v3943 = vmul.f32 %v3546, %v3942
        %v3944 = vsub.f32 1.0, %v3943
        %v3945 = vmul.f32 %v3942, %v3944
        %v3946 = vadd.f32 %v3942, %v3945
        %vm3947 = vweird.f32 %v3546
        %vm3948 = vweird.f32 %v3942
        %vm3949 = vmor %vm3947, %vm3948
        %v3950 = vsel %vm3949, %v3942, %v3946
        %v3951 = vand.u32 2147483647, %v3546
        %vm3952 = vcmp.eq.f32.partialorder %v3951, 8.507059e+37
        %v3953 = vand.u32 %v3546, 2147483648
        %v3954 = vor.u32 1.1754944e-38, %v3953
        %v3955 = vsel %vm3952, %v3954, %v3950
        %v3956 = vmul.f32 1.0, %v3955
        %v3957 = vrcp.pop %v3547
        %v3958 = vmul.f32 %v3547, %v3957
        %v3959 = vsub.f32 1.0, %v3958
        %v3960 = vmul.f32 %v3957, %v3959
        %v3961 = vadd.f32 %v3957, %v3960
        %vm3962 = vweird.f32 %v3547
        %vm3963 = vweird.f32 %v3957
        %vm3964 = vmor %vm3962, %vm3963
        %v3965 = vsel %vm3964, %v3957, %v3961
        %v3966 = vand.u32 2147483647, %v3547
        %vm3967 = vcmp.eq.f32.partialorder %v3966, 8.507059e+37
        %v3968 = vand.u32 %v3547, 2147483648
        %v3969 = vor.u32 1.1754944e-38, %v3968
        %v3970 = vsel %vm3967, %v3969, %v3965
        %v3971 = vmul.f32 1.0, %v3970
        %v3972 = vrcp.pop %v3548
        %v3973 = vmul.f32 %v3548, %v3972
        %v3974 = vsub.f32 1.0, %v3973
        %v3975 = vmul.f32 %v3972, %v3974
        %v3976 = vadd.f32 %v3972, %v3975
        %vm3977 = vweird.f32 %v3548
        %vm3978 = vweird.f32 %v3972
        %vm3979 = vmor %vm3977, %vm3978
        %v3980 = vsel %vm3979, %v3972, %v3976
        %v3981 = vand.u32 2147483647, %v3548
        %vm3982 = vcmp.eq.f32.partialorder %v3981, 8.507059e+37
        %v3983 = vand.u32 %v3548, 2147483648
        %v3984 = vor.u32 1.1754944e-38, %v3983
        %v3985 = vsel %vm3982, %v3984, %v3980
        %v3986 = vmul.f32 1.0, %v3985
        %v3987 = vrcp.pop %v3549
        %v3988 = vmul.f32 %v3549, %v3987
        %v3989 = vsub.f32 1.0, %v3988
        %v3990 = vmul.f32 %v3987, %v3989
        %v3991 = vadd.f32 %v3987, %v3990
        %vm3992 = vweird.f32 %v3549
        %vm3993 = vweird.f32 %v3987
        %vm3994 = vmor %vm3992, %vm3993
        %v3995 = vsel %vm3994, %v3987, %v3991
        %v3996 = vand.u32 2147483647, %v3549
        %vm3997 = vcmp.eq.f32.partialorder %v3996, 8.507059e+37
        %v3998 = vand.u32 %v3549, 2147483648
        %v3999 = vor.u32 1.1754944e-38, %v3998
        %v4000 = vsel %vm3997, %v3999, %v3995
        %v4001 = vmul.f32 1.0, %v4000
        %v4002 = vrcp.pop %v3550
        %v4003 = vmul.f32 %v3550, %v4002
        %v4004 = vsub.f32 1.0, %v4003
        %v4005 = vmul.f32 %v4002, %v4004
        %v4006 = vadd.f32 %v4002, %v4005
        %vm4007 = vweird.f32 %v3550
        %vm4008 = vweird.f32 %v4002
        %vm4009 = vmor %vm4007, %vm4008
        %v4010 = vsel %vm4009, %v4002, %v4006
        %v4011 = vand.u32 2147483647, %v3550
        %vm4012 = vcmp.eq.f32.partialorder %v4011, 8.507059e+37
        %v4013 = vand.u32 %v3550, 2147483648
        %v4014 = vor.u32 1.1754944e-38, %v4013
        %v4015 = vsel %vm4012, %v4014, %v4010
        %v4016 = vmul.f32 1.0, %v4015
        %v4017 = vrcp.pop %v3551
        %v4018 = vmul.f32 %v3551, %v4017
        %v4019 = vsub.f32 1.0, %v4018
        %v4020 = vmul.f32 %v4017, %v4019
        %v4021 = vadd.f32 %v4017, %v4020
        %vm4022 = vweird.f32 %v3551
        %vm4023 = vweird.f32 %v4017
        %vm4024 = vmor %vm4022, %vm4023
        %v4025 = vsel %vm4024, %v4017, %v4021
        %v4026 = vand.u32 2147483647, %v3551
        %vm4027 = vcmp.eq.f32.partialorder %v4026, 8.507059e+37
        %v4028 = vand.u32 %v3551, 2147483648
        %v4029 = vor.u32 1.1754944e-38, %v4028
        %v4030 = vsel %vm4027, %v4029, %v4025
        %v4031 = vmul.f32 1.0, %v4030
        %v4032 = vtanh.pop %v3389
        %v4033 = vtanh.pop %v3390
        %v4034 = vtanh.pop %v3391
        %v4035 = vtanh.pop %v3392
        %v4036 = vtanh.pop %v3393
        %v4037 = vtanh.pop %v3394
        %v4038 = vtanh.pop %v3395
        %v4039 = vtanh.pop %v3396
        %v4040 = vtanh.pop %v3397
        %v4041 = vtanh.pop %v3398
        %v4042 = vtanh.pop %v3399
        %v4043 = vtanh.pop %v3400
        %v4044 = vtanh.pop %v3401
        %v4045 = vtanh.pop %v3402
        %v4046 = vtanh.pop %v3403
        %v4047 = vtanh.pop %v3404
        %v4048 = vtanh.pop %v3405
        %v4049 = vtanh.pop %v3406
        %v4050 = vtanh.pop %v3407
        %v4051 = vtanh.pop %v3408
        %v4052 = vtanh.pop %v3409
        %v4053 = vtanh.pop %v3410
        %v4054 = vtanh.pop %v3411
        %v4055 = vtanh.pop %v3412
        %v4056 = vtanh.pop %v3413
        %v4057 = vtanh.pop %v3414
        %v4058 = vtanh.pop %v3415
        %v4059 = vtanh.pop %v3416
        %v4060 = vtanh.pop %v3417
        %v4061 = vtanh.pop %v3418
        %v4062 = vtanh.pop %v3419
        %v4063 = vtanh.pop %v3420
        %v4064 = vsel %vm3423, %v3566, %v4032
        %v4065 = vsel %vm3423, %v3581, %v4033
        %v4066 = vsel %vm3423, %v3596, %v4034
        %v4067 = vsel %vm3423, %v3611, %v4035
        %v4068 = vsel %vm3423, %v3626, %v4036
        %v4069 = vsel %vm3423, %v3641, %v4037
        %v4070 = vsel %vm3423, %v3656, %v4038
        %v4071 = vsel %vm3423, %v3671, %v4039
        %v4072 = vsel %vm3423, %v3686, %v4040
        %v4073 = vsel %vm3423, %v3701, %v4041
        %v4074 = vsel %vm3423, %v3716, %v4042
        %v4075 = vsel %vm3423, %v3731, %v4043
        %v4076 = vsel %vm3423, %v3746, %v4044
        %v4077 = vsel %vm3423, %v3761, %v4045
        %v4078 = vsel %vm3423, %v3776, %v4046
        %v4079 = vsel %vm3423, %v3791, %v4047
        %v4080 = vsel %vm3423, %v3806, %v4048
        %v4081 = vsel %vm3423, %v3821, %v4049
        %v4082 = vsel %vm3423, %v3836, %v4050
        %v4083 = vsel %vm3423, %v3851, %v4051
        %v4084 = vsel %vm3423, %v3866, %v4052
        %v4085 = vsel %vm3423, %v3881, %v4053
        %v4086 = vsel %vm3423, %v3896, %v4054
        %v4087 = vsel %vm3423, %v3911, %v4055
        %v4088 = vsel %vm3423, %v3926, %v4056
        %v4089 = vsel %vm3423, %v3941, %v4057
        %v4090 = vsel %vm3423, %v3956, %v4058
        %v4091 = vsel %vm3423, %v3971, %v4059
        %v4092 = vsel %vm3423, %v3986, %v4060
        %v4093 = vsel %vm3423, %v4001, %v4061
        %v4094 = vsel %vm3423, %v4016, %v4062
        %v4095 = vsel %vm3423, %v4031, %v4063
        %v4096 = vld [vmem:[%s225] sm:$0xff]
        %v4097 = vld [vmem:[%s225 + $0x8] sm:$0xff]
        %v4098 = vld [vmem:[%s225 + $0x10] sm:$0xff]
        %v4099 = vld [vmem:[%s225 + $0x18] sm:$0xff]
        %v4100 = vld [vmem:[%s225 + $0x20] sm:$0xff]
        %v4101 = vld [vmem:[%s225 + $0x28] sm:$0xff]
        %v4102 = vld [vmem:[%s225 + $0x30] sm:$0xff]
        %v4103 = vld [vmem:[%s225 + $0x38] sm:$0xff]
        %v4104 = vld [vmem:[%s225 + $0x40] sm:$0xff]
        %v4105 = vld [vmem:[%s225 + $0x48] sm:$0xff]
        %v4106 = vld [vmem:[%s225 + $0x50] sm:$0xff]
        %v4107 = vld [vmem:[%s225 + $0x58] sm:$0xff]
        %v4108 = vld [vmem:[%s225 + $0x60] sm:$0xff]
        %v4109 = vld [vmem:[%s225 + $0x68] sm:$0xff]
        %v4110 = vld [vmem:[%s225 + $0x70] sm:$0xff]
        %v4111 = vld [vmem:[%s225 + $0x78] sm:$0xff]
        %v4112 = vld [vmem:[%s225 + $0x80] sm:$0xff]
        %v4113 = vld [vmem:[%s225 + $0x88] sm:$0xff]
        %v4114 = vld [vmem:[%s225 + $0x90] sm:$0xff]
        %v4115 = vld [vmem:[%s225 + $0x98] sm:$0xff]
        %v4116 = vld [vmem:[%s225 + $0xa0] sm:$0xff]
        %v4117 = vld [vmem:[%s225 + $0xa8] sm:$0xff]
        %v4118 = vld [vmem:[%s225 + $0xb0] sm:$0xff]
        %v4119 = vld [vmem:[%s225 + $0xb8] sm:$0xff]
        %v4120 = vld [vmem:[%s225 + $0xc0] sm:$0xff]
        %v4121 = vld [vmem:[%s225 + $0xc8] sm:$0xff]
        %v4122 = vld [vmem:[%s225 + $0xd0] sm:$0xff]
        %v4123 = vld [vmem:[%s225 + $0xd8] sm:$0xff]
        %v4124 = vld [vmem:[%s225 + $0xe0] sm:$0xff]
        %v4125 = vld [vmem:[%s225 + $0xe8] sm:$0xff]
        %v4126 = vld [vmem:[%s225 + $0xf0] sm:$0xff]
        %v4127 = vld [vmem:[%s225 + $0xf8] sm:$0xff]
        %4160 = vrot.lane.b32.xlu0 %v4096, 32
        %v4161 = vpop.permute.xlu0 %4160
        %4162 = vrot.lane.b32.xlu0 %v4097, 32
        %v4163 = vpop.permute.xlu0 %4162
        %4164 = vrot.lane.b32.xlu0 %v4098, 32
        %v4165 = vpop.permute.xlu0 %4164
        %4166 = vrot.lane.b32.xlu0 %v4099, 32
        %v4167 = vpop.permute.xlu0 %4166
        %4168 = vrot.lane.b32.xlu0 %v4100, 32
        %v4169 = vpop.permute.xlu0 %4168
        %4170 = vrot.lane.b32.xlu0 %v4101, 32
        %v4171 = vpop.permute.xlu0 %4170
        %4172 = vrot.lane.b32.xlu0 %v4102, 32
        %v4173 = vpop.permute.xlu0 %4172
        %4174 = vrot.lane.b32.xlu0 %v4103, 32
        %v4175 = vpop.permute.xlu0 %4174
        %4176 = vrot.lane.b32.xlu0 %v4104, 32
        %v4177 = vpop.permute.xlu0 %4176
        %4178 = vrot.lane.b32.xlu0 %v4105, 32
        %v4179 = vpop.permute.xlu0 %4178
        %4180 = vrot.lane.b32.xlu0 %v4106, 32
        %v4181 = vpop.permute.xlu0 %4180
        %4182 = vrot.lane.b32.xlu0 %v4107, 32
        %v4183 = vpop.permute.xlu0 %4182
        %4184 = vrot.lane.b32.xlu0 %v4108, 32
        %v4185 = vpop.permute.xlu0 %4184
        %4186 = vrot.lane.b32.xlu0 %v4109, 32
        %v4187 = vpop.permute.xlu0 %4186
        %4188 = vrot.lane.b32.xlu0 %v4110, 32
        %v4189 = vpop.permute.xlu0 %4188
        %4190 = vrot.lane.b32.xlu0 %v4111, 32
        %v4191 = vpop.permute.xlu0 %4190
        %4192 = vrot.lane.b32.xlu0 %v4112, 32
        %v4193 = vpop.permute.xlu0 %4192
        %4194 = vrot.lane.b32.xlu0 %v4113, 32
        %v4195 = vpop.permute.xlu0 %4194
        %4196 = vrot.lane.b32.xlu0 %v4114, 32
        %v4197 = vpop.permute.xlu0 %4196
        %4198 = vrot.lane.b32.xlu0 %v4115, 32
        %v4199 = vpop.permute.xlu0 %4198
        %4200 = vrot.lane.b32.xlu0 %v4116, 32
        %v4201 = vpop.permute.xlu0 %4200
        %4202 = vrot.lane.b32.xlu0 %v4117, 32
        %v4203 = vpop.permute.xlu0 %4202
        %4204 = vrot.lane.b32.xlu0 %v4118, 32
        %v4205 = vpop.permute.xlu0 %4204
        %4206 = vrot.lane.b32.xlu0 %v4119, 32
        %v4207 = vpop.permute.xlu0 %4206
        %4208 = vrot.lane.b32.xlu0 %v4120, 32
        %v4209 = vpop.permute.xlu0 %4208
        %4210 = vrot.lane.b32.xlu0 %v4121, 32
        %v4211 = vpop.permute.xlu0 %4210
        %4212 = vrot.lane.b32.xlu0 %v4122, 32
        %v4213 = vpop.permute.xlu0 %4212
        %4214 = vrot.lane.b32.xlu0 %v4123, 32
        %v4215 = vpop.permute.xlu0 %4214
        %4216 = vrot.lane.b32.xlu0 %v4124, 32
        %v4217 = vpop.permute.xlu0 %4216
        %4218 = vrot.lane.b32.xlu0 %v4125, 32
        %v4219 = vpop.permute.xlu0 %4218
        %4220 = vrot.lane.b32.xlu0 %v4126, 32
        %v4221 = vpop.permute.xlu0 %4220
        %4222 = vrot.lane.b32.xlu0 %v4127, 32
        %v4223 = vpop.permute.xlu0 %4222
        %v4256 = vmul.f32 %v4064, %v4161
        %v4257 = vmul.f32 %v4065, %v4163
        %v4258 = vmul.f32 %v4066, %v4165
        %v4259 = vmul.f32 %v4067, %v4167
        %v4260 = vmul.f32 %v4068, %v4169
        %v4261 = vmul.f32 %v4069, %v4171
        %v4262 = vmul.f32 %v4070, %v4173
        %v4263 = vmul.f32 %v4071, %v4175
        %v4264 = vmul.f32 %v4072, %v4177
        %v4265 = vmul.f32 %v4073, %v4179
        %v4266 = vmul.f32 %v4074, %v4181
        %v4267 = vmul.f32 %v4075, %v4183
        %v4268 = vmul.f32 %v4076, %v4185
        %v4269 = vmul.f32 %v4077, %v4187
        %v4270 = vmul.f32 %v4078, %v4189
        %v4271 = vmul.f32 %v4079, %v4191
        %v4272 = vmul.f32 %v4080, %v4193
        %v4273 = vmul.f32 %v4081, %v4195
        %v4274 = vmul.f32 %v4082, %v4197
        %v4275 = vmul.f32 %v4083, %v4199
        %v4276 = vmul.f32 %v4084, %v4201
        %v4277 = vmul.f32 %v4085, %v4203
        %v4278 = vmul.f32 %v4086, %v4205
        %v4279 = vmul.f32 %v4087, %v4207
        %v4280 = vmul.f32 %v4088, %v4209
        %v4281 = vmul.f32 %v4089, %v4211
        %v4282 = vmul.f32 %v4090, %v4213
        %v4283 = vmul.f32 %v4091, %v4215
        %v4284 = vmul.f32 %v4092, %v4217
        %v4285 = vmul.f32 %v4093, %v4219
        %v4286 = vmul.f32 %v4094, %v4221
        %v4287 = vmul.f32 %v4095, %v4223
        %4320 = vrot.lane.b32.xlu0 %v4064, 32
        %v4321 = vpop.permute.xlu0 %4320
        %4322 = vrot.lane.b32.xlu0 %v4065, 32
        %v4323 = vpop.permute.xlu0 %4322
        %4324 = vrot.lane.b32.xlu0 %v4066, 32
        %v4325 = vpop.permute.xlu0 %4324
        %4326 = vrot.lane.b32.xlu0 %v4067, 32
        %v4327 = vpop.permute.xlu0 %4326
        %4328 = vrot.lane.b32.xlu0 %v4068, 32
        %v4329 = vpop.permute.xlu0 %4328
        %4330 = vrot.lane.b32.xlu0 %v4069, 32
        %v4331 = vpop.permute.xlu0 %4330
        %4332 = vrot.lane.b32.xlu0 %v4070, 32
        %v4333 = vpop.permute.xlu0 %4332
        %4334 = vrot.lane.b32.xlu0 %v4071, 32
        %v4335 = vpop.permute.xlu0 %4334
        %4336 = vrot.lane.b32.xlu0 %v4072, 32
        %v4337 = vpop.permute.xlu0 %4336
        %4338 = vrot.lane.b32.xlu0 %v4073, 32
        %v4339 = vpop.permute.xlu0 %4338
        %4340 = vrot.lane.b32.xlu0 %v4074, 32
        %v4341 = vpop.permute.xlu0 %4340
        %4342 = vrot.lane.b32.xlu0 %v4075, 32
        %v4343 = vpop.permute.xlu0 %4342
        %4344 = vrot.lane.b32.xlu0 %v4076, 32
        %v4345 = vpop.permute.xlu0 %4344
        %4346 = vrot.lane.b32.xlu0 %v4077, 32
        %v4347 = vpop.permute.xlu0 %4346
        %4348 = vrot.lane.b32.xlu0 %v4078, 32
        %v4349 = vpop.permute.xlu0 %4348
        %4350 = vrot.lane.b32.xlu0 %v4079, 32
        %v4351 = vpop.permute.xlu0 %4350
        %4352 = vrot.lane.b32.xlu0 %v4080, 32
        %v4353 = vpop.permute.xlu0 %4352
        %4354 = vrot.lane.b32.xlu0 %v4081, 32
        %v4355 = vpop.permute.xlu0 %4354
        %4356 = vrot.lane.b32.xlu0 %v4082, 32
        %v4357 = vpop.permute.xlu0 %4356
        %4358 = vrot.lane.b32.xlu0 %v4083, 32
        %v4359 = vpop.permute.xlu0 %4358
        %4360 = vrot.lane.b32.xlu0 %v4084, 32
        %v4361 = vpop.permute.xlu0 %4360
        %4362 = vrot.lane.b32.xlu0 %v4085, 32
        %v4363 = vpop.permute.xlu0 %4362
        %4364 = vrot.lane.b32.xlu0 %v4086, 32
        %v4365 = vpop.permute.xlu0 %4364
        %4366 = vrot.lane.b32.xlu0 %v4087, 32
        %v4367 = vpop.permute.xlu0 %4366
        %4368 = vrot.lane.b32.xlu0 %v4088, 32
        %v4369 = vpop.permute.xlu0 %4368
        %4370 = vrot.lane.b32.xlu0 %v4089, 32
        %v4371 = vpop.permute.xlu0 %4370
        %4372 = vrot.lane.b32.xlu0 %v4090, 32
        %v4373 = vpop.permute.xlu0 %4372
        %4374 = vrot.lane.b32.xlu0 %v4091, 32
        %v4375 = vpop.permute.xlu0 %4374
        %4376 = vrot.lane.b32.xlu0 %v4092, 32
        %v4377 = vpop.permute.xlu0 %4376
        %4378 = vrot.lane.b32.xlu0 %v4093, 32
        %v4379 = vpop.permute.xlu0 %4378
        %4380 = vrot.lane.b32.xlu0 %v4094, 32
        %v4381 = vpop.permute.xlu0 %4380
        %4382 = vrot.lane.b32.xlu0 %v4095, 32
        %v4383 = vpop.permute.xlu0 %4382
        %v4416 = vmul.f32 %v4064, %v4321
        %v4417 = vmul.f32 %v4065, %v4323
        %v4418 = vmul.f32 %v4066, %v4325
        %v4419 = vmul.f32 %v4067, %v4327
        %v4420 = vmul.f32 %v4068, %v4329
        %v4421 = vmul.f32 %v4069, %v4331
        %v4422 = vmul.f32 %v4070, %v4333
        %v4423 = vmul.f32 %v4071, %v4335
        %v4424 = vmul.f32 %v4072, %v4337
        %v4425 = vmul.f32 %v4073, %v4339
        %v4426 = vmul.f32 %v4074, %v4341
        %v4427 = vmul.f32 %v4075, %v4343
        %v4428 = vmul.f32 %v4076, %v4345
        %v4429 = vmul.f32 %v4077, %v4347
        %v4430 = vmul.f32 %v4078, %v4349
        %v4431 = vmul.f32 %v4079, %v4351
        %v4432 = vmul.f32 %v4080, %v4353
        %v4433 = vmul.f32 %v4081, %v4355
        %v4434 = vmul.f32 %v4082, %v4357
        %v4435 = vmul.f32 %v4083, %v4359
        %v4436 = vmul.f32 %v4084, %v4361
        %v4437 = vmul.f32 %v4085, %v4363
        %v4438 = vmul.f32 %v4086, %v4365
        %v4439 = vmul.f32 %v4087, %v4367
        %v4440 = vmul.f32 %v4088, %v4369
        %v4441 = vmul.f32 %v4089, %v4371
        %v4442 = vmul.f32 %v4090, %v4373
        %v4443 = vmul.f32 %v4091, %v4375
        %v4444 = vmul.f32 %v4092, %v4377
        %v4445 = vmul.f32 %v4093, %v4379
        %v4446 = vmul.f32 %v4094, %v4381
        %v4447 = vmul.f32 %v4095, %v4383
        %4480 = vrot.lane.b32.xlu0 %v4416, 32
        %v4481 = vpop.permute.xlu0 %4480
        %4482 = vrot.lane.b32.xlu0 %v4417, 32
        %v4483 = vpop.permute.xlu0 %4482
        %4484 = vrot.lane.b32.xlu0 %v4418, 32
        %v4485 = vpop.permute.xlu0 %4484
        %4486 = vrot.lane.b32.xlu0 %v4419, 32
        %v4487 = vpop.permute.xlu0 %4486
        %4488 = vrot.lane.b32.xlu0 %v4420, 32
        %v4489 = vpop.permute.xlu0 %4488
        %4490 = vrot.lane.b32.xlu0 %v4421, 32
        %v4491 = vpop.permute.xlu0 %4490
        %4492 = vrot.lane.b32.xlu0 %v4422, 32
        %v4493 = vpop.permute.xlu0 %4492
        %4494 = vrot.lane.b32.xlu0 %v4423, 32
        %v4495 = vpop.permute.xlu0 %4494
        %4496 = vrot.lane.b32.xlu0 %v4424, 32
        %v4497 = vpop.permute.xlu0 %4496
        %4498 = vrot.lane.b32.xlu0 %v4425, 32
        %v4499 = vpop.permute.xlu0 %4498
        %4500 = vrot.lane.b32.xlu0 %v4426, 32
        %v4501 = vpop.permute.xlu0 %4500
        %4502 = vrot.lane.b32.xlu0 %v4427, 32
        %v4503 = vpop.permute.xlu0 %4502
        %4504 = vrot.lane.b32.xlu0 %v4428, 32
        %v4505 = vpop.permute.xlu0 %4504
        %4506 = vrot.lane.b32.xlu0 %v4429, 32
        %v4507 = vpop.permute.xlu0 %4506
        %4508 = vrot.lane.b32.xlu0 %v4430, 32
        %v4509 = vpop.permute.xlu0 %4508
        %4510 = vrot.lane.b32.xlu0 %v4431, 32
        %v4511 = vpop.permute.xlu0 %4510
        %4512 = vrot.lane.b32.xlu0 %v4432, 32
        %v4513 = vpop.permute.xlu0 %4512
        %4514 = vrot.lane.b32.xlu0 %v4433, 32
        %v4515 = vpop.permute.xlu0 %4514
        %4516 = vrot.lane.b32.xlu0 %v4434, 32
        %v4517 = vpop.permute.xlu0 %4516
        %4518 = vrot.lane.b32.xlu0 %v4435, 32
        %v4519 = vpop.permute.xlu0 %4518
        %4520 = vrot.lane.b32.xlu0 %v4436, 32
        %v4521 = vpop.permute.xlu0 %4520
        %4522 = vrot.lane.b32.xlu0 %v4437, 32
        %v4523 = vpop.permute.xlu0 %4522
        %4524 = vrot.lane.b32.xlu0 %v4438, 32
        %v4525 = vpop.permute.xlu0 %4524
        %4526 = vrot.lane.b32.xlu0 %v4439, 32
        %v4527 = vpop.permute.xlu0 %4526
        %4528 = vrot.lane.b32.xlu0 %v4440, 32
        %v4529 = vpop.permute.xlu0 %4528
        %4530 = vrot.lane.b32.xlu0 %v4441, 32
        %v4531 = vpop.permute.xlu0 %4530
        %4532 = vrot.lane.b32.xlu0 %v4442, 32
        %v4533 = vpop.permute.xlu0 %4532
        %4534 = vrot.lane.b32.xlu0 %v4443, 32
        %v4535 = vpop.permute.xlu0 %4534
        %4536 = vrot.lane.b32.xlu0 %v4444, 32
        %v4537 = vpop.permute.xlu0 %4536
        %4538 = vrot.lane.b32.xlu0 %v4445, 32
        %v4539 = vpop.permute.xlu0 %4538
        %4540 = vrot.lane.b32.xlu0 %v4446, 32
        %v4541 = vpop.permute.xlu0 %4540
        %4542 = vrot.lane.b32.xlu0 %v4447, 32
        %v4543 = vpop.permute.xlu0 %4542
        %v4576 = vadd.f32 %v4256, %v4481
        %v4577 = vadd.f32 %v4257, %v4483
        %v4578 = vadd.f32 %v4258, %v4485
        %v4579 = vadd.f32 %v4259, %v4487
        %v4580 = vadd.f32 %v4260, %v4489
        %v4581 = vadd.f32 %v4261, %v4491
        %v4582 = vadd.f32 %v4262, %v4493
        %v4583 = vadd.f32 %v4263, %v4495
        %v4584 = vadd.f32 %v4264, %v4497
        %v4585 = vadd.f32 %v4265, %v4499
        %v4586 = vadd.f32 %v4266, %v4501
        %v4587 = vadd.f32 %v4267, %v4503
        %v4588 = vadd.f32 %v4268, %v4505
        %v4589 = vadd.f32 %v4269, %v4507
        %v4590 = vadd.f32 %v4270, %v4509
        %v4591 = vadd.f32 %v4271, %v4511
        %v4592 = vadd.f32 %v4272, %v4513
        %v4593 = vadd.f32 %v4273, %v4515
        %v4594 = vadd.f32 %v4274, %v4517
        %v4595 = vadd.f32 %v4275, %v4519
        %v4596 = vadd.f32 %v4276, %v4521
        %v4597 = vadd.f32 %v4277, %v4523
        %v4598 = vadd.f32 %v4278, %v4525
        %v4599 = vadd.f32 %v4279, %v4527
        %v4600 = vadd.f32 %v4280, %v4529
        %v4601 = vadd.f32 %v4281, %v4531
        %v4602 = vadd.f32 %v4282, %v4533
        %v4603 = vadd.f32 %v4283, %v4535
        %v4604 = vadd.f32 %v4284, %v4537
        %v4605 = vadd.f32 %v4285, %v4539
        %v4606 = vadd.f32 %v4286, %v4541
        %v4607 = vadd.f32 %v4287, %v4543
        %v4608 = vtanh.pop %v4576
        %v4609 = vtanh.pop %v4577
        %v4610 = vtanh.pop %v4578
        %v4611 = vtanh.pop %v4579
        %v4612 = vtanh.pop %v4580
        %v4613 = vtanh.pop %v4581
        %v4614 = vtanh.pop %v4582
        %v4615 = vtanh.pop %v4583
        %v4616 = vtanh.pop %v4584
        %v4617 = vtanh.pop %v4585
        %v4618 = vtanh.pop %v4586
        %v4619 = vtanh.pop %v4587
        %v4620 = vtanh.pop %v4588
        %v4621 = vtanh.pop %v4589
        %v4622 = vtanh.pop %v4590
        %v4623 = vtanh.pop %v4591
        %v4624 = vtanh.pop %v4592
        %v4625 = vtanh.pop %v4593
        %v4626 = vtanh.pop %v4594
        %v4627 = vtanh.pop %v4595
        %v4628 = vtanh.pop %v4596
        %v4629 = vtanh.pop %v4597
        %v4630 = vtanh.pop %v4598
        %v4631 = vtanh.pop %v4599
        %v4632 = vtanh.pop %v4600
        %v4633 = vtanh.pop %v4601
        %v4634 = vtanh.pop %v4602
        %v4635 = vtanh.pop %v4603
        %v4636 = vtanh.pop %v4604
        %v4637 = vtanh.pop %v4605
        %v4638 = vtanh.pop %v4606
        %v4639 = vtanh.pop %v4607
        %4672 = vrot.lane.b32.xlu0 %v4608, 32
        %v4673 = vpop.permute.xlu0 %4672
        %4674 = vrot.lane.b32.xlu0 %v4609, 32
        %v4675 = vpop.permute.xlu0 %4674
        %4676 = vrot.lane.b32.xlu0 %v4610, 32
        %v4677 = vpop.permute.xlu0 %4676
        %4678 = vrot.lane.b32.xlu0 %v4611, 32
        %v4679 = vpop.permute.xlu0 %4678
        %4680 = vrot.lane.b32.xlu0 %v4612, 32
        %v4681 = vpop.permute.xlu0 %4680
        %4682 = vrot.lane.b32.xlu0 %v4613, 32
        %v4683 = vpop.permute.xlu0 %4682
        %4684 = vrot.lane.b32.xlu0 %v4614, 32
        %v4685 = vpop.permute.xlu0 %4684
        %4686 = vrot.lane.b32.xlu0 %v4615, 32
        %v4687 = vpop.permute.xlu0 %4686
        %4688 = vrot.lane.b32.xlu0 %v4616, 32
        %v4689 = vpop.permute.xlu0 %4688
        %4690 = vrot.lane.b32.xlu0 %v4617, 32
        %v4691 = vpop.permute.xlu0 %4690
        %4692 = vrot.lane.b32.xlu0 %v4618, 32
        %v4693 = vpop.permute.xlu0 %4692
        %4694 = vrot.lane.b32.xlu0 %v4619, 32
        %v4695 = vpop.permute.xlu0 %4694
        %4696 = vrot.lane.b32.xlu0 %v4620, 32
        %v4697 = vpop.permute.xlu0 %4696
        %4698 = vrot.lane.b32.xlu0 %v4621, 32
        %v4699 = vpop.permute.xlu0 %4698
        %4700 = vrot.lane.b32.xlu0 %v4622, 32
        %v4701 = vpop.permute.xlu0 %4700
        %4702 = vrot.lane.b32.xlu0 %v4623, 32
        %v4703 = vpop.permute.xlu0 %4702
        %4704 = vrot.lane.b32.xlu0 %v4624, 32
        %v4705 = vpop.permute.xlu0 %4704
        %4706 = vrot.lane.b32.xlu0 %v4625, 32
        %v4707 = vpop.permute.xlu0 %4706
        %4708 = vrot.lane.b32.xlu0 %v4626, 32
        %v4709 = vpop.permute.xlu0 %4708
        %4710 = vrot.lane.b32.xlu0 %v4627, 32
        %v4711 = vpop.permute.xlu0 %4710
        %4712 = vrot.lane.b32.xlu0 %v4628, 32
        %v4713 = vpop.permute.xlu0 %4712
        %4714 = vrot.lane.b32.xlu0 %v4629, 32
        %v4715 = vpop.permute.xlu0 %4714
        %4716 = vrot.lane.b32.xlu0 %v4630, 32
        %v4717 = vpop.permute.xlu0 %4716
        %4718 = vrot.lane.b32.xlu0 %v4631, 32
        %v4719 = vpop.permute.xlu0 %4718
        %4720 = vrot.lane.b32.xlu0 %v4632, 32
        %v4721 = vpop.permute.xlu0 %4720
        %4722 = vrot.lane.b32.xlu0 %v4633, 32
        %v4723 = vpop.permute.xlu0 %4722
        %4724 = vrot.lane.b32.xlu0 %v4634, 32
        %v4725 = vpop.permute.xlu0 %4724
        %4726 = vrot.lane.b32.xlu0 %v4635, 32
        %v4727 = vpop.permute.xlu0 %4726
        %4728 = vrot.lane.b32.xlu0 %v4636, 32
        %v4729 = vpop.permute.xlu0 %4728
        %4730 = vrot.lane.b32.xlu0 %v4637, 32
        %v4731 = vpop.permute.xlu0 %4730
        %4732 = vrot.lane.b32.xlu0 %v4638, 32
        %v4733 = vpop.permute.xlu0 %4732
        %4734 = vrot.lane.b32.xlu0 %v4639, 32
        %v4735 = vpop.permute.xlu0 %4734
        %v4768 = vmul.f32 %v4064, %v4673
        %v4769 = vmul.f32 %v4065, %v4675
        %v4770 = vmul.f32 %v4066, %v4677
        %v4771 = vmul.f32 %v4067, %v4679
        %v4772 = vmul.f32 %v4068, %v4681
        %v4773 = vmul.f32 %v4069, %v4683
        %v4774 = vmul.f32 %v4070, %v4685
        %v4775 = vmul.f32 %v4071, %v4687
        %v4776 = vmul.f32 %v4072, %v4689
        %v4777 = vmul.f32 %v4073, %v4691
        %v4778 = vmul.f32 %v4074, %v4693
        %v4779 = vmul.f32 %v4075, %v4695
        %v4780 = vmul.f32 %v4076, %v4697
        %v4781 = vmul.f32 %v4077, %v4699
        %v4782 = vmul.f32 %v4078, %v4701
        %v4783 = vmul.f32 %v4079, %v4703
        %v4784 = vmul.f32 %v4080, %v4705
        %v4785 = vmul.f32 %v4081, %v4707
        %v4786 = vmul.f32 %v4082, %v4709
        %v4787 = vmul.f32 %v4083, %v4711
        %v4788 = vmul.f32 %v4084, %v4713
        %v4789 = vmul.f32 %v4085, %v4715
        %v4790 = vmul.f32 %v4086, %v4717
        %v4791 = vmul.f32 %v4087, %v4719
        %v4792 = vmul.f32 %v4088, %v4721
        %v4793 = vmul.f32 %v4089, %v4723
        %v4794 = vmul.f32 %v4090, %v4725
        %v4795 = vmul.f32 %v4091, %v4727
        %v4796 = vmul.f32 %v4092, %v4729
        %v4797 = vmul.f32 %v4093, %v4731
        %v4798 = vmul.f32 %v4094, %v4733
        %v4799 = vmul.f32 %v4095, %v4735
        %4832 = vrot.lane.b32.xlu0 %v4576, 96
        %v4833 = vpop.permute.xlu0 %4832
        %4834 = vrot.lane.b32.xlu0 %v4577, 96
        %v4835 = vpop.permute.xlu0 %4834
        %4836 = vrot.lane.b32.xlu0 %v4578, 96
        %v4837 = vpop.permute.xlu0 %4836
        %4838 = vrot.lane.b32.xlu0 %v4579, 96
        %v4839 = vpop.permute.xlu0 %4838
        %4840 = vrot.lane.b32.xlu0 %v4580, 96
        %v4841 = vpop.permute.xlu0 %4840
        %4842 = vrot.lane.b32.xlu0 %v4581, 96
        %v4843 = vpop.permute.xlu0 %4842
        %4844 = vrot.lane.b32.xlu0 %v4582, 96
        %v4845 = vpop.permute.xlu0 %4844
        %4846 = vrot.lane.b32.xlu0 %v4583, 96
        %v4847 = vpop.permute.xlu0 %4846
        %4848 = vrot.lane.b32.xlu0 %v4584, 96
        %v4849 = vpop.permute.xlu0 %4848
        %4850 = vrot.lane.b32.xlu0 %v4585, 96
        %v4851 = vpop.permute.xlu0 %4850
        %4852 = vrot.lane.b32.xlu0 %v4586, 96
        %v4853 = vpop.permute.xlu0 %4852
        %4854 = vrot.lane.b32.xlu0 %v4587, 96
        %v4855 = vpop.permute.xlu0 %4854
        %4856 = vrot.lane.b32.xlu0 %v4588, 96
        %v4857 = vpop.permute.xlu0 %4856
        %4858 = vrot.lane.b32.xlu0 %v4589, 96
        %v4859 = vpop.permute.xlu0 %4858
        %4860 = vrot.lane.b32.xlu0 %v4590, 96
        %v4861 = vpop.permute.xlu0 %4860
        %4862 = vrot.lane.b32.xlu0 %v4591, 96
        %v4863 = vpop.permute.xlu0 %4862
        %4864 = vrot.lane.b32.xlu0 %v4592, 96
        %v4865 = vpop.permute.xlu0 %4864
        %4866 = vrot.lane.b32.xlu0 %v4593, 96
        %v4867 = vpop.permute.xlu0 %4866
        %4868 = vrot.lane.b32.xlu0 %v4594, 96
        %v4869 = vpop.permute.xlu0 %4868
        %4870 = vrot.lane.b32.xlu0 %v4595, 96
        %v4871 = vpop.permute.xlu0 %4870
        %4872 = vrot.lane.b32.xlu0 %v4596, 96
        %v4873 = vpop.permute.xlu0 %4872
        %4874 = vrot.lane.b32.xlu0 %v4597, 96
        %v4875 = vpop.permute.xlu0 %4874
        %4876 = vrot.lane.b32.xlu0 %v4598, 96
        %v4877 = vpop.permute.xlu0 %4876
        %4878 = vrot.lane.b32.xlu0 %v4599, 96
        %v4879 = vpop.permute.xlu0 %4878
        %4880 = vrot.lane.b32.xlu0 %v4600, 96
        %v4881 = vpop.permute.xlu0 %4880
        %4882 = vrot.lane.b32.xlu0 %v4601, 96
        %v4883 = vpop.permute.xlu0 %4882
        %4884 = vrot.lane.b32.xlu0 %v4602, 96
        %v4885 = vpop.permute.xlu0 %4884
        %4886 = vrot.lane.b32.xlu0 %v4603, 96
        %v4887 = vpop.permute.xlu0 %4886
        %4888 = vrot.lane.b32.xlu0 %v4604, 96
        %v4889 = vpop.permute.xlu0 %4888
        %4890 = vrot.lane.b32.xlu0 %v4605, 96
        %v4891 = vpop.permute.xlu0 %4890
        %4892 = vrot.lane.b32.xlu0 %v4606, 96
        %v4893 = vpop.permute.xlu0 %4892
        %4894 = vrot.lane.b32.xlu0 %v4607, 96
        %v4895 = vpop.permute.xlu0 %4894
        %vm4928 = vcmask 261120
        %4929 = vst.msk [vmem:[%s225] sm:$0xff] %vm4928, %v4833
        %4930 = vst.msk [vmem:[%s225 + $0x8] sm:$0xff] %vm4928, %v4835
        %4931 = vst.msk [vmem:[%s225 + $0x10] sm:$0xff] %vm4928, %v4837
        %4932 = vst.msk [vmem:[%s225 + $0x18] sm:$0xff] %vm4928, %v4839
        %4933 = vst.msk [vmem:[%s225 + $0x20] sm:$0xff] %vm4928, %v4841
        %4934 = vst.msk [vmem:[%s225 + $0x28] sm:$0xff] %vm4928, %v4843
        %4935 = vst.msk [vmem:[%s225 + $0x30] sm:$0xff] %vm4928, %v4845
        %4936 = vst.msk [vmem:[%s225 + $0x38] sm:$0xff] %vm4928, %v4847
        %4937 = vst.msk [vmem:[%s225 + $0x40] sm:$0xff] %vm4928, %v4849
        %4938 = vst.msk [vmem:[%s225 + $0x48] sm:$0xff] %vm4928, %v4851
        %4939 = vst.msk [vmem:[%s225 + $0x50] sm:$0xff] %vm4928, %v4853
        %4940 = vst.msk [vmem:[%s225 + $0x58] sm:$0xff] %vm4928, %v4855
        %4941 = vst.msk [vmem:[%s225 + $0x60] sm:$0xff] %vm4928, %v4857
        %4942 = vst.msk [vmem:[%s225 + $0x68] sm:$0xff] %vm4928, %v4859
        %4943 = vst.msk [vmem:[%s225 + $0x70] sm:$0xff] %vm4928, %v4861
        %4944 = vst.msk [vmem:[%s225 + $0x78] sm:$0xff] %vm4928, %v4863
        %4945 = vst.msk [vmem:[%s225 + $0x80] sm:$0xff] %vm4928, %v4865
        %4946 = vst.msk [vmem:[%s225 + $0x88] sm:$0xff] %vm4928, %v4867
        %4947 = vst.msk [vmem:[%s225 + $0x90] sm:$0xff] %vm4928, %v4869
        %4948 = vst.msk [vmem:[%s225 + $0x98] sm:$0xff] %vm4928, %v4871
        %4949 = vst.msk [vmem:[%s225 + $0xa0] sm:$0xff] %vm4928, %v4873
        %4950 = vst.msk [vmem:[%s225 + $0xa8] sm:$0xff] %vm4928, %v4875
        %4951 = vst.msk [vmem:[%s225 + $0xb0] sm:$0xff] %vm4928, %v4877
        %4952 = vst.msk [vmem:[%s225 + $0xb8] sm:$0xff] %vm4928, %v4879
        %4953 = vst.msk [vmem:[%s225 + $0xc0] sm:$0xff] %vm4928, %v4881
        %4954 = vst.msk [vmem:[%s225 + $0xc8] sm:$0xff] %vm4928, %v4883
        %4955 = vst.msk [vmem:[%s225 + $0xd0] sm:$0xff] %vm4928, %v4885
        %4956 = vst.msk [vmem:[%s225 + $0xd8] sm:$0xff] %vm4928, %v4887
        %4957 = vst.msk [vmem:[%s225 + $0xe0] sm:$0xff] %vm4928, %v4889
        %4958 = vst.msk [vmem:[%s225 + $0xe8] sm:$0xff] %vm4928, %v4891
        %4959 = vst.msk [vmem:[%s225 + $0xf0] sm:$0xff] %vm4928, %v4893
        %4960 = vst.msk [vmem:[%s225 + $0xf8] sm:$0xff] %vm4928, %v4895
        %v4961 = vpack.c.bf16 %v4768, %v4768
        %v4962 = vpack.c.bf16 %v4769, %v4769
        %v4963 = vpack.c.bf16 %v4770, %v4770
        %v4964 = vpack.c.bf16 %v4771, %v4771
        %v4965 = vpack.c.bf16 %v4772, %v4772
        %v4966 = vpack.c.bf16 %v4773, %v4773
        %v4967 = vpack.c.bf16 %v4774, %v4774
        %v4968 = vpack.c.bf16 %v4775, %v4775
        %v4969 = vpack.c.bf16 %v4776, %v4776
        %v4970 = vpack.c.bf16 %v4777, %v4777
        %v4971 = vpack.c.bf16 %v4778, %v4778
        %v4972 = vpack.c.bf16 %v4779, %v4779
        %v4973 = vpack.c.bf16 %v4780, %v4780
        %v4974 = vpack.c.bf16 %v4781, %v4781
        %v4975 = vpack.c.bf16 %v4782, %v4782
        %v4976 = vpack.c.bf16 %v4783, %v4783
        %v4977 = vpack.c.bf16 %v4784, %v4784
        %v4978 = vpack.c.bf16 %v4785, %v4785
        %v4979 = vpack.c.bf16 %v4786, %v4786
        %v4980 = vpack.c.bf16 %v4787, %v4787
        %v4981 = vpack.c.bf16 %v4788, %v4788
        %v4982 = vpack.c.bf16 %v4789, %v4789
        %v4983 = vpack.c.bf16 %v4790, %v4790
        %v4984 = vpack.c.bf16 %v4791, %v4791
        %v4985 = vpack.c.bf16 %v4792, %v4792
        %v4986 = vpack.c.bf16 %v4793, %v4793
        %v4987 = vpack.c.bf16 %v4794, %v4794
        %v4988 = vpack.c.bf16 %v4795, %v4795
        %v4989 = vpack.c.bf16 %v4796, %v4796
        %v4990 = vpack.c.bf16 %v4797, %v4797
        %v4991 = vpack.c.bf16 %v4798, %v4798
        %v4992 = vpack.c.bf16 %v4799, %v4799
        %5025 = vrot.lane.b32.xlu0 %v4961, 64
        %v5026 = vpop.permute.xlu0 %5025
        %5027 = vrot.lane.b32.xlu0 %v4962, 64
        %v5028 = vpop.permute.xlu0 %5027
        %5029 = vrot.lane.b32.xlu0 %v4963, 64
        %v5030 = vpop.permute.xlu0 %5029
        %5031 = vrot.lane.b32.xlu0 %v4964, 64
        %v5032 = vpop.permute.xlu0 %5031
        %5033 = vrot.lane.b32.xlu0 %v4965, 64
        %v5034 = vpop.permute.xlu0 %5033
        %5035 = vrot.lane.b32.xlu0 %v4966, 64
        %v5036 = vpop.permute.xlu0 %5035
        %5037 = vrot.lane.b32.xlu0 %v4967, 64
        %v5038 = vpop.permute.xlu0 %5037
        %5039 = vrot.lane.b32.xlu0 %v4968, 64
        %v5040 = vpop.permute.xlu0 %5039
        %5041 = vrot.lane.b32.xlu0 %v4969, 64
        %v5042 = vpop.permute.xlu0 %5041
        %5043 = vrot.lane.b32.xlu0 %v4970, 64
        %v5044 = vpop.permute.xlu0 %5043
        %5045 = vrot.lane.b32.xlu0 %v4971, 64
        %v5046 = vpop.permute.xlu0 %5045
        %5047 = vrot.lane.b32.xlu0 %v4972, 64
        %v5048 = vpop.permute.xlu0 %5047
        %5049 = vrot.lane.b32.xlu0 %v4973, 64
        %v5050 = vpop.permute.xlu0 %5049
        %5051 = vrot.lane.b32.xlu0 %v4974, 64
        %v5052 = vpop.permute.xlu0 %5051
        %5053 = vrot.lane.b32.xlu0 %v4975, 64
        %v5054 = vpop.permute.xlu0 %5053
        %5055 = vrot.lane.b32.xlu0 %v4976, 64
        %v5056 = vpop.permute.xlu0 %5055
        %5057 = vrot.lane.b32.xlu0 %v4977, 64
        %v5058 = vpop.permute.xlu0 %5057
        %5059 = vrot.lane.b32.xlu0 %v4978, 64
        %v5060 = vpop.permute.xlu0 %5059
        %5061 = vrot.lane.b32.xlu0 %v4979, 64
        %v5062 = vpop.permute.xlu0 %5061
        %5063 = vrot.lane.b32.xlu0 %v4980, 64
        %v5064 = vpop.permute.xlu0 %5063
        %5065 = vrot.lane.b32.xlu0 %v4981, 64
        %v5066 = vpop.permute.xlu0 %5065
        %5067 = vrot.lane.b32.xlu0 %v4982, 64
        %v5068 = vpop.permute.xlu0 %5067
        %5069 = vrot.lane.b32.xlu0 %v4983, 64
        %v5070 = vpop.permute.xlu0 %5069
        %5071 = vrot.lane.b32.xlu0 %v4984, 64
        %v5072 = vpop.permute.xlu0 %5071
        %5073 = vrot.lane.b32.xlu0 %v4985, 64
        %v5074 = vpop.permute.xlu0 %5073
        %5075 = vrot.lane.b32.xlu0 %v4986, 64
        %v5076 = vpop.permute.xlu0 %5075
        %5077 = vrot.lane.b32.xlu0 %v4987, 64
        %v5078 = vpop.permute.xlu0 %5077
        %5079 = vrot.lane.b32.xlu0 %v4988, 64
        %v5080 = vpop.permute.xlu0 %5079
        %5081 = vrot.lane.b32.xlu0 %v4989, 64
        %v5082 = vpop.permute.xlu0 %5081
        %5083 = vrot.lane.b32.xlu0 %v4990, 64
        %v5084 = vpop.permute.xlu0 %5083
        %5085 = vrot.lane.b32.xlu0 %v4991, 64
        %v5086 = vpop.permute.xlu0 %5085
        %5087 = vrot.lane.b32.xlu0 %v4992, 64
        %v5088 = vpop.permute.xlu0 %5087
        %vm5121 = vcmask 257024
        %5122 = vst.msk [vmem:[%s218] sm:$0xf] %vm5121, %v5026
        %5123 = vst.msk [vmem:[%s218 + $0x4] sm:$0xf] %vm5121, %v5028
        %5124 = vst.msk [vmem:[%s218 + $0x8] sm:$0xf] %vm5121, %v5030
        %5125 = vst.msk [vmem:[%s218 + $0xc] sm:$0xf] %vm5121, %v5032
        %5126 = vst.msk [vmem:[%s218 + $0x10] sm:$0xf] %vm5121, %v5034
        %5127 = vst.msk [vmem:[%s218 + $0x14] sm:$0xf] %vm5121, %v5036
        %5128 = vst.msk [vmem:[%s218 + $0x18] sm:$0xf] %vm5121, %v5038
        %5129 = vst.msk [vmem:[%s218 + $0x1c] sm:$0xf] %vm5121, %v5040
        %5130 = vst.msk [vmem:[%s218 + $0x20] sm:$0xf] %vm5121, %v5042
        %5131 = vst.msk [vmem:[%s218 + $0x24] sm:$0xf] %vm5121, %v5044
        %5132 = vst.msk [vmem:[%s218 + $0x28] sm:$0xf] %vm5121, %v5046
        %5133 = vst.msk [vmem:[%s218 + $0x2c] sm:$0xf] %vm5121, %v5048
        %5134 = vst.msk [vmem:[%s218 + $0x30] sm:$0xf] %vm5121, %v5050
        %5135 = vst.msk [vmem:[%s218 + $0x34] sm:$0xf] %vm5121, %v5052
        %5136 = vst.msk [vmem:[%s218 + $0x38] sm:$0xf] %vm5121, %v5054
        %5137 = vst.msk [vmem:[%s218 + $0x3c] sm:$0xf] %vm5121, %v5056
        %5138 = vst.msk [vmem:[%s218 + $0x40] sm:$0xf] %vm5121, %v5058
        %5139 = vst.msk [vmem:[%s218 + $0x44] sm:$0xf] %vm5121, %v5060
        %5140 = vst.msk [vmem:[%s218 + $0x48] sm:$0xf] %vm5121, %v5062
        %5141 = vst.msk [vmem:[%s218 + $0x4c] sm:$0xf] %vm5121, %v5064
        %5142 = vst.msk [vmem:[%s218 + $0x50] sm:$0xf] %vm5121, %v5066
        %5143 = vst.msk [vmem:[%s218 + $0x54] sm:$0xf] %vm5121, %v5068
        %5144 = vst.msk [vmem:[%s218 + $0x58] sm:$0xf] %vm5121, %v5070
        %5145 = vst.msk [vmem:[%s218 + $0x5c] sm:$0xf] %vm5121, %v5072
        %5146 = vst.msk [vmem:[%s218 + $0x60] sm:$0xf] %vm5121, %v5074
        %5147 = vst.msk [vmem:[%s218 + $0x64] sm:$0xf] %vm5121, %v5076
        %5148 = vst.msk [vmem:[%s218 + $0x68] sm:$0xf] %vm5121, %v5078
        %5149 = vst.msk [vmem:[%s218 + $0x6c] sm:$0xf] %vm5121, %v5080
        %5150 = vst.msk [vmem:[%s218 + $0x70] sm:$0xf] %vm5121, %v5082
        %5151 = vst.msk [vmem:[%s218 + $0x74] sm:$0xf] %vm5121, %v5084
        %5152 = vst.msk [vmem:[%s218 + $0x78] sm:$0xf] %vm5121, %v5086
        %5153 = vst.msk [vmem:[%s218 + $0x7c] sm:$0xf] %vm5121, %v5088
        %p5154 = scmp.lt.s32.totalorder %s27, 7
        // Predicated region
        $region37: #{tpu_custom_call.1} parent=31 // pred_check
          %p5155 = pneg %p5154
        $region38: #{tpu_custom_call.1} parent=31 // pred_check_branch
          %5157 = sbr.rel (%p5155) target = $region40
        $region39: #{tpu_custom_call.1} parent=31 // pred_region
          %v5159 = vshrl.u32 %v4961, 16
          %v5161 = vrot.slane %v5159, 7
          %v5162 = vshll.u32 %v4961, 16
          %v5164 = vor.u32 %v5161, %v5162
          %v5165 = vrot.slane %v5161, 4
          %v5167 = vshrl.u32 %v4962, 16
          %v5169 = vrot.slane %v5167, 7
          %v5170 = vshll.u32 %v4962, 16
          %v5172 = vor.u32 %v5169, %v5170
          %v5173 = vsel %vm379, %v5165, %v5172
          %v5175 = vshrl.u32 %v4963, 16
          %v5177 = vrot.slane %v5175, 7
          %v5178 = vshll.u32 %v4963, 16
          %v5180 = vor.u32 %v5177, %v5178
          %v5181 = vrot.slane %v5177, 4
          %v5183 = vshrl.u32 %v4964, 16
          %v5185 = vrot.slane %v5183, 7
          %v5186 = vshll.u32 %v4964, 16
          %v5188 = vor.u32 %v5185, %v5186
          %v5189 = vsel %vm379, %v5181, %v5188
          %v5191 = vshrl.u32 %v4965, 16
          %v5193 = vrot.slane %v5191, 7
          %v5194 = vshll.u32 %v4965, 16
          %v5196 = vor.u32 %v5193, %v5194
          %v5197 = vrot.slane %v5193, 4
          %v5199 = vshrl.u32 %v4966, 16
          %v5201 = vrot.slane %v5199, 7
          %v5202 = vshll.u32 %v4966, 16
          %v5204 = vor.u32 %v5201, %v5202
          %v5205 = vsel %vm379, %v5197, %v5204
          %v5207 = vshrl.u32 %v4967, 16
          %v5209 = vrot.slane %v5207, 7
          %v5210 = vshll.u32 %v4967, 16
          %v5212 = vor.u32 %v5209, %v5210
          %v5213 = vrot.slane %v5209, 4
          %v5215 = vshrl.u32 %v4968, 16
          %v5217 = vrot.slane %v5215, 7
          %v5218 = vshll.u32 %v4968, 16
          %v5220 = vor.u32 %v5217, %v5218
          %v5221 = vsel %vm379, %v5213, %v5220
          %v5223 = vshrl.u32 %v4969, 16
          %v5225 = vrot.slane %v5223, 7
          %v5226 = vshll.u32 %v4969, 16
          %v5228 = vor.u32 %v5225, %v5226
          %v5229 = vrot.slane %v5225, 4
          %v5231 = vshrl.u32 %v4970, 16
          %v5233 = vrot.slane %v5231, 7
          %v5234 = vshll.u32 %v4970, 16
          %v5236 = vor.u32 %v5233, %v5234
          %v5237 = vsel %vm379, %v5229, %v5236
          %v5239 = vshrl.u32 %v4971, 16
          %v5241 = vrot.slane %v5239, 7
          %v5242 = vshll.u32 %v4971, 16
          %v5244 = vor.u32 %v5241, %v5242
          %v5245 = vrot.slane %v5241, 4
          %v5247 = vshrl.u32 %v4972, 16
          %v5249 = vrot.slane %v5247, 7
          %v5250 = vshll.u32 %v4972, 16
          %v5252 = vor.u32 %v5249, %v5250
          %v5253 = vsel %vm379, %v5245, %v5252
          %v5255 = vshrl.u32 %v4973, 16
          %v5257 = vrot.slane %v5255, 7
          %v5258 = vshll.u32 %v4973, 16
          %v5260 = vor.u32 %v5257, %v5258
          %v5261 = vrot.slane %v5257, 4
          %v5263 = vshrl.u32 %v4974, 16
          %v5265 = vrot.slane %v5263, 7
          %v5266 = vshll.u32 %v4974, 16
          %v5268 = vor.u32 %v5265, %v5266
          %v5269 = vsel %vm379, %v5261, %v5268
          %v5271 = vshrl.u32 %v4975, 16
          %v5273 = vrot.slane %v5271, 7
          %v5274 = vshll.u32 %v4975, 16
          %v5276 = vor.u32 %v5273, %v5274
          %v5277 = vrot.slane %v5273, 4
          %v5279 = vshrl.u32 %v4976, 16
          %v5281 = vrot.slane %v5279, 7
          %v5282 = vshll.u32 %v4976, 16
          %v5284 = vor.u32 %v5281, %v5282
          %v5285 = vsel %vm379, %v5277, %v5284
          %v5287 = vshrl.u32 %v4977, 16
          %v5289 = vrot.slane %v5287, 7
          %v5290 = vshll.u32 %v4977, 16
          %v5292 = vor.u32 %v5289, %v5290
          %v5293 = vrot.slane %v5289, 4
          %v5295 = vshrl.u32 %v4978, 16
          %v5297 = vrot.slane %v5295, 7
          %v5298 = vshll.u32 %v4978, 16
          %v5300 = vor.u32 %v5297, %v5298
          %v5301 = vsel %vm379, %v5293, %v5300
          %v5303 = vshrl.u32 %v4979, 16
          %v5305 = vrot.slane %v5303, 7
          %v5306 = vshll.u32 %v4979, 16
          %v5308 = vor.u32 %v5305, %v5306
          %v5309 = vrot.slane %v5305, 4
          %v5311 = vshrl.u32 %v4980, 16
          %v5313 = vrot.slane %v5311, 7
          %v5314 = vshll.u32 %v4980, 16
          %v5316 = vor.u32 %v5313, %v5314
          %v5317 = vsel %vm379, %v5309, %v5316
          %v5319 = vshrl.u32 %v4981, 16
          %v5321 = vrot.slane %v5319, 7
          %v5322 = vshll.u32 %v4981, 16
          %v5324 = vor.u32 %v5321, %v5322
          %v5325 = vrot.slane %v5321, 4
          %v5327 = vshrl.u32 %v4982, 16
          %v5329 = vrot.slane %v5327, 7
          %v5330 = vshll.u32 %v4982, 16
          %v5332 = vor.u32 %v5329, %v5330
          %v5333 = vsel %vm379, %v5325, %v5332
          %v5335 = vshrl.u32 %v4983, 16
          %v5337 = vrot.slane %v5335, 7
          %v5338 = vshll.u32 %v4983, 16
          %v5340 = vor.u32 %v5337, %v5338
          %v5341 = vrot.slane %v5337, 4
          %v5343 = vshrl.u32 %v4984, 16
          %v5345 = vrot.slane %v5343, 7
          %v5346 = vshll.u32 %v4984, 16
          %v5348 = vor.u32 %v5345, %v5346
          %v5349 = vsel %vm379, %v5341, %v5348
          %v5351 = vshrl.u32 %v4985, 16
          %v5353 = vrot.slane %v5351, 7
          %v5354 = vshll.u32 %v4985, 16
          %v5356 = vor.u32 %v5353, %v5354
          %v5357 = vrot.slane %v5353, 4
          %v5359 = vshrl.u32 %v4986, 16
          %v5361 = vrot.slane %v5359, 7
          %v5362 = vshll.u32 %v4986, 16
          %v5364 = vor.u32 %v5361, %v5362
          %v5365 = vsel %vm379, %v5357, %v5364
          %v5367 = vshrl.u32 %v4987, 16
          %v5369 = vrot.slane %v5367, 7
          %v5370 = vshll.u32 %v4987, 16
          %v5372 = vor.u32 %v5369, %v5370
          %v5373 = vrot.slane %v5369, 4
          %v5375 = vshrl.u32 %v4988, 16
          %v5377 = vrot.slane %v5375, 7
          %v5378 = vshll.u32 %v4988, 16
          %v5380 = vor.u32 %v5377, %v5378
          %v5381 = vsel %vm379, %v5373, %v5380
          %v5383 = vshrl.u32 %v4989, 16
          %v5385 = vrot.slane %v5383, 7
          %v5386 = vshll.u32 %v4989, 16
          %v5388 = vor.u32 %v5385, %v5386
          %v5389 = vrot.slane %v5385, 4
          %v5391 = vshrl.u32 %v4990, 16
          %v5393 = vrot.slane %v5391, 7
          %v5394 = vshll.u32 %v4990, 16
          %v5396 = vor.u32 %v5393, %v5394
          %v5397 = vsel %vm379, %v5389, %v5396
          %v5399 = vshrl.u32 %v4991, 16
          %v5401 = vrot.slane %v5399, 7
          %v5402 = vshll.u32 %v4991, 16
          %v5404 = vor.u32 %v5401, %v5402
          %v5405 = vrot.slane %v5401, 4
          %v5407 = vshrl.u32 %v4992, 16
          %v5409 = vrot.slane %v5407, 7
          %v5410 = vshll.u32 %v4992, 16
          %v5412 = vor.u32 %v5409, %v5410
          %v5413 = vsel %vm379, %v5405, %v5412
          %5414 = vrot.lane.b32.xlu0 %v5164, 68
          %v5415 = vpop.permute.xlu0 %5414
          %5416 = vrot.lane.b32.xlu0 %v5173, 68
          %v5417 = vpop.permute.xlu0 %5416
          %5418 = vrot.lane.b32.xlu0 %v5180, 68
          %v5419 = vpop.permute.xlu0 %5418
          %5420 = vrot.lane.b32.xlu0 %v5189, 68
          %v5421 = vpop.permute.xlu0 %5420
          %5422 = vrot.lane.b32.xlu0 %v5196, 68
          %v5423 = vpop.permute.xlu0 %5422
          %5424 = vrot.lane.b32.xlu0 %v5205, 68
          %v5425 = vpop.permute.xlu0 %5424
          %5426 = vrot.lane.b32.xlu0 %v5212, 68
          %v5427 = vpop.permute.xlu0 %5426
          %5428 = vrot.lane.b32.xlu0 %v5221, 68
          %v5429 = vpop.permute.xlu0 %5428
          %5430 = vrot.lane.b32.xlu0 %v5228, 68
          %v5431 = vpop.permute.xlu0 %5430
          %5432 = vrot.lane.b32.xlu0 %v5237, 68
          %v5433 = vpop.permute.xlu0 %5432
          %5434 = vrot.lane.b32.xlu0 %v5244, 68
          %v5435 = vpop.permute.xlu0 %5434
          %5436 = vrot.lane.b32.xlu0 %v5253, 68
          %v5437 = vpop.permute.xlu0 %5436
          %5438 = vrot.lane.b32.xlu0 %v5260, 68
          %v5439 = vpop.permute.xlu0 %5438
          %5440 = vrot.lane.b32.xlu0 %v5269, 68
          %v5441 = vpop.permute.xlu0 %5440
          %5442 = vrot.lane.b32.xlu0 %v5276, 68
          %v5443 = vpop.permute.xlu0 %5442
          %5444 = vrot.lane.b32.xlu0 %v5285, 68
          %v5445 = vpop.permute.xlu0 %5444
          %5446 = vrot.lane.b32.xlu0 %v5292, 68
          %v5447 = vpop.permute.xlu0 %5446
          %5448 = vrot.lane.b32.xlu0 %v5301, 68
          %v5449 = vpop.permute.xlu0 %5448
          %5450 = vrot.lane.b32.xlu0 %v5308, 68
          %v5451 = vpop.permute.xlu0 %5450
          %5452 = vrot.lane.b32.xlu0 %v5317, 68
          %v5453 = vpop.permute.xlu0 %5452
          %5454 = vrot.lane.b32.xlu0 %v5324, 68
          %v5455 = vpop.permute.xlu0 %5454
          %5456 = vrot.lane.b32.xlu0 %v5333, 68
          %v5457 = vpop.permute.xlu0 %5456
          %5458 = vrot.lane.b32.xlu0 %v5340, 68
          %v5459 = vpop.permute.xlu0 %5458
          %5460 = vrot.lane.b32.xlu0 %v5349, 68
          %v5461 = vpop.permute.xlu0 %5460
          %5462 = vrot.lane.b32.xlu0 %v5356, 68
          %v5463 = vpop.permute.xlu0 %5462
          %5464 = vrot.lane.b32.xlu0 %v5365, 68
          %v5465 = vpop.permute.xlu0 %5464
          %5466 = vrot.lane.b32.xlu0 %v5372, 68
          %v5467 = vpop.permute.xlu0 %5466
          %5468 = vrot.lane.b32.xlu0 %v5381, 68
          %v5469 = vpop.permute.xlu0 %5468
          %5470 = vrot.lane.b32.xlu0 %v5388, 68
          %v5471 = vpop.permute.xlu0 %5470
          %5472 = vrot.lane.b32.xlu0 %v5397, 68
          %v5473 = vpop.permute.xlu0 %5472
          %5474 = vrot.lane.b32.xlu0 %v5404, 68
          %v5475 = vpop.permute.xlu0 %5474
          %5476 = vrot.lane.b32.xlu0 %v5413, 68
          %v5477 = vpop.permute.xlu0 %5476
          %vm5510 = vcmask 289824
          %vm5511 = vmand %vm5510, %vm670
          %v5512 = vld [vmem:[%s668] sm:$0xf]
          %v5513 = vsel %vm5511, %v5415, %v5512
          %5514 = vst [vmem:[%s668] sm:$0xf] %v5513
          %vm5515 = vcmask 289824
          %5516 = vst.msk [vmem:[%s668 + $0xc] sm:$0xf] %vm5515, %v5417
          %v5517 = vld [vmem:[%s668 + $0x18] sm:$0xf]
          %v5518 = vsel %vm5511, %v5419, %v5517
          %5519 = vst [vmem:[%s668 + $0x18] sm:$0xf] %v5518
          %5520 = vst.msk [vmem:[%s668 + $0x24] sm:$0xf] %vm5515, %v5421
          %v5521 = vld [vmem:[%s668 + $0x30] sm:$0xf]
          %v5522 = vsel %vm5511, %v5423, %v5521
          %5523 = vst [vmem:[%s668 + $0x30] sm:$0xf] %v5522
          %5524 = vst.msk [vmem:[%s668 + $0x3c] sm:$0xf] %vm5515, %v5425
          %v5525 = vld [vmem:[%s668 + $0x48] sm:$0xf]
          %v5526 = vsel %vm5511, %v5427, %v5525
          %5527 = vst [vmem:[%s668 + $0x48] sm:$0xf] %v5526
          %5528 = vst.msk [vmem:[%s668 + $0x54] sm:$0xf] %vm5515, %v5429
          %v5529 = vld [vmem:[%s668 + $0x60] sm:$0xf]
          %v5530 = vsel %vm5511, %v5431, %v5529
          %5531 = vst [vmem:[%s668 + $0x60] sm:$0xf] %v5530
          %5532 = vst.msk [vmem:[%s668 + $0x6c] sm:$0xf] %vm5515, %v5433
          %v5533 = vld [vmem:[%s668 + $0x78] sm:$0xf]
          %v5534 = vsel %vm5511, %v5435, %v5533
          %5535 = vst [vmem:[%s668 + $0x78] sm:$0xf] %v5534
          %5536 = vst.msk [vmem:[%s668 + $0x84] sm:$0xf] %vm5515, %v5437
          %v5537 = vld [vmem:[%s668 + $0x90] sm:$0xf]
          %v5538 = vsel %vm5511, %v5439, %v5537
          %5539 = vst [vmem:[%s668 + $0x90] sm:$0xf] %v5538
          %5540 = vst.msk [vmem:[%s668 + $0x9c] sm:$0xf] %vm5515, %v5441
          %v5541 = vld [vmem:[%s668 + $0xa8] sm:$0xf]
          %v5542 = vsel %vm5511, %v5443, %v5541
          %5543 = vst [vmem:[%s668 + $0xa8] sm:$0xf] %v5542
          %5544 = vst.msk [vmem:[%s668 + $0xb4] sm:$0xf] %vm5515, %v5445
          %v5545 = vld [vmem:[%s668 + $0xc0] sm:$0xf]
          %v5546 = vsel %vm5511, %v5447, %v5545
          %5547 = vst [vmem:[%s668 + $0xc0] sm:$0xf] %v5546
          %5548 = vst.msk [vmem:[%s668 + $0xcc] sm:$0xf] %vm5515, %v5449
          %v5549 = vld [vmem:[%s668 + $0xd8] sm:$0xf]
          %v5550 = vsel %vm5511, %v5451, %v5549
          %5551 = vst [vmem:[%s668 + $0xd8] sm:$0xf] %v5550
          %5552 = vst.msk [vmem:[%s668 + $0xe4] sm:$0xf] %vm5515, %v5453
          %v5553 = vld [vmem:[%s668 + $0xf0] sm:$0xf]
          %v5554 = vsel %vm5511, %v5455, %v5553
          %5555 = vst [vmem:[%s668 + $0xf0] sm:$0xf] %v5554
          %5556 = vst.msk [vmem:[%s668 + $0xfc] sm:$0xf] %vm5515, %v5457
          %v5557 = vld [vmem:[%s668 + $0x108] sm:$0xf]
          %v5558 = vsel %vm5511, %v5459, %v5557
          %5559 = vst [vmem:[%s668 + $0x108] sm:$0xf] %v5558
          %5560 = vst.msk [vmem:[%s668 + $0x114] sm:$0xf] %vm5515, %v5461
          %v5561 = vld [vmem:[%s668 + $0x120] sm:$0xf]
          %v5562 = vsel %vm5511, %v5463, %v5561
          %5563 = vst [vmem:[%s668 + $0x120] sm:$0xf] %v5562
          %5564 = vst.msk [vmem:[%s668 + $0x12c] sm:$0xf] %vm5515, %v5465
          %v5565 = vld [vmem:[%s668 + $0x138] sm:$0xf]
          %v5566 = vsel %vm5511, %v5467, %v5565
          %5567 = vst [vmem:[%s668 + $0x138] sm:$0xf] %v5566
          %5568 = vst.msk [vmem:[%s668 + $0x144] sm:$0xf] %vm5515, %v5469
          %v5569 = vld [vmem:[%s668 + $0x150] sm:$0xf]
          %v5570 = vsel %vm5511, %v5471, %v5569
          %5571 = vst [vmem:[%s668 + $0x150] sm:$0xf] %v5570
          %5572 = vst.msk [vmem:[%s668 + $0x15c] sm:$0xf] %vm5515, %v5473
          %v5573 = vld [vmem:[%s668 + $0x168] sm:$0xf]
          %v5574 = vsel %vm5511, %v5475, %v5573
          %5575 = vst [vmem:[%s668 + $0x168] sm:$0xf] %v5574
          %5576 = vst.msk [vmem:[%s668 + $0x174] sm:$0xf] %vm5515, %v5477
          %5577 = vrot.lane.b32.xlu0 %v4961, 68
          %v5578 = vpop.permute.xlu0 %5577
          %5579 = vrot.lane.b32.xlu0 %v4962, 68
          %v5580 = vpop.permute.xlu0 %5579
          %5581 = vrot.lane.b32.xlu0 %v4963, 68
          %v5582 = vpop.permute.xlu0 %5581
          %5583 = vrot.lane.b32.xlu0 %v4964, 68
          %v5584 = vpop.permute.xlu0 %5583
          %5585 = vrot.lane.b32.xlu0 %v4965, 68
          %v5586 = vpop.permute.xlu0 %5585
          %5587 = vrot.lane.b32.xlu0 %v4966, 68
          %v5588 = vpop.permute.xlu0 %5587
          %5589 = vrot.lane.b32.xlu0 %v4967, 68
          %v5590 = vpop.permute.xlu0 %5589
          %5591 = vrot.lane.b32.xlu0 %v4968, 68
          %v5592 = vpop.permute.xlu0 %5591
          %5593 = vrot.lane.b32.xlu0 %v4969, 68
          %v5594 = vpop.permute.xlu0 %5593
          %5595 = vrot.lane.b32.xlu0 %v4970, 68
          %v5596 = vpop.permute.xlu0 %5595
          %5597 = vrot.lane.b32.xlu0 %v4971, 68
          %v5598 = vpop.permute.xlu0 %5597
          %5599 = vrot.lane.b32.xlu0 %v4972, 68
          %v5600 = vpop.permute.xlu0 %5599
          %5601 = vrot.lane.b32.xlu0 %v4973, 68
          %v5602 = vpop.permute.xlu0 %5601
          %5603 = vrot.lane.b32.xlu0 %v4974, 68
          %v5604 = vpop.permute.xlu0 %5603
          %5605 = vrot.lane.b32.xlu0 %v4975, 68
          %v5606 = vpop.permute.xlu0 %5605
          %5607 = vrot.lane.b32.xlu0 %v4976, 68
          %v5608 = vpop.permute.xlu0 %5607
          %5609 = vrot.lane.b32.xlu0 %v4977, 68
          %v5610 = vpop.permute.xlu0 %5609
          %5611 = vrot.lane.b32.xlu0 %v4978, 68
          %v5612 = vpop.permute.xlu0 %5611
          %5613 = vrot.lane.b32.xlu0 %v4979, 68
          %v5614 = vpop.permute.xlu0 %5613
          %5615 = vrot.lane.b32.xlu0 %v4980, 68
          %v5616 = vpop.permute.xlu0 %5615
          %5617 = vrot.lane.b32.xlu0 %v4981, 68
          %v5618 = vpop.permute.xlu0 %5617
          %5619 = vrot.lane.b32.xlu0 %v4982, 68
          %v5620 = vpop.permute.xlu0 %5619
          %5621 = vrot.lane.b32.xlu0 %v4983, 68
          %v5622 = vpop.permute.xlu0 %5621
          %5623 = vrot.lane.b32.xlu0 %v4984, 68
          %v5624 = vpop.permute.xlu0 %5623
          %5625 = vrot.lane.b32.xlu0 %v4985, 68
          %v5626 = vpop.permute.xlu0 %5625
          %5627 = vrot.lane.b32.xlu0 %v4986, 68
          %v5628 = vpop.permute.xlu0 %5627
          %5629 = vrot.lane.b32.xlu0 %v4987, 68
          %v5630 = vpop.permute.xlu0 %5629
          %5631 = vrot.lane.b32.xlu0 %v4988, 68
          %v5632 = vpop.permute.xlu0 %5631
          %5633 = vrot.lane.b32.xlu0 %v4989, 68
          %v5634 = vpop.permute.xlu0 %5633
          %5635 = vrot.lane.b32.xlu0 %v4990, 68
          %v5636 = vpop.permute.xlu0 %5635
          %5637 = vrot.lane.b32.xlu0 %v4991, 68
          %v5638 = vpop.permute.xlu0 %5637
          %5639 = vrot.lane.b32.xlu0 %v4992, 68
          %v5640 = vpop.permute.xlu0 %5639
          %5673 = vst.msk [vmem:[%s668 + $0x4] sm:$0xf] %vm5515, %v5578
          %5674 = vst.msk [vmem:[%s668 + $0x10] sm:$0xf] %vm5515, %v5580
          %5675 = vst.msk [vmem:[%s668 + $0x1c] sm:$0xf] %vm5515, %v5582
          %5676 = vst.msk [vmem:[%s668 + $0x28] sm:$0xf] %vm5515, %v5584
          %5677 = vst.msk [vmem:[%s668 + $0x34] sm:$0xf] %vm5515, %v5586
          %5678 = vst.msk [vmem:[%s668 + $0x40] sm:$0xf] %vm5515, %v5588
          %5679 = vst.msk [vmem:[%s668 + $0x4c] sm:$0xf] %vm5515, %v5590
          %5680 = vst.msk [vmem:[%s668 + $0x58] sm:$0xf] %vm5515, %v5592
          %5681 = vst.msk [vmem:[%s668 + $0x64] sm:$0xf] %vm5515, %v5594
          %5682 = vst.msk [vmem:[%s668 + $0x70] sm:$0xf] %vm5515, %v5596
          %5683 = vst.msk [vmem:[%s668 + $0x7c] sm:$0xf] %vm5515, %v5598
          %5684 = vst.msk [vmem:[%s668 + $0x88] sm:$0xf] %vm5515, %v5600
          %5685 = vst.msk [vmem:[%s668 + $0x94] sm:$0xf] %vm5515, %v5602
          %5686 = vst.msk [vmem:[%s668 + $0xa0] sm:$0xf] %vm5515, %v5604
          %5687 = vst.msk [vmem:[%s668 + $0xac] sm:$0xf] %vm5515, %v5606
          %5688 = vst.msk [vmem:[%s668 + $0xb8] sm:$0xf] %vm5515, %v5608
          %5689 = vst.msk [vmem:[%s668 + $0xc4] sm:$0xf] %vm5515, %v5610
          %5690 = vst.msk [vmem:[%s668 + $0xd0] sm:$0xf] %vm5515, %v5612
          %5691 = vst.msk [vmem:[%s668 + $0xdc] sm:$0xf] %vm5515, %v5614
          %5692 = vst.msk [vmem:[%s668 + $0xe8] sm:$0xf] %vm5515, %v5616
          %5693 = vst.msk [vmem:[%s668 + $0xf4] sm:$0xf] %vm5515, %v5618
          %5694 = vst.msk [vmem:[%s668 + $0x100] sm:$0xf] %vm5515, %v5620
          %5695 = vst.msk [vmem:[%s668 + $0x10c] sm:$0xf] %vm5515, %v5622
          %5696 = vst.msk [vmem:[%s668 + $0x118] sm:$0xf] %vm5515, %v5624
          %5697 = vst.msk [vmem:[%s668 + $0x124] sm:$0xf] %vm5515, %v5626
          %5698 = vst.msk [vmem:[%s668 + $0x130] sm:$0xf] %vm5515, %v5628
          %5699 = vst.msk [vmem:[%s668 + $0x13c] sm:$0xf] %vm5515, %v5630
          %5700 = vst.msk [vmem:[%s668 + $0x148] sm:$0xf] %vm5515, %v5632
          %5701 = vst.msk [vmem:[%s668 + $0x154] sm:$0xf] %vm5515, %v5634
          %5702 = vst.msk [vmem:[%s668 + $0x160] sm:$0xf] %vm5515, %v5636
          %5703 = vst.msk [vmem:[%s668 + $0x16c] sm:$0xf] %vm5515, %v5638
          %5704 = vst.msk [vmem:[%s668 + $0x178] sm:$0xf] %vm5515, %v5640
          %v5705 = vrot.slane %v5159, 4
          %v5706 = vrot.slane %v5162, 5
          %v5707 = vor.u32 %v5705, %v5706
          %v5708 = vrot.slane %v5707, 4
          %v5709 = vrot.slane %v5170, 5
          %v5710 = vsel %vm771, %v5708, %v5709
          %v5711 = vrot.slane %v5167, 4
          %v5712 = vor.u32 %v5711, %v5709
          %v5713 = vrot.slane %v5712, 4
          %v5714 = vrot.slane %v5175, 4
          %v5715 = vrot.slane %v5178, 5
          %v5716 = vor.u32 %v5714, %v5715
          %v5717 = vrot.slane %v5716, 4
          %v5718 = vrot.slane %v5186, 5
          %v5719 = vsel %vm771, %v5717, %v5718
          %v5720 = vrot.slane %v5183, 4
          %v5721 = vor.u32 %v5720, %v5718
          %v5722 = vrot.slane %v5721, 4
          %v5723 = vrot.slane %v5191, 4
          %v5724 = vrot.slane %v5194, 5
          %v5725 = vor.u32 %v5723, %v5724
          %v5726 = vrot.slane %v5725, 4
          %v5727 = vrot.slane %v5202, 5
          %v5728 = vsel %vm771, %v5726, %v5727
          %v5729 = vrot.slane %v5199, 4
          %v5730 = vor.u32 %v5729, %v5727
          %v5731 = vrot.slane %v5730, 4
          %v5732 = vrot.slane %v5207, 4
          %v5733 = vrot.slane %v5210, 5
          %v5734 = vor.u32 %v5732, %v5733
          %v5735 = vrot.slane %v5734, 4
          %v5736 = vrot.slane %v5218, 5
          %v5737 = vsel %vm771, %v5735, %v5736
          %v5738 = vrot.slane %v5215, 4
          %v5739 = vor.u32 %v5738, %v5736
          %v5740 = vrot.slane %v5739, 4
          %v5741 = vrot.slane %v5223, 4
          %v5742 = vrot.slane %v5226, 5
          %v5743 = vor.u32 %v5741, %v5742
          %v5744 = vrot.slane %v5743, 4
          %v5745 = vrot.slane %v5234, 5
          %v5746 = vsel %vm771, %v5744, %v5745
          %v5747 = vrot.slane %v5231, 4
          %v5748 = vor.u32 %v5747, %v5745
          %v5749 = vrot.slane %v5748, 4
          %v5750 = vrot.slane %v5239, 4
          %v5751 = vrot.slane %v5242, 5
          %v5752 = vor.u32 %v5750, %v5751
          %v5753 = vrot.slane %v5752, 4
          %v5754 = vrot.slane %v5250, 5
          %v5755 = vsel %vm771, %v5753, %v5754
          %v5756 = vrot.slane %v5247, 4
          %v5757 = vor.u32 %v5756, %v5754
          %v5758 = vrot.slane %v5757, 4
          %v5759 = vrot.slane %v5255, 4
          %v5760 = vrot.slane %v5258, 5
          %v5761 = vor.u32 %v5759, %v5760
          %v5762 = vrot.slane %v5761, 4
          %v5763 = vrot.slane %v5266, 5
          %v5764 = vsel %vm771, %v5762, %v5763
          %v5765 = vrot.slane %v5263, 4
          %v5766 = vor.u32 %v5765, %v5763
          %v5767 = vrot.slane %v5766, 4
          %v5768 = vrot.slane %v5271, 4
          %v5769 = vrot.slane %v5274, 5
          %v5770 = vor.u32 %v5768, %v5769
          %v5771 = vrot.slane %v5770, 4
          %v5772 = vrot.slane %v5282, 5
          %v5773 = vsel %vm771, %v5771, %v5772
          %v5774 = vrot.slane %v5279, 4
          %v5775 = vor.u32 %v5774, %v5772
          %v5776 = vrot.slane %v5775, 4
          %v5777 = vrot.slane %v5287, 4
          %v5778 = vrot.slane %v5290, 5
          %v5779 = vor.u32 %v5777, %v5778
          %v5780 = vrot.slane %v5779, 4
          %v5781 = vrot.slane %v5298, 5
          %v5782 = vsel %vm771, %v5780, %v5781
          %v5783 = vrot.slane %v5295, 4
          %v5784 = vor.u32 %v5783, %v5781
          %v5785 = vrot.slane %v5784, 4
          %v5786 = vrot.slane %v5303, 4
          %v5787 = vrot.slane %v5306, 5
          %v5788 = vor.u32 %v5786, %v5787
          %v5789 = vrot.slane %v5788, 4
          %v5790 = vrot.slane %v5314, 5
          %v5791 = vsel %vm771, %v5789, %v5790
          %v5792 = vrot.slane %v5311, 4
          %v5793 = vor.u32 %v5792, %v5790
          %v5794 = vrot.slane %v5793, 4
          %v5795 = vrot.slane %v5319, 4
          %v5796 = vrot.slane %v5322, 5
          %v5797 = vor.u32 %v5795, %v5796
          %v5798 = vrot.slane %v5797, 4
          %v5799 = vrot.slane %v5330, 5
          %v5800 = vsel %vm771, %v5798, %v5799
          %v5801 = vrot.slane %v5327, 4
          %v5802 = vor.u32 %v5801, %v5799
          %v5803 = vrot.slane %v5802, 4
          %v5804 = vrot.slane %v5335, 4
          %v5805 = vrot.slane %v5338, 5
          %v5806 = vor.u32 %v5804, %v5805
          %v5807 = vrot.slane %v5806, 4
          %v5808 = vrot.slane %v5346, 5
          %v5809 = vsel %vm771, %v5807, %v5808
          %v5810 = vrot.slane %v5343, 4
          %v5811 = vor.u32 %v5810, %v5808
          %v5812 = vrot.slane %v5811, 4
          %v5813 = vrot.slane %v5351, 4
          %v5814 = vrot.slane %v5354, 5
          %v5815 = vor.u32 %v5813, %v5814
          %v5816 = vrot.slane %v5815, 4
          %v5817 = vrot.slane %v5362, 5
          %v5818 = vsel %vm771, %v5816, %v5817
          %v5819 = vrot.slane %v5359, 4
          %v5820 = vor.u32 %v5819, %v5817
          %v5821 = vrot.slane %v5820, 4
          %v5822 = vrot.slane %v5367, 4
          %v5823 = vrot.slane %v5370, 5
          %v5824 = vor.u32 %v5822, %v5823
          %v5825 = vrot.slane %v5824, 4
          %v5826 = vrot.slane %v5378, 5
          %v5827 = vsel %vm771, %v5825, %v5826
          %v5828 = vrot.slane %v5375, 4
          %v5829 = vor.u32 %v5828, %v5826
          %v5830 = vrot.slane %v5829, 4
          %v5831 = vrot.slane %v5383, 4
          %v5832 = vrot.slane %v5386, 5
          %v5833 = vor.u32 %v5831, %v5832
          %v5834 = vrot.slane %v5833, 4
          %v5835 = vrot.slane %v5394, 5
          %v5836 = vsel %vm771, %v5834, %v5835
          %v5837 = vrot.slane %v5391, 4
          %v5838 = vor.u32 %v5837, %v5835
          %v5839 = vrot.slane %v5838, 4
          %v5840 = vrot.slane %v5399, 4
          %v5841 = vrot.slane %v5402, 5
          %v5842 = vor.u32 %v5840, %v5841
          %v5843 = vrot.slane %v5842, 4
          %v5844 = vrot.slane %v5410, 5
          %v5845 = vsel %vm771, %v5843, %v5844
          %v5846 = vrot.slane %v5407, 4
          %v5847 = vor.u32 %v5846, %v5844
          %v5848 = vrot.slane %v5847, 4
          %5849 = vrot.lane.b32.xlu0 %v5710, 68
          %v5850 = vpop.permute.xlu0 %5849
          %5851 = vrot.lane.b32.xlu0 %v5713, 68
          %v5852 = vpop.permute.xlu0 %5851
          %5853 = vrot.lane.b32.xlu0 %v5719, 68
          %v5854 = vpop.permute.xlu0 %5853
          %5855 = vrot.lane.b32.xlu0 %v5722, 68
          %v5856 = vpop.permute.xlu0 %5855
          %5857 = vrot.lane.b32.xlu0 %v5728, 68
          %v5858 = vpop.permute.xlu0 %5857
          %5859 = vrot.lane.b32.xlu0 %v5731, 68
          %v5860 = vpop.permute.xlu0 %5859
          %5861 = vrot.lane.b32.xlu0 %v5737, 68
          %v5862 = vpop.permute.xlu0 %5861
          %5863 = vrot.lane.b32.xlu0 %v5740, 68
          %v5864 = vpop.permute.xlu0 %5863
          %5865 = vrot.lane.b32.xlu0 %v5746, 68
          %v5866 = vpop.permute.xlu0 %5865
          %5867 = vrot.lane.b32.xlu0 %v5749, 68
          %v5868 = vpop.permute.xlu0 %5867
          %5869 = vrot.lane.b32.xlu0 %v5755, 68
          %v5870 = vpop.permute.xlu0 %5869
          %5871 = vrot.lane.b32.xlu0 %v5758, 68
          %v5872 = vpop.permute.xlu0 %5871
          %5873 = vrot.lane.b32.xlu0 %v5764, 68
          %v5874 = vpop.permute.xlu0 %5873
          %5875 = vrot.lane.b32.xlu0 %v5767, 68
          %v5876 = vpop.permute.xlu0 %5875
          %5877 = vrot.lane.b32.xlu0 %v5773, 68
          %v5878 = vpop.permute.xlu0 %5877
          %5879 = vrot.lane.b32.xlu0 %v5776, 68
          %v5880 = vpop.permute.xlu0 %5879
          %5881 = vrot.lane.b32.xlu0 %v5782, 68
          %v5882 = vpop.permute.xlu0 %5881
          %5883 = vrot.lane.b32.xlu0 %v5785, 68
          %v5884 = vpop.permute.xlu0 %5883
          %5885 = vrot.lane.b32.xlu0 %v5791, 68
          %v5886 = vpop.permute.xlu0 %5885
          %5887 = vrot.lane.b32.xlu0 %v5794, 68
          %v5888 = vpop.permute.xlu0 %5887
          %5889 = vrot.lane.b32.xlu0 %v5800, 68
          %v5890 = vpop.permute.xlu0 %5889
          %5891 = vrot.lane.b32.xlu0 %v5803, 68
          %v5892 = vpop.permute.xlu0 %5891
          %5893 = vrot.lane.b32.xlu0 %v5809, 68
          %v5894 = vpop.permute.xlu0 %5893
          %5895 = vrot.lane.b32.xlu0 %v5812, 68
          %v5896 = vpop.permute.xlu0 %5895
          %5897 = vrot.lane.b32.xlu0 %v5818, 68
          %v5898 = vpop.permute.xlu0 %5897
          %5899 = vrot.lane.b32.xlu0 %v5821, 68
          %v5900 = vpop.permute.xlu0 %5899
          %5901 = vrot.lane.b32.xlu0 %v5827, 68
          %v5902 = vpop.permute.xlu0 %5901
          %5903 = vrot.lane.b32.xlu0 %v5830, 68
          %v5904 = vpop.permute.xlu0 %5903
          %5905 = vrot.lane.b32.xlu0 %v5836, 68
          %v5906 = vpop.permute.xlu0 %5905
          %5907 = vrot.lane.b32.xlu0 %v5839, 68
          %v5908 = vpop.permute.xlu0 %5907
          %5909 = vrot.lane.b32.xlu0 %v5845, 68
          %v5910 = vpop.permute.xlu0 %5909
          %5911 = vrot.lane.b32.xlu0 %v5848, 68
          %v5912 = vpop.permute.xlu0 %5911
          %5945 = vst.msk [vmem:[%s668 + $0x8] sm:$0xf] %vm5515, %v5850
          %vm5946 = vmand %vm5510, %vm769
          %v5947 = vld [vmem:[%s668 + $0x14] sm:$0xf]
          %v5948 = vsel %vm5946, %v5852, %v5947
          %5949 = vst [vmem:[%s668 + $0x14] sm:$0xf] %v5948
          %5950 = vst.msk [vmem:[%s668 + $0x20] sm:$0xf] %vm5515, %v5854
          %v5951 = vld [vmem:[%s668 + $0x2c] sm:$0xf]
          %v5952 = vsel %vm5946, %v5856, %v5951
          %5953 = vst [vmem:[%s668 + $0x2c] sm:$0xf] %v5952
          %5954 = vst.msk [vmem:[%s668 + $0x38] sm:$0xf] %vm5515, %v5858
          %v5955 = vld [vmem:[%s668 + $0x44] sm:$0xf]
          %v5956 = vsel %vm5946, %v5860, %v5955
          %5957 = vst [vmem:[%s668 + $0x44] sm:$0xf] %v5956
          %5958 = vst.msk [vmem:[%s668 + $0x50] sm:$0xf] %vm5515, %v5862
          %v5959 = vld [vmem:[%s668 + $0x5c] sm:$0xf]
          %v5960 = vsel %vm5946, %v5864, %v5959
          %5961 = vst [vmem:[%s668 + $0x5c] sm:$0xf] %v5960
          %5962 = vst.msk [vmem:[%s668 + $0x68] sm:$0xf] %vm5515, %v5866
          %v5963 = vld [vmem:[%s668 + $0x74] sm:$0xf]
          %v5964 = vsel %vm5946, %v5868, %v5963
          %5965 = vst [vmem:[%s668 + $0x74] sm:$0xf] %v5964
          %5966 = vst.msk [vmem:[%s668 + $0x80] sm:$0xf] %vm5515, %v5870
          %v5967 = vld [vmem:[%s668 + $0x8c] sm:$0xf]
          %v5968 = vsel %vm5946, %v5872, %v5967
          %5969 = vst [vmem:[%s668 + $0x8c] sm:$0xf] %v5968
          %5970 = vst.msk [vmem:[%s668 + $0x98] sm:$0xf] %vm5515, %v5874
          %v5971 = vld [vmem:[%s668 + $0xa4] sm:$0xf]
          %v5972 = vsel %vm5946, %v5876, %v5971
          %5973 = vst [vmem:[%s668 + $0xa4] sm:$0xf] %v5972
          %5974 = vst.msk [vmem:[%s668 + $0xb0] sm:$0xf] %vm5515, %v5878
          %v5975 = vld [vmem:[%s668 + $0xbc] sm:$0xf]
          %v5976 = vsel %vm5946, %v5880, %v5975
          %5977 = vst [vmem:[%s668 + $0xbc] sm:$0xf] %v5976
          %5978 = vst.msk [vmem:[%s668 + $0xc8] sm:$0xf] %vm5515, %v5882
          %v5979 = vld [vmem:[%s668 + $0xd4] sm:$0xf]
          %v5980 = vsel %vm5946, %v5884, %v5979
          %5981 = vst [vmem:[%s668 + $0xd4] sm:$0xf] %v5980
          %5982 = vst.msk [vmem:[%s668 + $0xe0] sm:$0xf] %vm5515, %v5886
          %v5983 = vld [vmem:[%s668 + $0xec] sm:$0xf]
          %v5984 = vsel %vm5946, %v5888, %v5983
          %5985 = vst [vmem:[%s668 + $0xec] sm:$0xf] %v5984
          %5986 = vst.msk [vmem:[%s668 + $0xf8] sm:$0xf] %vm5515, %v5890
          %v5987 = vld [vmem:[%s668 + $0x104] sm:$0xf]
          %v5988 = vsel %vm5946, %v5892, %v5987
          %5989 = vst [vmem:[%s668 + $0x104] sm:$0xf] %v5988
          %5990 = vst.msk [vmem:[%s668 + $0x110] sm:$0xf] %vm5515, %v5894
          %v5991 = vld [vmem:[%s668 + $0x11c] sm:$0xf]
          %v5992 = vsel %vm5946, %v5896, %v5991
          %5993 = vst [vmem:[%s668 + $0x11c] sm:$0xf] %v5992
          %5994 = vst.msk [vmem:[%s668 + $0x128] sm:$0xf] %vm5515, %v5898
          %v5995 = vld [vmem:[%s668 + $0x134] sm:$0xf]
          %v5996 = vsel %vm5946, %v5900, %v5995
          %5997 = vst [vmem:[%s668 + $0x134] sm:$0xf] %v5996
          %5998 = vst.msk [vmem:[%s668 + $0x140] sm:$0xf] %vm5515, %v5902
          %v5999 = vld [vmem:[%s668 + $0x14c] sm:$0xf]
          %v6000 = vsel %vm5946, %v5904, %v5999
          %6001 = vst [vmem:[%s668 + $0x14c] sm:$0xf] %v6000
          %6002 = vst.msk [vmem:[%s668 + $0x158] sm:$0xf] %vm5515, %v5906
          %v6003 = vld [vmem:[%s668 + $0x164] sm:$0xf]
          %v6004 = vsel %vm5946, %v5908, %v6003
          %6005 = vst [vmem:[%s668 + $0x164] sm:$0xf] %v6004
          %6006 = vst.msk [vmem:[%s668 + $0x170] sm:$0xf] %vm5515, %v5910
          %v6007 = vld [vmem:[%s668 + $0x17c] sm:$0xf]
          %v6008 = vsel %vm5946, %v5912, %v6007
          %6009 = vst [vmem:[%s668 + $0x17c] sm:$0xf] %v6008
        $region40: #{tpu_custom_call.1} parent=31 // pred_fallthru
          _
        %s6010 = sand.u32 %s114, 1
        %s6011 = scalar_lea.sflag [#allocation4], %s6010
        %s6012 = sand.u32 %s114, 1
        %s6013 = smul.addr %s6012, 128
        %s6014 = scalar_lea.vmem [#allocation3], %s6013
        %s6015 = sand.u32 %s140, 1
        %s6016 = scalar_lea.sflag [#allocation6], %s6015
        %s6017 = sand.u32 %s140, 1
        %s6018 = smul.addr %s6017, 256
        %s6019 = scalar_lea.vmem [#allocation5], %s6018
        // Predicated region
        $region41: #{tpu_custom_call.1} parent=31 // pred_check
          %p6020 = pneg %p124
        $region42: #{tpu_custom_call.1} parent=31 // pred_check_branch
          %6022 = sbr.rel (%p6020) target = $region44
        $region43: #{tpu_custom_call.1} parent=31 // pred_region
          %6024 = vsyncadd %s6011, 0
          %s6025 = smul.addr %s26, 32
          %s6026 = smul.addr %s27, 64
          %s6027 = sadd.s32 %s6025, %s6026
          %s6028 = smul.addr %s6027, 4
          %s6029 = scalar_lea.hbm %s3, %s6028
          %s6030 = sshll.u32 %s6014, 4
          %s6031 = int_to_ptr.vmem [resolvable:$true] %s6030
          %s6032 = sshll.u32 %s6029, 4
          %s6033 = int_to_ptr.hbm [resolvable:$true] %s6032
          %6038 = dma.vmem_to_hbm [thread:$0]  %s6031, 2048, %s6033, %s6011, 64, 64, 4
        $region44: #{tpu_custom_call.1} parent=31 // pred_fallthru
          _
        // Predicated region
        $region45: #{tpu_custom_call.1} parent=31 // pred_check
          %p6039 = pneg %p150
        $region46: #{tpu_custom_call.1} parent=31 // pred_check_branch
          %6041 = sbr.rel (%p6039) target = $region48
        $region47: #{tpu_custom_call.1} parent=31 // pred_region
          %6043 = vsyncadd %s6016, 0
          %s6044 = smul.addr %s26, 32
          %s6045 = smul.addr %s6044, 8
          %s6046 = scalar_lea.hbm %s4, %s6045
          %s6047 = sshll.u32 %s6019, 4
          %s6048 = int_to_ptr.vmem [resolvable:$true] %s6047
          %s6049 = sshll.u32 %s6046, 4
          %s6050 = int_to_ptr.hbm [resolvable:$true] %s6049
          %6055 = dma.vmem_to_hbm [thread:$0]  %s6048, 4096, %s6050, %s6016, 128, 128, 8
        $region48: #{tpu_custom_call.1} parent=31 // pred_fallthru
          _
      $region32: #{tpu_custom_call.1} parent=5 // pred_fallthru
        _
      %p6056 = scmp.le.s32.totalorder 2, %s17
      // Predicated region
      $region49: #{tpu_custom_call.1} parent=5 // pred_check
        %p6057 = pneg %p6056
      $region50: #{tpu_custom_call.1} parent=5 // pred_check_branch
        %6059 = sbr.rel (%p6057) target = $region52
      $region51: #{tpu_custom_call.1} parent=5 // pred_region
        %s6060 = ssub.s32 %s17, 2
        // Predicated region
        $region53: #{tpu_custom_call.1} parent=51 // pred_check
          %p6061 = pneg %p130
        $region54: #{tpu_custom_call.1} parent=51 // pred_check_branch
          %6063 = sbr.rel (%p6061) target = $region56
        $region55: #{tpu_custom_call.1} parent=51 // pred_region
          %s6064 = sand.u32 %s115, 1
          %s6065 = scalar_lea.sflag [#allocation4], %s6064
          %s6066 = sand.u32 %s115, 1
          %s6067 = smul.addr %s6066, 128
          %s6068 = scalar_lea.vmem [#allocation3], %s6067
          %6070 = dma.done %s6065, 2048
        $region56: #{tpu_custom_call.1} parent=51 // pred_fallthru
          _
        // Predicated region
        $region57: #{tpu_custom_call.1} parent=51 // pred_check
          %p6071 = pneg %p156
        $region58: #{tpu_custom_call.1} parent=51 // pred_check_branch
          %6073 = sbr.rel (%p6071) target = $region60
        $region59: #{tpu_custom_call.1} parent=51 // pred_region
          %s6074 = sand.u32 %s141, 1
          %s6075 = scalar_lea.sflag [#allocation6], %s6074
          %s6076 = sand.u32 %s141, 1
          %s6077 = smul.addr %s6076, 256
          %s6078 = scalar_lea.vmem [#allocation5], %s6077
          %6080 = dma.done %s6075, 4096
        $region60: #{tpu_custom_call.1} parent=51 // pred_fallthru
          _
      $region52: #{tpu_custom_call.1} parent=5 // pred_fallthru
        _
    $region6: #{tpu_custom_call.1} parent=1 // loop_footer
      %s21 = sadd.s32 1, %s17
    $region7: #{tpu_custom_call.1} parent=1 // loop_footer_branch
      %16 = sbr.rel target = $region3
    $region8: #{tpu_custom_call.1} parent=1 // loop_exit
      _
    %6081 = vsyncpa [#allocation4], 1
    %s6082 = scalar_lea.sflag [#allocation4], 1
    %6083 = vsyncpa %s6082, 1
    %6084 = vsyncpa [#allocation6], 1
    %s6085 = scalar_lea.sflag [#allocation6], 1
    %6086 = vsyncpa %s6085, 1

</llo_original>
